<compile_context>
chip_gen: v5e
topology: v5e:2x2
jax: 0.10.0
libtpu: 0.0.40
codegen_flags: <defaults>
</compile_context>

<pallas_src>
import jax
import jax.numpy as jnp
from jax import lax
from jax.experimental import pallas as pl
from jax.experimental.pallas import tpu as pltpu

NEG_SLOPE = 0.01   # torch.nn.LeakyReLU default
BN_EPS = 1e-5      # torch.nn.BatchNorm2d default


def _im2col_3x3(x_pad, H, W, C):
    """x_pad: (H+2, W+2, C) value -> (H*W, 9*C) patch matrix (tap-major, C-minor)."""
    cols = []
    for dy in range(3):
        for dx in range(3):
            cols.append(x_pad[dy:dy + H, dx:dx + W, :].reshape(H * W, C))
    return jnp.concatenate(cols, axis=-1)


def conv_lrelu_stats_kernel(xp_ref, w1_ref, b1_ref, w2_ref, b2_ref,
                            y_ref, stats_ref):
    # xp_ref   : (1, H+2, W+2, Cin)   padded input for this batch element
    # w1_ref   : (9*Cin,  Cout)       conv1 weights, im2col-flattened
    # w2_ref   : (9*Cout, Cout)       conv2 weights, im2col-flattened
    # b1/b2    : (1, Cout)
    # y_ref    : (1, H*W, Cout)       pre-BN activations (after LeakyReLU)
    # stats_ref: (1, 2, Cout)         per-image [sum, sum-of-squares]
    _, Hp2, Wp2, Cin = xp_ref.shape
    H, W = Hp2 - 2, Wp2 - 2
    Cout = y_ref.shape[-1]

    xp = xp_ref[0]                                          # (H+2, W+2, Cin)

    # ---- conv1: single im2col matmul, K = 9*Cin ----
    p1 = _im2col_3x3(xp, H, W, Cin)                         # (H*W, 9*Cin)
    acc1 = jnp.dot(p1, w1_ref[...],
                   preferred_element_type=jnp.float32) + b1_ref[...]

    # Zero-pad conv1 output as a value (no scratch zero/store/reload round trip).
    a1 = acc1.reshape(H, W, Cout)
    zrow = jnp.zeros((1, W, Cout), jnp.float32)
    a1 = jnp.concatenate([zrow, a1, zrow], axis=0)          # (H+2, W,   Cout)
    zcol = jnp.zeros((H + 2, 1, Cout), jnp.float32)
    h1p = jnp.concatenate([zcol, a1, zcol], axis=1)         # (H+2, W+2, Cout)

    # ---- conv2: single im2col matmul, K = 9*Cout ----
    p2 = _im2col_3x3(h1p, H, W, Cout)                       # (H*W, 9*Cout)
    acc2 = jnp.dot(p2, w2_ref[...],
                   preferred_element_type=jnp.float32) + b2_ref[...]

    # ---- LeakyReLU ----
    y = jnp.where(acc2 >= 0, acc2, NEG_SLOPE * acc2)        # (H*W, Cout)
    y_ref[...] = y[None]

    # ---- fused partial BatchNorm statistics (single pass over y) ----
    s = jnp.sum(y, axis=0, keepdims=True)                   # (1, Cout)
    ss = jnp.sum(y * y, axis=0, keepdims=True)              # (1, Cout)
    stats_ref[...] = jnp.concatenate([s, ss], axis=0)[None]  # (1, 2, Cout)


def bn_affine_kernel(y_ref, scale_ref, shift_ref, o_ref):
    # Lane-dense normalization: y/o blocks are (H, W*Cout) with W*Cout a
    # multiple of 128, so every load/store is an unmasked full-lane access.
    o_ref[...] = y_ref[...] * scale_ref[...] + shift_ref[...]


def conv_block(x_nchw, params):
    """Forward pass of ConvBlock. Input/output are NCHW (PyTorch convention)."""
    w1, b1, w2, b2, gamma, beta = params
    N, Cin, H, W = x_nchw.shape
    Cout = w1.shape[-1]

    # NHWC, pre-padded by 1 so both 3x3 'same' convs reduce to im2col matmuls.
    x_nhwc = jnp.transpose(x_nchw, (0, 2, 3, 1)).astype(jnp.float32)
    xp = jnp.pad(x_nhwc, ((0, 0), (1, 1), (1, 1), (0, 0)))

    # im2col weight layout: (ky, kx, cin, cout) -> (9*cin, cout), tap-major.
    w1f = w1.reshape(9 * Cin, Cout).astype(jnp.float32)
    w2f = w2.reshape(9 * Cout, Cout).astype(jnp.float32)
    b1r = b1.reshape(1, Cout).astype(jnp.float32)
    b2r = b2.reshape(1, Cout).astype(jnp.float32)

    flops = 2 * N * H * W * (9 * Cin * Cout + 9 * Cout * Cout)
    bytes_accessed = 4 * (xp.size + w1f.size + w2f.size
                          + 2 * N * H * W * Cout + 2 * N * Cout)

    # ---- phase 1: conv1 -> conv2 -> LeakyReLU + partial BN stats ----
    # Grid over the batch axis ("parallel": shards across the 2 TCs on v7x).
    # For large H/W this would additionally tile H row-strips with a 1-row halo.
    y_flat, stats = pl.pallas_call(
        conv_lrelu_stats_kernel,
        out_shape=(jax.ShapeDtypeStruct((N, H * W, Cout), jnp.float32),
                   jax.ShapeDtypeStruct((N, 2, Cout), jnp.float32)),
        grid=(N,),
        in_specs=[
            pl.BlockSpec((1, H + 2, W + 2, Cin), lambda n: (n, 0, 0, 0)),
            pl.BlockSpec((9 * Cin, Cout), lambda n: (0, 0)),
            pl.BlockSpec((1, Cout), lambda n: (0, 0)),
            pl.BlockSpec((9 * Cout, Cout), lambda n: (0, 0)),
            pl.BlockSpec((1, Cout), lambda n: (0, 0)),
        ],
        out_specs=(
            pl.BlockSpec((1, H * W, Cout), lambda n: (n, 0, 0)),
            pl.BlockSpec((1, 2, Cout), lambda n: (n, 0, 0)),
        ),
        compiler_params=pltpu.CompilerParams(
            dimension_semantics=("parallel",),
            vmem_limit_bytes=32 * 1024 * 1024),
        cost_estimate=pl.CostEstimate(flops=flops, transcendentals=0,
                                      bytes_accessed=bytes_accessed),
    )(xp, w1f, b1r, w2f, b2r)

    # ---- tiny per-channel reduction of the partial stats (global BN stats) ----
    cnt = N * H * W
    total = jnp.sum(stats, axis=0)                          # (2, Cout)
    mean = total[0] / cnt
    var = jnp.maximum(total[1] / cnt - mean * mean, 0.0)    # biased (training mode)
    inv = lax.rsqrt(var + BN_EPS)
    scale = gamma.astype(jnp.float32) * inv                 # (Cout,)
    shift = beta.astype(jnp.float32) - mean * scale

    # ---- phase 2: lane-dense normalization (fold (W, Cout) into lanes) ----
    y2 = y_flat.reshape(N * H, W * Cout)
    scale_f = jnp.tile(scale, W).reshape(1, W * Cout)
    shift_f = jnp.tile(shift, W).reshape(1, W * Cout)

    out2 = pl.pallas_call(
        bn_affine_kernel,
        out_shape=jax.ShapeDtypeStruct((N * H, W * Cout), jnp.float32),
        grid=(N,),
        in_specs=[
            pl.BlockSpec((H, W * Cout), lambda n: (n, 0)),
            pl.BlockSpec((1, W * Cout), lambda n: (0, 0)),
            pl.BlockSpec((1, W * Cout), lambda n: (0, 0)),
        ],
        out_specs=pl.BlockSpec((H, W * Cout), lambda n: (n, 0)),
        compiler_params=pltpu.CompilerParams(
            dimension_semantics=("parallel",),
            vmem_limit_bytes=32 * 1024 * 1024),
    )(y2, scale_f, shift_f)

    out_nhwc = out2.reshape(N, H, W, Cout)
    return jnp.transpose(out_nhwc, (0, 3, 1, 2))


def ref_conv_block(x_nchw, params):
    """Pure-JAX reference (mirrors the PyTorch module's forward, training-mode BN)."""
    w1, b1, w2, b2, gamma, beta = params

    def conv(x, w, b):
        w_oihw = jnp.transpose(w, (3, 2, 0, 1))
        y = lax.conv_general_dilated(
            x, w_oihw, window_strides=(1, 1), padding='SAME',
            dimension_numbers=('NCHW', 'OIHW', 'NCHW'))
        return y + b[None, :, None, None]

    y = conv(x_nchw, w1, b1)
    y = conv(y, w2, b2)
    y = jnp.where(y >= 0, y, NEG_SLOPE * y)
    mean = jnp.mean(y, axis=(0, 2, 3), keepdims=True)
    var = jnp.mean((y - mean) ** 2, axis=(0, 2, 3), keepdims=True)
    y = (y - mean) * lax.rsqrt(var + BN_EPS)
    return y * gamma[None, :, None, None] + beta[None, :, None, None]


if __name__ == "__main__":
    # small deterministic setup: batch=2, in_channels=4, out_channels=8, 16x16
    N, Cin, Cout, H, W = 2, 4, 8, 16, 16
    key = jax.random.PRNGKey(0)
    kx, k1, kb1, k2, kb2, kg, kb = jax.random.split(key, 7)

    x = jax.random.normal(kx, (N, Cin, H, W), jnp.float32)

    # conv weights stored directly in HWIO (synthetic deterministic init)
    w1 = jax.random.normal(k1, (3, 3, Cin, Cout), jnp.float32) * 0.1
    b1 = jax.random.normal(kb1, (Cout,), jnp.float32) * 0.1
    w2 = jax.random.normal(k2, (3, 3, Cout, Cout), jnp.float32) * 0.1
    b2 = jax.random.normal(kb2, (Cout,), jnp.float32) * 0.1
    gamma = 1.0 + 0.1 * jax.random.normal(kg, (Cout,), jnp.float32)
    beta = 0.1 * jax.random.normal(kb, (Cout,), jnp.float32)

    params = (w1, b1, w2, b2, gamma, beta)

    conv_block_jit = jax.jit(conv_block)
    out = jax.block_until_ready(conv_block_jit(x, params))
    ref = jax.block_until_ready(ref_conv_block(x, params))

    assert out.shape == (N, Cout, H, W), out.shape
    max_err = float(jnp.max(jnp.abs(out - ref)))
    assert jnp.allclose(out, ref, rtol=1e-4, atol=2e-4), max_err

    print("KERNEL_OK")
</pallas_src>

<mosaic_0001>
module attributes {stable_mosaic.version = 11 : i64} {
  func.func @conv_lrelu_stats_kernel(%arg0: i32, %arg1: memref<1x18x18x4xf32, #tpu.memory_space<vmem>>, %arg2: memref<36x8xf32, #tpu.memory_space<vmem>>, %arg3: memref<1x8xf32, #tpu.memory_space<vmem>>, %arg4: memref<72x8xf32, #tpu.memory_space<vmem>>, %arg5: memref<1x8xf32, #tpu.memory_space<vmem>>, %arg6: memref<1x256x8xf32, #tpu.memory_space<vmem>>, %arg7: memref<1x2x8xf32, #tpu.memory_space<vmem>>) attributes {dimension_semantics = [#tpu.dimension_semantics<parallel>], iteration_bounds = array<i64: 2>, scalar_prefetch = 0 : i64, scratch_operands = 0 : i64, tpu.core_type = #tpu.core_type<tc>, window_params = [{transform_indices = @transform_0, window_bounds = array<i64: 1, 18, 18, 4>}, {pipeline_mode = #tpu.pipeline_mode<synchronous>, transform_indices = @transform_1, window_bounds = array<i64: 36, 8>}, {pipeline_mode = #tpu.pipeline_mode<synchronous>, transform_indices = @transform_2, window_bounds = array<i64: 1, 8>}, {pipeline_mode = #tpu.pipeline_mode<synchronous>, transform_indices = @transform_3, window_bounds = array<i64: 72, 8>}, {pipeline_mode = #tpu.pipeline_mode<synchronous>, transform_indices = @transform_4, window_bounds = array<i64: 1, 8>}, {transform_indices = @transform_5, window_bounds = array<i64: 1, 256, 8>}, {transform_indices = @transform_6, window_bounds = array<i64: 1, 2, 8>}]} {
    %c0 = arith.constant 0 : index
    %c0_0 = arith.constant 0 : index
    %c0_1 = arith.constant 0 : index
    %c0_2 = arith.constant 0 : index
    %0 = vector.load %arg1[%c0, %c0_0, %c0_1, %c0_2] : memref<1x18x18x4xf32, #tpu.memory_space<vmem>>, vector<1x18x18x4xf32>
    %1 = vector.shape_cast %0 : vector<1x18x18x4xf32> to vector<18x18x4xf32>
    %2 = vector.extract_strided_slice %1 {offsets = [0, 0, 0], sizes = [16, 16, 4], strides = [1, 1, 1]} : vector<18x18x4xf32> to vector<16x16x4xf32>
    %3 = vector.shape_cast %2 : vector<16x16x4xf32> to vector<256x4xf32>
    %4 = vector.extract_strided_slice %1 {offsets = [0, 1, 0], sizes = [16, 16, 4], strides = [1, 1, 1]} : vector<18x18x4xf32> to vector<16x16x4xf32>
    %5 = vector.shape_cast %4 : vector<16x16x4xf32> to vector<256x4xf32>
    %6 = vector.extract_strided_slice %1 {offsets = [0, 2, 0], sizes = [16, 16, 4], strides = [1, 1, 1]} : vector<18x18x4xf32> to vector<16x16x4xf32>
    %7 = vector.shape_cast %6 : vector<16x16x4xf32> to vector<256x4xf32>
    %8 = vector.extract_strided_slice %1 {offsets = [1, 0, 0], sizes = [16, 16, 4], strides = [1, 1, 1]} : vector<18x18x4xf32> to vector<16x16x4xf32>
    %9 = vector.shape_cast %8 : vector<16x16x4xf32> to vector<256x4xf32>
    %10 = vector.extract_strided_slice %1 {offsets = [1, 1, 0], sizes = [16, 16, 4], strides = [1, 1, 1]} : vector<18x18x4xf32> to vector<16x16x4xf32>
    %11 = vector.shape_cast %10 : vector<16x16x4xf32> to vector<256x4xf32>
    %12 = vector.extract_strided_slice %1 {offsets = [1, 2, 0], sizes = [16, 16, 4], strides = [1, 1, 1]} : vector<18x18x4xf32> to vector<16x16x4xf32>
    %13 = vector.shape_cast %12 : vector<16x16x4xf32> to vector<256x4xf32>
    %14 = vector.extract_strided_slice %1 {offsets = [2, 0, 0], sizes = [16, 16, 4], strides = [1, 1, 1]} : vector<18x18x4xf32> to vector<16x16x4xf32>
    %15 = vector.shape_cast %14 : vector<16x16x4xf32> to vector<256x4xf32>
    %16 = vector.extract_strided_slice %1 {offsets = [2, 1, 0], sizes = [16, 16, 4], strides = [1, 1, 1]} : vector<18x18x4xf32> to vector<16x16x4xf32>
    %17 = vector.shape_cast %16 : vector<16x16x4xf32> to vector<256x4xf32>
    %18 = vector.extract_strided_slice %1 {offsets = [2, 2, 0], sizes = [16, 16, 4], strides = [1, 1, 1]} : vector<18x18x4xf32> to vector<16x16x4xf32>
    %19 = vector.shape_cast %18 : vector<16x16x4xf32> to vector<256x4xf32>
    %20 = tpu.concatenate %3, %5, %7, %9, %11, %13, %15, %17, %19 in 1 : vector<256x4xf32>, vector<256x4xf32>, vector<256x4xf32>, vector<256x4xf32>, vector<256x4xf32>, vector<256x4xf32>, vector<256x4xf32>, vector<256x4xf32>, vector<256x4xf32> -> vector<256x36xf32>
    %c0_3 = arith.constant 0 : index
    %c0_4 = arith.constant 0 : index
    %21 = vector.load %arg2[%c0_3, %c0_4] : memref<36x8xf32, #tpu.memory_space<vmem>>, vector<36x8xf32>
    %cst = arith.constant dense<0.000000e+00> : vector<256x8xf32>
    %22 = tpu.matmul %20, %21, %cst {dimension_numbers = #tpu.dot_dimension_numbers<[1], [0], [0], [1], [0, 0, 1, 1], [], []>} : vector<256x36xf32>, vector<36x8xf32>, vector<256x8xf32> -> vector<256x8xf32>
    %c0_5 = arith.constant 0 : index
    %c0_6 = arith.constant 0 : index
    %23 = vector.load %arg3[%c0_5, %c0_6] : memref<1x8xf32, #tpu.memory_space<vmem>>, vector<1x8xf32>
    %24 = vector.broadcast %23 : vector<1x8xf32> to vector<256x8xf32>
    %25 = arith.addf %22, %24 : vector<256x8xf32>
    %26 = vector.shape_cast %25 : vector<256x8xf32> to vector<16x16x8xf32>
    %cst_7 = arith.constant 0.000000e+00 : f32
    %27 = vector.broadcast %cst_7 : f32 to vector<1x16x8xf32>
    %28 = tpu.concatenate %27, %26, %27 in 0 : vector<1x16x8xf32>, vector<16x16x8xf32>, vector<1x16x8xf32> -> vector<18x16x8xf32>
    %cst_8 = arith.constant 0.000000e+00 : f32
    %29 = vector.broadcast %cst_8 : f32 to vector<18x1x8xf32>
    %30 = tpu.concatenate %29, %28, %29 in 1 : vector<18x1x8xf32>, vector<18x16x8xf32>, vector<18x1x8xf32> -> vector<18x18x8xf32>
    %31 = vector.extract_strided_slice %30 {offsets = [0, 0, 0], sizes = [16, 16, 8], strides = [1, 1, 1]} : vector<18x18x8xf32> to vector<16x16x8xf32>
    %32 = vector.shape_cast %31 : vector<16x16x8xf32> to vector<256x8xf32>
    %33 = vector.extract_strided_slice %30 {offsets = [0, 1, 0], sizes = [16, 16, 8], strides = [1, 1, 1]} : vector<18x18x8xf32> to vector<16x16x8xf32>
    %34 = vector.shape_cast %33 : vector<16x16x8xf32> to vector<256x8xf32>
    %35 = vector.extract_strided_slice %30 {offsets = [0, 2, 0], sizes = [16, 16, 8], strides = [1, 1, 1]} : vector<18x18x8xf32> to vector<16x16x8xf32>
    %36 = vector.shape_cast %35 : vector<16x16x8xf32> to vector<256x8xf32>
    %37 = vector.extract_strided_slice %30 {offsets = [1, 0, 0], sizes = [16, 16, 8], strides = [1, 1, 1]} : vector<18x18x8xf32> to vector<16x16x8xf32>
    %38 = vector.shape_cast %37 : vector<16x16x8xf32> to vector<256x8xf32>
    %39 = vector.extract_strided_slice %30 {offsets = [1, 1, 0], sizes = [16, 16, 8], strides = [1, 1, 1]} : vector<18x18x8xf32> to vector<16x16x8xf32>
    %40 = vector.shape_cast %39 : vector<16x16x8xf32> to vector<256x8xf32>
    %41 = vector.extract_strided_slice %30 {offsets = [1, 2, 0], sizes = [16, 16, 8], strides = [1, 1, 1]} : vector<18x18x8xf32> to vector<16x16x8xf32>
    %42 = vector.shape_cast %41 : vector<16x16x8xf32> to vector<256x8xf32>
    %43 = vector.extract_strided_slice %30 {offsets = [2, 0, 0], sizes = [16, 16, 8], strides = [1, 1, 1]} : vector<18x18x8xf32> to vector<16x16x8xf32>
    %44 = vector.shape_cast %43 : vector<16x16x8xf32> to vector<256x8xf32>
    %45 = vector.extract_strided_slice %30 {offsets = [2, 1, 0], sizes = [16, 16, 8], strides = [1, 1, 1]} : vector<18x18x8xf32> to vector<16x16x8xf32>
    %46 = vector.shape_cast %45 : vector<16x16x8xf32> to vector<256x8xf32>
    %47 = vector.extract_strided_slice %30 {offsets = [2, 2, 0], sizes = [16, 16, 8], strides = [1, 1, 1]} : vector<18x18x8xf32> to vector<16x16x8xf32>
    %48 = vector.shape_cast %47 : vector<16x16x8xf32> to vector<256x8xf32>
    %49 = tpu.concatenate %32, %34, %36, %38, %40, %42, %44, %46, %48 in 1 : vector<256x8xf32>, vector<256x8xf32>, vector<256x8xf32>, vector<256x8xf32>, vector<256x8xf32>, vector<256x8xf32>, vector<256x8xf32>, vector<256x8xf32>, vector<256x8xf32> -> vector<256x72xf32>
    %c0_9 = arith.constant 0 : index
    %c0_10 = arith.constant 0 : index
    %50 = vector.load %arg4[%c0_9, %c0_10] : memref<72x8xf32, #tpu.memory_space<vmem>>, vector<72x8xf32>
    %cst_11 = arith.constant dense<0.000000e+00> : vector<256x8xf32>
    %51 = tpu.matmul %49, %50, %cst_11 {dimension_numbers = #tpu.dot_dimension_numbers<[1], [0], [0], [1], [0, 0, 1, 1], [], []>} : vector<256x72xf32>, vector<72x8xf32>, vector<256x8xf32> -> vector<256x8xf32>
    %c0_12 = arith.constant 0 : index
    %c0_13 = arith.constant 0 : index
    %52 = vector.load %arg5[%c0_12, %c0_13] : memref<1x8xf32, #tpu.memory_space<vmem>>, vector<1x8xf32>
    %53 = vector.broadcast %52 : vector<1x8xf32> to vector<256x8xf32>
    %54 = arith.addf %51, %53 : vector<256x8xf32>
    %cst_14 = arith.constant 0.000000e+00 : f32
    %55 = vector.broadcast %cst_14 : f32 to vector<256x8xf32>
    %56 = arith.cmpf oge, %54, %55 : vector<256x8xf32>
    %cst_15 = arith.constant 0.00999999977 : f32
    %57 = vector.broadcast %cst_15 : f32 to vector<256x8xf32>
    %58 = arith.mulf %57, %54 : vector<256x8xf32>
    %59 = arith.select %56, %54, %58 : vector<256x8xi1>, vector<256x8xf32>
    %60 = vector.shape_cast %59 : vector<256x8xf32> to vector<1x256x8xf32>
    %c0_16 = arith.constant 0 : index
    %c0_17 = arith.constant 0 : index
    %c0_18 = arith.constant 0 : index
    %61 = vector.load %arg6[%c0_16, %c0_17, %c0_18] : memref<1x256x8xf32, #tpu.memory_space<vmem>>, vector<1x256x8xf32>
    tpu.vector_store %arg6[%c0_16, %c0_17, %c0_18], %60 {strides = array<i32>} : memref<1x256x8xf32, #tpu.memory_space<vmem>>, vector<1x256x8xf32>,
    %cst_19 = arith.constant dense<0.000000e+00> : vector<8xf32>
    %62 = vector.multi_reduction <add>, %59, %cst_19 [0] : vector<256x8xf32> to vector<8xf32>
    %63 = vector.shape_cast %62 : vector<8xf32> to vector<1x8xf32>
    %64 = arith.mulf %59, %59 : vector<256x8xf32>
    %cst_20 = arith.constant dense<0.000000e+00> : vector<8xf32>
    %65 = vector.multi_reduction <add>, %64, %cst_20 [0] : vector<256x8xf32> to vector<8xf32>
    %66 = vector.shape_cast %65 : vector<8xf32> to vector<1x8xf32>
    %67 = tpu.concatenate %63, %66 in 0 : vector<1x8xf32>, vector<1x8xf32> -> vector<2x8xf32>
    %68 = vector.shape_cast %67 : vector<2x8xf32> to vector<1x2x8xf32>
    %c0_21 = arith.constant 0 : index
    %c0_22 = arith.constant 0 : index
    %c0_23 = arith.constant 0 : index
    %69 = vector.load %arg7[%c0_21, %c0_22, %c0_23] : memref<1x2x8xf32, #tpu.memory_space<vmem>>, vector<1x2x8xf32>
    tpu.vector_store %arg7[%c0_21, %c0_22, %c0_23], %68 {strides = array<i32>} : memref<1x2x8xf32, #tpu.memory_space<vmem>>, vector<1x2x8xf32>,
    return
  }
  func.func @transform_0(%arg0: i32) -> (i32, i32, i32, i32) {
    %c0_i32 = arith.constant 0 : i32
    %c0_i32_0 = arith.constant 0 : i32
    %c0_i32_1 = arith.constant 0 : i32
    %c0_i32_2 = arith.constant 0 : i32
    return %arg0, %c0_i32, %c0_i32_0, %c0_i32_1 : i32, i32, i32, i32
  }
  func.func @transform_1(%arg0: i32) -> (i32, i32) {
    %c0_i32 = arith.constant 0 : i32
    %c0_i32_0 = arith.constant 0 : i32
    %c0_i32_1 = arith.constant 0 : i32
    return %c0_i32, %c0_i32_0 : i32, i32
  }
  func.func @transform_2(%arg0: i32) -> (i32, i32) {
    %c0_i32 = arith.constant 0 : i32
    %c0_i32_0 = arith.constant 0 : i32
    %c0_i32_1 = arith.constant 0 : i32
    return %c0_i32, %c0_i32_0 : i32, i32
  }
  func.func @transform_3(%arg0: i32) -> (i32, i32) {
    %c0_i32 = arith.constant 0 : i32
    %c0_i32_0 = arith.constant 0 : i32
    %c0_i32_1 = arith.constant 0 : i32
    return %c0_i32, %c0_i32_0 : i32, i32
  }
  func.func @transform_4(%arg0: i32) -> (i32, i32) {
    %c0_i32 = arith.constant 0 : i32
    %c0_i32_0 = arith.constant 0 : i32
    %c0_i32_1 = arith.constant 0 : i32
    return %c0_i32, %c0_i32_0 : i32, i32
  }
  func.func @transform_5(%arg0: i32) -> (i32, i32, i32) {
    %c0_i32 = arith.constant 0 : i32
    %c0_i32_0 = arith.constant 0 : i32
    %c0_i32_1 = arith.constant 0 : i32
    return %arg0, %c0_i32, %c0_i32_0 : i32, i32, i32
  }
  func.func @transform_6(%arg0: i32) -> (i32, i32, i32) {
    %c0_i32 = arith.constant 0 : i32
    %c0_i32_0 = arith.constant 0 : i32
    %c0_i32_1 = arith.constant 0 : i32
    return %arg0, %c0_i32, %c0_i32_0 : i32, i32, i32
  }
}

module attributes {stable_mosaic.version = 11 : i64} {
  func.func @bn_affine_kernel(%arg0: i32, %arg1: memref<16x128xf32, #tpu.memory_space<vmem>>, %arg2: memref<1x128xf32, #tpu.memory_space<vmem>>, %arg3: memref<1x128xf32, #tpu.memory_space<vmem>>, %arg4: memref<16x128xf32, #tpu.memory_space<vmem>>) attributes {dimension_semantics = [#tpu.dimension_semantics<parallel>], iteration_bounds = array<i64: 2>, scalar_prefetch = 0 : i64, scratch_operands = 0 : i64, tpu.core_type = #tpu.core_type<tc>, window_params = [{transform_indices = @transform_0, window_bounds = array<i64: 16, 128>}, {pipeline_mode = #tpu.pipeline_mode<synchronous>, transform_indices = @transform_1, window_bounds = array<i64: 1, 128>}, {pipeline_mode = #tpu.pipeline_mode<synchronous>, transform_indices = @transform_2, window_bounds = array<i64: 1, 128>}, {transform_indices = @transform_3, window_bounds = array<i64: 16, 128>}]} {
    %c0 = arith.constant 0 : index
    %c0_0 = arith.constant 0 : index
    %0 = vector.load %arg1[%c0, %c0_0] : memref<16x128xf32, #tpu.memory_space<vmem>>, vector<16x128xf32>
    %c0_1 = arith.constant 0 : index
    %c0_2 = arith.constant 0 : index
    %1 = vector.load %arg2[%c0_1, %c0_2] : memref<1x128xf32, #tpu.memory_space<vmem>>, vector<1x128xf32>
    %2 = vector.broadcast %1 : vector<1x128xf32> to vector<16x128xf32>
    %3 = arith.mulf %0, %2 : vector<16x128xf32>
    %c0_3 = arith.constant 0 : index
    %c0_4 = arith.constant 0 : index
    %4 = vector.load %arg3[%c0_3, %c0_4] : memref<1x128xf32, #tpu.memory_space<vmem>>, vector<1x128xf32>
    %5 = vector.broadcast %4 : vector<1x128xf32> to vector<16x128xf32>
    %6 = arith.addf %3, %5 : vector<16x128xf32>
    %c0_5 = arith.constant 0 : index
    %c0_6 = arith.constant 0 : index
    %7 = vector.load %arg4[%c0_5, %c0_6] : memref<16x128xf32, #tpu.memory_space<vmem>>, vector<16x128xf32>
    tpu.vector_store %arg4[%c0_5, %c0_6], %6 {strides = array<i32>} : memref<16x128xf32, #tpu.memory_space<vmem>>, vector<16x128xf32>,
    return
  }
  func.func @transform_0(%arg0: i32) -> (i32, i32) {
    %c0_i32 = arith.constant 0 : i32
    %c0_i32_0 = arith.constant 0 : i32
    return %arg0, %c0_i32 : i32, i32
  }
  func.func @transform_1(%arg0: i32) -> (i32, i32) {
    %c0_i32 = arith.constant 0 : i32
    %c0_i32_0 = arith.constant 0 : i32
    %c0_i32_1 = arith.constant 0 : i32
    return %c0_i32, %c0_i32_0 : i32, i32
  }
  func.func @transform_2(%arg0: i32) -> (i32, i32) {
    %c0_i32 = arith.constant 0 : i32
    %c0_i32_0 = arith.constant 0 : i32
    %c0_i32_1 = arith.constant 0 : i32
    return %c0_i32, %c0_i32_0 : i32, i32
  }
  func.func @transform_3(%arg0: i32) -> (i32, i32) {
    %c0_i32 = arith.constant 0 : i32
    %c0_i32_0 = arith.constant 0 : i32
    return %arg0, %c0_i32 : i32, i32
  }
}

</mosaic_0001>

<llo_original>
// kernel: tile.18
$region0: #{tile.18}
  #allocation0 [shape = 's32[1]{0}', space=sflag, size = 0x4, scoped, tag = 'scoped memory for tile.18']
  %s0 = inlined_call_operand.vmem [shape: f32[8], index: 0, kind: input, shape index: {}]
  %s1 = inlined_call_operand.vmem [shape: f32[16,8], index: 1, kind: output, shape index: {}]
  // Predicated region
  $region2: #{tile.18} parent=0 // pred_check
    _
  $region3: #{tile.18} parent=0 // pred_check_branch
    %3 = sbr.rel (0) target = $region5
  $region4: #{tile.18} parent=0 // pred_region
    _
  $region5: #{tile.18} parent=0 // pred_fallthru
    _
  %v4 = vld [vmem:[%s0] ss:$0 sm:$0xff]
  %5 = vst [vmem:[%s1] sm:$0xff] %v4
  %s6 = scalar_lea.vmem %s1, 8
  %7 = vst [vmem:[%s6] sm:$0xff] %v4

// kernel: tile.19
$region0: #{tile.19}
  %s0 = inlined_call_operand.vmem [shape: f32[16,8], index: 0, kind: input, shape index: {}]
  %s1 = inlined_call_operand.vmem [shape: f32[1,128], index: 1, kind: output, shape index: {}]
  $region1: #{tile.19} parent=0
    #allocation0 [shape = 'u8[4096]{0}', space=vmem, size = 0x1000, scoped, tag = 'scoped mem for output reshape']
    %v2 = vld [vmem:[%s0] sm:$0x1]
    %vm3 = vcmask 64512
    %4 = vst.msk [vmem:[#allocation0] sm:$0x1] %vm3, %v2
    %s5 = scalar_lea.vmem %s0, 15
    %v6 = vld [vmem:[%s5] sm:$0x1]
    %7 = vrot.lane.b32.xlu0 %v6, 120
    %v8 = vpop.permute.xlu0 %7
    %vm9 = vcmask 1048512
    %10 = vst.msk [vmem:[#allocation0] sm:$0x1] %vm9, %v8
    %s11 = scalar_lea.vmem %s0, 14
    %v12 = vld [vmem:[%s11] sm:$0x1]
    %13 = vrot.lane.b32.xlu0 %v12, 112
    %v14 = vpop.permute.xlu0 %13
    %vm15 = vcmask 982912
    %16 = vst.msk [vmem:[#allocation0] sm:$0x1] %vm15, %v14
    %s17 = scalar_lea.vmem %s0, 13
    %v18 = vld [vmem:[%s17] sm:$0x1]
    %19 = vrot.lane.b32.xlu0 %v18, 104
    %v20 = vpop.permute.xlu0 %19
    %vm21 = vcmask 917312
    %22 = vst.msk [vmem:[#allocation0] sm:$0x1] %vm21, %v20
    %s23 = scalar_lea.vmem %s0, 12
    %v24 = vld [vmem:[%s23] sm:$0x1]
    %25 = vrot.lane.b32.xlu0 %v24, 96
    %v26 = vpop.permute.xlu0 %25
    %vm27 = vcmask 851712
    %28 = vst.msk [vmem:[#allocation0] sm:$0x1] %vm27, %v26
    %s29 = scalar_lea.vmem %s0, 11
    %v30 = vld [vmem:[%s29] sm:$0x1]
    %31 = vrot.lane.b32.xlu0 %v30, 88
    %v32 = vpop.permute.xlu0 %31
    %vm33 = vcmask 786112
    %34 = vst.msk [vmem:[#allocation0] sm:$0x1] %vm33, %v32
    %s35 = scalar_lea.vmem %s0, 10
    %v36 = vld [vmem:[%s35] sm:$0x1]
    %37 = vrot.lane.b32.xlu0 %v36, 80
    %v38 = vpop.permute.xlu0 %37
    %vm39 = vcmask 720512
    %40 = vst.msk [vmem:[#allocation0] sm:$0x1] %vm39, %v38
    %s41 = scalar_lea.vmem %s0, 9
    %v42 = vld [vmem:[%s41] sm:$0x1]
    %43 = vrot.lane.b32.xlu0 %v42, 72
    %v44 = vpop.permute.xlu0 %43
    %vm45 = vcmask 654912
    %46 = vst.msk [vmem:[#allocation0] sm:$0x1] %vm45, %v44
    %s47 = scalar_lea.vmem %s0, 8
    %v48 = vld [vmem:[%s47] sm:$0x1]
    %49 = vrot.lane.b32.xlu0 %v48, 64
    %v50 = vpop.permute.xlu0 %49
    %vm51 = vcmask 589312
    %52 = vst.msk [vmem:[#allocation0] sm:$0x1] %vm51, %v50
    %s53 = scalar_lea.vmem %s0, 7
    %v54 = vld [vmem:[%s53] sm:$0x1]
    %55 = vrot.lane.b32.xlu0 %v54, 56
    %v56 = vpop.permute.xlu0 %55
    %vm57 = vcmask 523712
    %58 = vst.msk [vmem:[#allocation0] sm:$0x1] %vm57, %v56
    %s59 = scalar_lea.vmem %s0, 6
    %v60 = vld [vmem:[%s59] sm:$0x1]
    %61 = vrot.lane.b32.xlu0 %v60, 48
    %v62 = vpop.permute.xlu0 %61
    %vm63 = vcmask 458112
    %64 = vst.msk [vmem:[#allocation0] sm:$0x1] %vm63, %v62
    %s65 = scalar_lea.vmem %s0, 5
    %v66 = vld [vmem:[%s65] sm:$0x1]
    %67 = vrot.lane.b32.xlu0 %v66, 40
    %v68 = vpop.permute.xlu0 %67
    %vm69 = vcmask 392512
    %70 = vst.msk [vmem:[#allocation0] sm:$0x1] %vm69, %v68
    %s71 = scalar_lea.vmem %s0, 4
    %v72 = vld [vmem:[%s71] sm:$0x1]
    %73 = vrot.lane.b32.xlu0 %v72, 32
    %v74 = vpop.permute.xlu0 %73
    %vm75 = vcmask 326912
    %76 = vst.msk [vmem:[#allocation0] sm:$0x1] %vm75, %v74
    %s77 = scalar_lea.vmem %s0, 3
    %v78 = vld [vmem:[%s77] sm:$0x1]
    %79 = vrot.lane.b32.xlu0 %v78, 24
    %v80 = vpop.permute.xlu0 %79
    %vm81 = vcmask 261312
    %82 = vst.msk [vmem:[#allocation0] sm:$0x1] %vm81, %v80
    %s83 = scalar_lea.vmem %s0, 2
    %v84 = vld [vmem:[%s83] sm:$0x1]
    %85 = vrot.lane.b32.xlu0 %v84, 16
    %v86 = vpop.permute.xlu0 %85
    %vm87 = vcmask 195712
    %88 = vst.msk [vmem:[#allocation0] sm:$0x1] %vm87, %v86
    %s89 = scalar_lea.vmem %s0, 1
    %v90 = vld [vmem:[%s89] sm:$0x1]
    %91 = vrot.lane.b32.xlu0 %v90, 8
    %v92 = vpop.permute.xlu0 %91
    %vm93 = vcmask 130112
    %94 = vst.msk [vmem:[#allocation0] sm:$0x1] %vm93, %v92
    %s96 = ssub.s32 2, 1
    %v97 = vld [vmem:[#allocation0] sm:%s96]
    %s99 = ssub.s32 2, 1
    %100 = vst [vmem:[%s1] sm:%s99] %v97

// kernel: conv_block.3
$region0: #{conv_block.3}
  #allocation0 [shape = 'u32[]', space=smem, size = 0x4, offset = 0x4, fixed_abs, tag = 'smem constant byte address 0x4 - core index']
  #allocation1 [shape = 'u32[72,128]{1,0:T(1,128)}', space=vmem, size = 0x9000, scoped, tag = 'internal scratch']
  %s0 = inlined_call_operand.vmem [shape: f32[32,128], index: 0, kind: input, shape index: {}]
  %s1 = inlined_call_operand.vmem [shape: f32[1,128], index: 1, kind: input, shape index: {}]
  %s2 = inlined_call_operand.vmem [shape: f32[1,128], index: 2, kind: input, shape index: {}]
  %s3 = inlined_call_operand.vmem [shape: f32[32,128], index: 3, kind: output, shape index: {}]
  %s4 = sld [smem:[#allocation0]]
  $region45: #{conv_block.3} parent=0
    _
  %s6 = ssub.s32 1, %s4
  %s7 = scalar_select 0, %s6, %s4
  loop: start=0, step=1, limit=4
  $region2: #{conv_block.3} parent=0 // loop_pre_header
    _
  $region3: #{conv_block.3} parent=0 // loop_header
    %s9 = sphi 0, %s13
    %p10 = scmp.ge.s32.totalorder %s9, 4
    %s19 = sphi 0, %s21
    %s22 = sphi 0, %s19
    %s23 = sphi 0, %s22
    %s39 = sphi 0, %s23
    %s43 = sphi 0, %s43
    %s45 = sphi 0, %s43
    %s46 = sphi 0, %s45
    %s60 = sphi 0, %s46
    %s64 = sphi 0, %s64
    %s66 = sphi 0, %s64
    %s67 = sphi 0, %s66
    %s81 = sphi 0, %s67
    %s87 = sphi 0, %s89
    %s90 = sphi 0, %s87
    %s91 = sphi 0, %s90
    %s107 = sphi 0, %s91
  $region4: #{conv_block.3} parent=0 // loop_header_branch
    %12 = sbr.rel (%p10) target = $region8
  $region5: #{conv_block.3} parent=0 // loop_body
    %s14 = ssub.s32 %s9, 1
    %s15 = ssub.s32 %s9, 2
    %s16 = sadd.s32 %s9, 1
    %s17 = ssub.s32 %s9, %s16
    %p18 = scmp.eq.s32.totalorder %s17, 0
    %s20 = sadd.s32 %s19, 1
    %s21 = scalar_select %p18, %s19, %s20
    %p24 = pneg %p18
    %p25 = scmp.eq.s32.totalorder %s9, 1
    %p26 = por %p24, %p25
    %p27 = scmp.ne.s32.totalorder %s19, %s22
    %p28 = scmp.eq.s32.totalorder %s9, 0
    %p29 = por %p27, %p28
    %p30 = scmp.ne.s32.totalorder %s19, %s22
    %p31 = scmp.eq.s32.totalorder %s14, 1
    %p32 = por %p30, %p31
    %p33 = scmp.ne.s32.totalorder %s22, %s23
    %p34 = scmp.eq.s32.totalorder %s14, 0
    %p35 = por %p33, %p34
    %p36 = scmp.ne.s32.totalorder %s22, %s23
    %p37 = scmp.eq.s32.totalorder %s15, 1
    %p38 = por %p36, %p37
    %p40 = scmp.ne.s32.totalorder %s23, %s39
    %p41 = scmp.eq.s32.totalorder %s15, 0
    %p42 = por %p40, %p41
    %s44 = sadd.s32 %s43, 1
    %p47 = scmp.eq.s32.totalorder %s9, 1
    %p48 = scmp.ne.s32.totalorder %s43, %s45
    %p49 = scmp.eq.s32.totalorder %s9, 0
    %p50 = por %p48, %p49
    %p51 = scmp.ne.s32.totalorder %s43, %s45
    %p52 = scmp.eq.s32.totalorder %s14, 1
    %p53 = por %p51, %p52
    %p54 = scmp.ne.s32.totalorder %s45, %s46
    %p55 = scmp.eq.s32.totalorder %s14, 0
    %p56 = por %p54, %p55
    %p57 = scmp.ne.s32.totalorder %s45, %s46
    %p58 = scmp.eq.s32.totalorder %s15, 1
    %p59 = por %p57, %p58
    %p61 = scmp.ne.s32.totalorder %s46, %s60
    %p62 = scmp.eq.s32.totalorder %s15, 0
    %p63 = por %p61, %p62
    %s65 = sadd.s32 %s64, 1
    %p68 = scmp.eq.s32.totalorder %s9, 1
    %p69 = scmp.ne.s32.totalorder %s64, %s66
    %p70 = scmp.eq.s32.totalorder %s9, 0
    %p71 = por %p69, %p70
    %p72 = scmp.ne.s32.totalorder %s64, %s66
    %p73 = scmp.eq.s32.totalorder %s14, 1
    %p74 = por %p72, %p73
    %p75 = scmp.ne.s32.totalorder %s66, %s67
    %p76 = scmp.eq.s32.totalorder %s14, 0
    %p77 = por %p75, %p76
    %p78 = scmp.ne.s32.totalorder %s66, %s67
    %p79 = scmp.eq.s32.totalorder %s15, 1
    %p80 = por %p78, %p79
    %p82 = scmp.ne.s32.totalorder %s67, %s81
    %p83 = scmp.eq.s32.totalorder %s15, 0
    %p84 = por %p82, %p83
    %s85 = ssub.s32 %s9, %s16
    %p86 = scmp.eq.s32.totalorder %s85, 0
    %s88 = sadd.s32 %s87, 1
    %s89 = scalar_select %p86, %s87, %s88
    %p92 = pneg %p86
    %p93 = scmp.eq.s32.totalorder %s9, 1
    %p94 = por %p92, %p93
    %p95 = scmp.ne.s32.totalorder %s87, %s90
    %p96 = scmp.eq.s32.totalorder %s9, 0
    %p97 = por %p95, %p96
    %p98 = scmp.ne.s32.totalorder %s87, %s90
    %p99 = scmp.eq.s32.totalorder %s14, 1
    %p100 = por %p98, %p99
    %p101 = scmp.ne.s32.totalorder %s90, %s91
    %p102 = scmp.eq.s32.totalorder %s14, 0
    %p103 = por %p101, %p102
    %p104 = scmp.ne.s32.totalorder %s90, %s91
    %p105 = scmp.eq.s32.totalorder %s15, 1
    %p106 = por %p104, %p105
    %p108 = scmp.ne.s32.totalorder %s91, %s107
    %p109 = scmp.eq.s32.totalorder %s15, 0
    %p110 = por %p108, %p109
    %p111 = scmp.le.s32.totalorder 1, %s9
    %p112 = scmp.lt.s32.totalorder %s9, 3
    %p113 = pnand %p111, %p112
    %p114 = pneg %p113
    // Predicated region
    $region9: #{conv_block.3} parent=5 // pred_check
      _
    $region10: #{conv_block.3} parent=5 // pred_check_branch
      %116 = sbr.rel (%p113) target = $region12
    $region11: #{conv_block.3} parent=5 // pred_region
      %s117 = ssub.s32 %s9, 1
      // Predicated region
      $region13: #{conv_block.3} parent=11 // pred_check
        %p118 = pneg %p56
      $region14: #{conv_block.3} parent=11 // pred_check_branch
        %120 = sbr.rel (%p118) target = $region16
      $region15: #{conv_block.3} parent=11 // pred_region
        _
      $region16: #{conv_block.3} parent=11 // pred_fallthru
        _
      // Predicated region
      $region17: #{conv_block.3} parent=11 // pred_check
        %p121 = pneg %p77
      $region18: #{conv_block.3} parent=11 // pred_check_branch
        %123 = sbr.rel (%p121) target = $region20
      $region19: #{conv_block.3} parent=11 // pred_region
        _
      $region20: #{conv_block.3} parent=11 // pred_fallthru
        _
    $region12: #{conv_block.3} parent=5 // pred_fallthru
      _
    %p124 = scmp.lt.s32.totalorder %s9, 2
    // Predicated region
    $region21: #{conv_block.3} parent=5 // pred_check
      %p125 = pneg %p124
    $region22: #{conv_block.3} parent=5 // pred_check_branch
      %127 = sbr.rel (%p125) target = $region24
    $region23: #{conv_block.3} parent=5 // pred_region
      // Predicated region
      $region25: #{conv_block.3} parent=23 // pred_check
        %p128 = pneg %p29
      $region26: #{conv_block.3} parent=23 // pred_check_branch
        %130 = sbr.rel (%p128) target = $region28
      $region27: #{conv_block.3} parent=23 // pred_region
        %s131 = smul.u32 2, %s9
        %p132 = scmp.lt.s32.totalorder %s131, 3
        %s133 = scalar_select %p132, %s131, 3
        %s134 = smul.addr %s133, 8
        %s135 = scalar_lea.vmem %s0, %s134
        %s136 = smul.u32 2, %s9
      $region28: #{conv_block.3} parent=23 // pred_fallthru
        _
    $region24: #{conv_block.3} parent=5 // pred_fallthru
      _
    %p137 = scmp.le.s32.totalorder 1, %s9
    %p138 = scmp.lt.s32.totalorder %s9, 3
    %p139 = pnand %p137, %p138
    %p140 = pneg %p139
    // Predicated region
    $region29: #{conv_block.3} parent=5 // pred_check
      _
    $region30: #{conv_block.3} parent=5 // pred_check_branch
      %142 = sbr.rel (%p139) target = $region32
    $region31: #{conv_block.3} parent=5 // pred_region
      %s143 = ssub.s32 %s9, 1
      %s144 = smul.u32 2, %s14
      %p145 = scmp.lt.s32.totalorder %s144, 3
      %s146 = scalar_select %p145, %s144, 3
      %s147 = smul.addr %s146, 8
      %s148 = scalar_lea.vmem %s0, %s147
      %p149 = pneg %p35
      %p150 = pneg %p32
      %p151 = pneg %p56
      %p152 = pneg %p53
      %p153 = pneg %p77
      %p154 = pneg %p74
      %p155 = pneg %p103
      %p156 = pneg %p100
      %s157 = smul.u32 2, %s14
      %p158 = scmp.lt.s32.totalorder %s157, 3
      %s159 = scalar_select %p158, %s157, 3
      %s160 = smul.addr %s159, 8
      %s161 = scalar_lea.vmem %s3, %s160
      %s162 = smul.u32 2, %s14
      %p163 = scmp.lt.s32.totalorder %s162, 3
      %s164 = scalar_select %p163, %s162, 3
      %s165 = smul.addr %s164, 8
      %s166 = scalar_lea.vmem %s0, %s165
      %s167 = smul.u32 2, %s14
      %s168 = smul.u32 2, %s14
      %p169 = scmp.lt.s32.totalorder %s168, 3
      %s170 = scalar_select %p169, %s168, 3
      %s171 = smul.addr %s170, 8
      %s172 = scalar_lea.vmem %s3, %s171
      %s173 = smul.u32 2, %s14
      %v174 = vld [vmem:[%s166] sm:$0xff]
      %v175 = vld [vmem:[%s166 + $0x8] sm:$0xff]
      %v176 = vld [vmem:[%s1] sm:$0x1]
      %v178 = vperm.slane %v176, 0
      %v180 = vmul.f32 %v174, %v178
      %v181 = vmul.f32 %v175, %v178
      %v182 = vld [vmem:[%s2] sm:$0x1]
      %v184 = vperm.slane %v182, 0
      %v186 = vadd.f32 %v180, %v184
      %v187 = vadd.f32 %v181, %v184
      %188 = vst [vmem:[%s172] sm:$0xff] %v186
      %189 = vst [vmem:[%s172 + $0x8] sm:$0xff] %v187
      %s190 = smul.u32 2, %s14
      %p191 = scmp.lt.s32.totalorder %s190, 3
      %s192 = scalar_select %p191, %s190, 3
      %s193 = smul.addr %s192, 8
      %s194 = scalar_lea.vmem %s3, %s193
      // Predicated region
      $region33: #{conv_block.3} parent=31 // pred_check
        %p195 = pneg %p100
      $region34: #{conv_block.3} parent=31 // pred_check_branch
        %197 = sbr.rel (%p195) target = $region36
      $region35: #{conv_block.3} parent=31 // pred_region
        %s198 = smul.u32 2, %s14
      $region36: #{conv_block.3} parent=31 // pred_fallthru
        _
    $region32: #{conv_block.3} parent=5 // pred_fallthru
      _
    %p199 = scmp.le.s32.totalorder 2, %s9
    // Predicated region
    $region37: #{conv_block.3} parent=5 // pred_check
      %p200 = pneg %p199
    $region38: #{conv_block.3} parent=5 // pred_check_branch
      %202 = sbr.rel (%p200) target = $region40
    $region39: #{conv_block.3} parent=5 // pred_region
      %s203 = ssub.s32 %s9, 2
      // Predicated region
      $region41: #{conv_block.3} parent=39 // pred_check
        %p204 = pneg %p106
      $region42: #{conv_block.3} parent=39 // pred_check_branch
        %206 = sbr.rel (%p204) target = $region44
      $region43: #{conv_block.3} parent=39 // pred_region
        %s207 = smul.u32 2, %s15
        %p208 = scmp.lt.s32.totalorder %s207, 3
        %s209 = scalar_select %p208, %s207, 3
        %s210 = smul.addr %s209, 8
        %s211 = scalar_lea.vmem %s3, %s210
      $region44: #{conv_block.3} parent=39 // pred_fallthru
        _
    $region40: #{conv_block.3} parent=5 // pred_fallthru
      _
  $region6: #{conv_block.3} parent=0 // loop_footer
    %s13 = sadd.s32 1, %s9
  $region7: #{conv_block.3} parent=0 // loop_footer_branch
    %8 = sbr.rel target = $region3
  $region8: #{conv_block.3} parent=0 // loop_exit
    _

// kernel: conv_block.2
$region0: #{conv_block.2}
  #allocation0 [shape = 'u32[]', space=smem, size = 0x4, offset = 0x4, fixed_abs, tag = 'smem constant byte address 0x4 - core index']
  #allocation1 [shape = 'u32[72,128]{1,0:T(1,128)}', space=vmem, size = 0x9000, scoped, tag = 'internal scratch']
  %s0 = inlined_call_operand.vmem [shape: f32[2,18,18,4], index: 0, kind: input, shape index: {}]
  %s1 = inlined_call_operand.vmem [shape: f32[36,8], index: 1, kind: input, shape index: {}]
  %s2 = inlined_call_operand.vmem [shape: f32[1,8], index: 2, kind: input, shape index: {}]
  %s3 = inlined_call_operand.vmem [shape: f32[72,8], index: 3, kind: input, shape index: {}]
  %s4 = inlined_call_operand.vmem [shape: f32[1,8], index: 4, kind: input, shape index: {}]
  %s5 = inlined_call_operand.vmem [shape: f32[2,256,8], index: 5, kind: output, shape index: {0}]
  %s6 = inlined_call_operand.vmem [shape: f32[2,2,8], index: 6, kind: output, shape index: {1}]
  %7 = xla_tuple %s5, %s6
  %s8 = sld [smem:[#allocation0]]
  $region61: #{conv_block.2} parent=0
    _
  %s10 = ssub.s32 1, %s8
  %s11 = scalar_select 0, %s10, %s8
  loop: start=0, step=1, limit=4
  $region2: #{conv_block.2} parent=0 // loop_pre_header
    _
  $region3: #{conv_block.2} parent=0 // loop_header
    %s13 = sphi 0, %s17
    %p14 = scmp.ge.s32.totalorder %s13, 4
    %s23 = sphi 0, %s25
    %s26 = sphi 0, %s23
    %s27 = sphi 0, %s26
    %s43 = sphi 0, %s27
    %s47 = sphi 0, %s47
    %s49 = sphi 0, %s47
    %s50 = sphi 0, %s49
    %s64 = sphi 0, %s50
    %s68 = sphi 0, %s68
    %s70 = sphi 0, %s68
    %s71 = sphi 0, %s70
    %s85 = sphi 0, %s71
    %s89 = sphi 0, %s89
    %s91 = sphi 0, %s89
    %s92 = sphi 0, %s91
    %s106 = sphi 0, %s92
    %s110 = sphi 0, %s110
    %s112 = sphi 0, %s110
    %s113 = sphi 0, %s112
    %s127 = sphi 0, %s113
    %s133 = sphi 0, %s135
    %s136 = sphi 0, %s133
    %s137 = sphi 0, %s136
    %s153 = sphi 0, %s137
    %s159 = sphi 0, %s161
    %s162 = sphi 0, %s159
    %s163 = sphi 0, %s162
    %s179 = sphi 0, %s163
  $region4: #{conv_block.2} parent=0 // loop_header_branch
    %16 = sbr.rel (%p14) target = $region8
  $region5: #{conv_block.2} parent=0 // loop_body
    %s18 = ssub.s32 %s13, 1
    %s19 = ssub.s32 %s13, 2
    %s20 = sadd.s32 %s13, 1
    %s21 = ssub.s32 %s13, %s20
    %p22 = scmp.eq.s32.totalorder %s21, 0
    %s24 = sadd.s32 %s23, 1
    %s25 = scalar_select %p22, %s23, %s24
    %p28 = pneg %p22
    %p29 = scmp.eq.s32.totalorder %s13, 1
    %p30 = por %p28, %p29
    %p31 = scmp.ne.s32.totalorder %s23, %s26
    %p32 = scmp.eq.s32.totalorder %s13, 0
    %p33 = por %p31, %p32
    %p34 = scmp.ne.s32.totalorder %s23, %s26
    %p35 = scmp.eq.s32.totalorder %s18, 1
    %p36 = por %p34, %p35
    %p37 = scmp.ne.s32.totalorder %s26, %s27
    %p38 = scmp.eq.s32.totalorder %s18, 0
    %p39 = por %p37, %p38
    %p40 = scmp.ne.s32.totalorder %s26, %s27
    %p41 = scmp.eq.s32.totalorder %s19, 1
    %p42 = por %p40, %p41
    %p44 = scmp.ne.s32.totalorder %s27, %s43
    %p45 = scmp.eq.s32.totalorder %s19, 0
    %p46 = por %p44, %p45
    %s48 = sadd.s32 %s47, 1
    %p51 = scmp.eq.s32.totalorder %s13, 1
    %p52 = scmp.ne.s32.totalorder %s47, %s49
    %p53 = scmp.eq.s32.totalorder %s13, 0
    %p54 = por %p52, %p53
    %p55 = scmp.ne.s32.totalorder %s47, %s49
    %p56 = scmp.eq.s32.totalorder %s18, 1
    %p57 = por %p55, %p56
    %p58 = scmp.ne.s32.totalorder %s49, %s50
    %p59 = scmp.eq.s32.totalorder %s18, 0
    %p60 = por %p58, %p59
    %p61 = scmp.ne.s32.totalorder %s49, %s50
    %p62 = scmp.eq.s32.totalorder %s19, 1
    %p63 = por %p61, %p62
    %p65 = scmp.ne.s32.totalorder %s50, %s64
    %p66 = scmp.eq.s32.totalorder %s19, 0
    %p67 = por %p65, %p66
    %s69 = sadd.s32 %s68, 1
    %p72 = scmp.eq.s32.totalorder %s13, 1
    %p73 = scmp.ne.s32.totalorder %s68, %s70
    %p74 = scmp.eq.s32.totalorder %s13, 0
    %p75 = por %p73, %p74
    %p76 = scmp.ne.s32.totalorder %s68, %s70
    %p77 = scmp.eq.s32.totalorder %s18, 1
    %p78 = por %p76, %p77
    %p79 = scmp.ne.s32.totalorder %s70, %s71
    %p80 = scmp.eq.s32.totalorder %s18, 0
    %p81 = por %p79, %p80
    %p82 = scmp.ne.s32.totalorder %s70, %s71
    %p83 = scmp.eq.s32.totalorder %s19, 1
    %p84 = por %p82, %p83
    %p86 = scmp.ne.s32.totalorder %s71, %s85
    %p87 = scmp.eq.s32.totalorder %s19, 0
    %p88 = por %p86, %p87
    %s90 = sadd.s32 %s89, 1
    %p93 = scmp.eq.s32.totalorder %s13, 1
    %p94 = scmp.ne.s32.totalorder %s89, %s91
    %p95 = scmp.eq.s32.totalorder %s13, 0
    %p96 = por %p94, %p95
    %p97 = scmp.ne.s32.totalorder %s89, %s91
    %p98 = scmp.eq.s32.totalorder %s18, 1
    %p99 = por %p97, %p98
    %p100 = scmp.ne.s32.totalorder %s91, %s92
    %p101 = scmp.eq.s32.totalorder %s18, 0
    %p102 = por %p100, %p101
    %p103 = scmp.ne.s32.totalorder %s91, %s92
    %p104 = scmp.eq.s32.totalorder %s19, 1
    %p105 = por %p103, %p104
    %p107 = scmp.ne.s32.totalorder %s92, %s106
    %p108 = scmp.eq.s32.totalorder %s19, 0
    %p109 = por %p107, %p108
    %s111 = sadd.s32 %s110, 1
    %p114 = scmp.eq.s32.totalorder %s13, 1
    %p115 = scmp.ne.s32.totalorder %s110, %s112
    %p116 = scmp.eq.s32.totalorder %s13, 0
    %p117 = por %p115, %p116
    %p118 = scmp.ne.s32.totalorder %s110, %s112
    %p119 = scmp.eq.s32.totalorder %s18, 1
    %p120 = por %p118, %p119
    %p121 = scmp.ne.s32.totalorder %s112, %s113
    %p122 = scmp.eq.s32.totalorder %s18, 0
    %p123 = por %p121, %p122
    %p124 = scmp.ne.s32.totalorder %s112, %s113
    %p125 = scmp.eq.s32.totalorder %s19, 1
    %p126 = por %p124, %p125
    %p128 = scmp.ne.s32.totalorder %s113, %s127
    %p129 = scmp.eq.s32.totalorder %s19, 0
    %p130 = por %p128, %p129
    %s131 = ssub.s32 %s13, %s20
    %p132 = scmp.eq.s32.totalorder %s131, 0
    %s134 = sadd.s32 %s133, 1
    %s135 = scalar_select %p132, %s133, %s134
    %p138 = pneg %p132
    %p139 = scmp.eq.s32.totalorder %s13, 1
    %p140 = por %p138, %p139
    %p141 = scmp.ne.s32.totalorder %s133, %s136
    %p142 = scmp.eq.s32.totalorder %s13, 0
    %p143 = por %p141, %p142
    %p144 = scmp.ne.s32.totalorder %s133, %s136
    %p145 = scmp.eq.s32.totalorder %s18, 1
    %p146 = por %p144, %p145
    %p147 = scmp.ne.s32.totalorder %s136, %s137
    %p148 = scmp.eq.s32.totalorder %s18, 0
    %p149 = por %p147, %p148
    %p150 = scmp.ne.s32.totalorder %s136, %s137
    %p151 = scmp.eq.s32.totalorder %s19, 1
    %p152 = por %p150, %p151
    %p154 = scmp.ne.s32.totalorder %s137, %s153
    %p155 = scmp.eq.s32.totalorder %s19, 0
    %p156 = por %p154, %p155
    %s157 = ssub.s32 %s13, %s20
    %p158 = scmp.eq.s32.totalorder %s157, 0
    %s160 = sadd.s32 %s159, 1
    %s161 = scalar_select %p158, %s159, %s160
    %p164 = pneg %p158
    %p165 = scmp.eq.s32.totalorder %s13, 1
    %p166 = por %p164, %p165
    %p167 = scmp.ne.s32.totalorder %s159, %s162
    %p168 = scmp.eq.s32.totalorder %s13, 0
    %p169 = por %p167, %p168
    %p170 = scmp.ne.s32.totalorder %s159, %s162
    %p171 = scmp.eq.s32.totalorder %s18, 1
    %p172 = por %p170, %p171
    %p173 = scmp.ne.s32.totalorder %s162, %s163
    %p174 = scmp.eq.s32.totalorder %s18, 0
    %p175 = por %p173, %p174
    %p176 = scmp.ne.s32.totalorder %s162, %s163
    %p177 = scmp.eq.s32.totalorder %s19, 1
    %p178 = por %p176, %p177
    %p180 = scmp.ne.s32.totalorder %s163, %s179
    %p181 = scmp.eq.s32.totalorder %s19, 0
    %p182 = por %p180, %p181
    %p183 = scmp.le.s32.totalorder 1, %s13
    %p184 = scmp.lt.s32.totalorder %s13, 3
    %p185 = pnand %p183, %p184
    %p186 = pneg %p185
    // Predicated region
    $region9: #{conv_block.2} parent=5 // pred_check
      _
    $region10: #{conv_block.2} parent=5 // pred_check_branch
      %188 = sbr.rel (%p185) target = $region12
    $region11: #{conv_block.2} parent=5 // pred_region
      %s189 = ssub.s32 %s13, 1
      // Predicated region
      $region13: #{conv_block.2} parent=11 // pred_check
        %p190 = pneg %p60
      $region14: #{conv_block.2} parent=11 // pred_check_branch
        %192 = sbr.rel (%p190) target = $region16
      $region15: #{conv_block.2} parent=11 // pred_region
        _
      $region16: #{conv_block.2} parent=11 // pred_fallthru
        _
      // Predicated region
      $region17: #{conv_block.2} parent=11 // pred_check
        %p193 = pneg %p81
      $region18: #{conv_block.2} parent=11 // pred_check_branch
        %195 = sbr.rel (%p193) target = $region20
      $region19: #{conv_block.2} parent=11 // pred_region
        _
      $region20: #{conv_block.2} parent=11 // pred_fallthru
        _
      // Predicated region
      $region21: #{conv_block.2} parent=11 // pred_check
        %p196 = pneg %p102
      $region22: #{conv_block.2} parent=11 // pred_check_branch
        %198 = sbr.rel (%p196) target = $region24
      $region23: #{conv_block.2} parent=11 // pred_region
        _
      $region24: #{conv_block.2} parent=11 // pred_fallthru
        _
      // Predicated region
      $region25: #{conv_block.2} parent=11 // pred_check
        %p199 = pneg %p123
      $region26: #{conv_block.2} parent=11 // pred_check_branch
        %201 = sbr.rel (%p199) target = $region28
      $region27: #{conv_block.2} parent=11 // pred_region
        _
      $region28: #{conv_block.2} parent=11 // pred_fallthru
        _
    $region12: #{conv_block.2} parent=5 // pred_fallthru
      _
    %p202 = scmp.lt.s32.totalorder %s13, 2
    // Predicated region
    $region29: #{conv_block.2} parent=5 // pred_check
      %p203 = pneg %p202
    $region30: #{conv_block.2} parent=5 // pred_check_branch
      %205 = sbr.rel (%p203) target = $region32
    $region31: #{conv_block.2} parent=5 // pred_region
      // Predicated region
      $region33: #{conv_block.2} parent=31 // pred_check
        %p206 = pneg %p33
      $region34: #{conv_block.2} parent=31 // pred_check_branch
        %208 = sbr.rel (%p206) target = $region36
      $region35: #{conv_block.2} parent=31 // pred_region
        %p209 = scmp.lt.s32.totalorder %s13, 1
        %s210 = scalar_select %p209, %s13, 1
        %s211 = smul.addr %s210, 54
        %s212 = smul.addr %s211, 8
        %s213 = scalar_lea.vmem %s0, %s212
      $region36: #{conv_block.2} parent=31 // pred_fallthru
        _
    $region32: #{conv_block.2} parent=5 // pred_fallthru
      _
    %p214 = scmp.le.s32.totalorder 1, %s13
    %p215 = scmp.lt.s32.totalorder %s13, 3
    %p216 = pnand %p214, %p215
    %p217 = pneg %p216
    // Predicated region
    $region37: #{conv_block.2} parent=5 // pred_check
      _
    $region38: #{conv_block.2} parent=5 // pred_check_branch
      %219 = sbr.rel (%p216) target = $region40
    $region39: #{conv_block.2} parent=5 // pred_region
      %s220 = ssub.s32 %s13, 1
      %p221 = scmp.lt.s32.totalorder %s18, 1
      %s222 = scalar_select %p221, %s18, 1
      %s223 = smul.addr %s222, 54
      %s224 = smul.addr %s223, 8
      %s225 = scalar_lea.vmem %s0, %s224
      %p226 = pneg %p39
      %p227 = pneg %p36
      %p228 = pneg %p60
      %p229 = pneg %p57
      %p230 = pneg %p81
      %p231 = pneg %p78
      %p232 = pneg %p102
      %p233 = pneg %p99
      %p234 = pneg %p123
      %p235 = pneg %p120
      %p236 = pneg %p149
      %p237 = pneg %p146
      %p238 = scmp.lt.s32.totalorder %s18, 1
      %s239 = scalar_select %p238, %s18, 1
      %s240 = smul.addr %s239, 32
      %s241 = smul.addr %s240, 8
      %s242 = scalar_lea.vmem %s5, %s241
      %p243 = pneg %p175
      %p244 = pneg %p172
      %p245 = scmp.lt.s32.totalorder %s18, 1
      %s246 = scalar_select %p245, %s18, 1
      %s247 = smul.addr %s246, 2
      %s248 = scalar_lea.vmem %s6, %s247
      %p249 = scmp.lt.s32.totalorder %s18, 1
      %s250 = scalar_select %p249, %s18, 1
      %s251 = smul.addr %s250, 54
      %s252 = smul.addr %s251, 8
      %s253 = scalar_lea.vmem %s0, %s252
      %p254 = scmp.lt.s32.totalorder %s18, 1
      %s255 = scalar_select %p254, %s18, 1
      %s256 = smul.addr %s255, 32
      %s257 = smul.addr %s256, 8
      %s258 = scalar_lea.vmem %s5, %s257
      %p259 = scmp.lt.s32.totalorder %s18, 1
      %s260 = scalar_select %p259, %s18, 1
      %s261 = smul.addr %s260, 2
      %s262 = scalar_lea.vmem %s6, %s261
      %v263 = vld [vmem:[%s253] sm:$0xff]
      %v264 = vld [vmem:[%s253 + $0x8] sm:$0xff]
      %v265 = vld [vmem:[%s253 + $0x10] sm:$0x3]
      %v266 = vld [vmem:[%s253 + $0x18] sm:$0xff]
      %v267 = vld [vmem:[%s253 + $0x20] sm:$0xff]
      %v268 = vld [vmem:[%s253 + $0x28] sm:$0x3]
      %v269 = vld [vmem:[%s253 + $0x30] sm:$0xff]
      %v270 = vld [vmem:[%s253 + $0x38] sm:$0xff]
      %v271 = vld [vmem:[%s253 + $0x40] sm:$0x3]
      %v272 = vld [vmem:[%s253 + $0x48] sm:$0xff]
      %v273 = vld [vmem:[%s253 + $0x50] sm:$0xff]
      %v274 = vld [vmem:[%s253 + $0x58] sm:$0x3]
      %v275 = vld [vmem:[%s253 + $0x60] sm:$0xff]
      %v276 = vld [vmem:[%s253 + $0x68] sm:$0xff]
      %v277 = vld [vmem:[%s253 + $0x70] sm:$0x3]
      %v278 = vld [vmem:[%s253 + $0x78] sm:$0xff]
      %v279 = vld [vmem:[%s253 + $0x80] sm:$0xff]
      %v280 = vld [vmem:[%s253 + $0x88] sm:$0x3]
      %v281 = vld [vmem:[%s253 + $0x90] sm:$0xff]
      %v282 = vld [vmem:[%s253 + $0x98] sm:$0xff]
      %v283 = vld [vmem:[%s253 + $0xa0] sm:$0x3]
      %v284 = vld [vmem:[%s253 + $0xa8] sm:$0xff]
      %v285 = vld [vmem:[%s253 + $0xb0] sm:$0xff]
      %v286 = vld [vmem:[%s253 + $0xb8] sm:$0x3]
      %v287 = vld [vmem:[%s253 + $0xc0] sm:$0xff]
      %v288 = vld [vmem:[%s253 + $0xc8] sm:$0xff]
      %v289 = vld [vmem:[%s253 + $0xd0] sm:$0x3]
      %v290 = vld [vmem:[%s253 + $0xd8] sm:$0xff]
      %v291 = vld [vmem:[%s253 + $0xe0] sm:$0xff]
      %v292 = vld [vmem:[%s253 + $0xe8] sm:$0x3]
      %v293 = vld [vmem:[%s253 + $0xf0] sm:$0xff]
      %v294 = vld [vmem:[%s253 + $0xf8] sm:$0xff]
      %v295 = vld [vmem:[%s253 + $0x100] sm:$0x3]
      %v296 = vld [vmem:[%s253 + $0x108] sm:$0xff]
      %v297 = vld [vmem:[%s253 + $0x110] sm:$0xff]
      %v298 = vld [vmem:[%s253 + $0x118] sm:$0x3]
      %v299 = vld [vmem:[%s253 + $0x120] sm:$0xff]
      %v300 = vld [vmem:[%s253 + $0x128] sm:$0xff]
      %v301 = vld [vmem:[%s253 + $0x130] sm:$0x3]
      %v302 = vld [vmem:[%s253 + $0x138] sm:$0xff]
      %v303 = vld [vmem:[%s253 + $0x140] sm:$0xff]
      %v304 = vld [vmem:[%s253 + $0x148] sm:$0x3]
      %v305 = vld [vmem:[%s253 + $0x150] sm:$0xff]
      %v306 = vld [vmem:[%s253 + $0x158] sm:$0xff]
      %v307 = vld [vmem:[%s253 + $0x160] sm:$0x3]
      %v308 = vld [vmem:[%s253 + $0x168] sm:$0xff]
      %v309 = vld [vmem:[%s253 + $0x170] sm:$0xff]
      %v310 = vld [vmem:[%s253 + $0x178] sm:$0x3]
      %v311 = vld [vmem:[%s253 + $0x180] sm:$0xff]
      %v312 = vld [vmem:[%s253 + $0x188] sm:$0xff]
      %v313 = vld [vmem:[%s253 + $0x190] sm:$0x3]
      %v314 = vld [vmem:[%s253 + $0x198] sm:$0xff]
      %v315 = vld [vmem:[%s253 + $0x1a0] sm:$0xff]
      %v316 = vld [vmem:[%s253 + $0x1a8] sm:$0x3]
      %vm365 = vcmask 1046528
      %v366 = vrot.slane %v263, 1
      %v367 = vrot.slane %v264, 1
      %v368 = vsel %vm365, %v366, %v367
      %v369 = vrot.slane %v265, 1
      %v370 = vsel %vm365, %v367, %v369
      %v371 = vrot.slane %v266, 1
      %v372 = vrot.slane %v267, 1
      %v373 = vsel %vm365, %v371, %v372
      %v374 = vrot.slane %v268, 1
      %v375 = vsel %vm365, %v372, %v374
      %v376 = vrot.slane %v269, 1
      %v377 = vrot.slane %v270, 1
      %v378 = vsel %vm365, %v376, %v377
      %v379 = vrot.slane %v271, 1
      %v380 = vsel %vm365, %v377, %v379
      %v381 = vrot.slane %v272, 1
      %v382 = vrot.slane %v273, 1
      %v383 = vsel %vm365, %v381, %v382
      %v384 = vrot.slane %v274, 1
      %v385 = vsel %vm365, %v382, %v384
      %v386 = vrot.slane %v275, 1
      %v387 = vrot.slane %v276, 1
      %v388 = vsel %vm365, %v386, %v387
      %v389 = vrot.slane %v277, 1
      %v390 = vsel %vm365, %v387, %v389
      %v391 = vrot.slane %v278, 1
      %v392 = vrot.slane %v279, 1
      %v393 = vsel %vm365, %v391, %v392
      %v394 = vrot.slane %v280, 1
      %v395 = vsel %vm365, %v392, %v394
      %v396 = vrot.slane %v281, 1
      %v397 = vrot.slane %v282, 1
      %v398 = vsel %vm365, %v396, %v397
      %v399 = vrot.slane %v283, 1
      %v400 = vsel %vm365, %v397, %v399
      %v401 = vrot.slane %v284, 1
      %v402 = vrot.slane %v285, 1
      %v403 = vsel %vm365, %v401, %v402
      %v404 = vrot.slane %v286, 1
      %v405 = vsel %vm365, %v402, %v404
      %v406 = vrot.slane %v287, 1
      %v407 = vrot.slane %v288, 1
      %v408 = vsel %vm365, %v406, %v407
      %v409 = vrot.slane %v289, 1
      %v410 = vsel %vm365, %v407, %v409
      %v411 = vrot.slane %v290, 1
      %v412 = vrot.slane %v291, 1
      %v413 = vsel %vm365, %v411, %v412
      %v414 = vrot.slane %v292, 1
      %v415 = vsel %vm365, %v412, %v414
      %v416 = vrot.slane %v293, 1
      %v417 = vrot.slane %v294, 1
      %v418 = vsel %vm365, %v416, %v417
      %v419 = vrot.slane %v295, 1
      %v420 = vsel %vm365, %v417, %v419
      %v421 = vrot.slane %v296, 1
      %v422 = vrot.slane %v297, 1
      %v423 = vsel %vm365, %v421, %v422
      %v424 = vrot.slane %v298, 1
      %v425 = vsel %vm365, %v422, %v424
      %v426 = vrot.slane %v299, 1
      %v427 = vrot.slane %v300, 1
      %v428 = vsel %vm365, %v426, %v427
      %v429 = vrot.slane %v301, 1
      %v430 = vsel %vm365, %v427, %v429
      %v431 = vrot.slane %v302, 1
      %v432 = vrot.slane %v303, 1
      %v433 = vsel %vm365, %v431, %v432
      %v434 = vrot.slane %v304, 1
      %v435 = vsel %vm365, %v432, %v434
      %v436 = vrot.slane %v305, 1
      %v437 = vrot.slane %v306, 1
      %v438 = vsel %vm365, %v436, %v437
      %v439 = vrot.slane %v307, 1
      %v440 = vsel %vm365, %v437, %v439
      %v441 = vrot.slane %v308, 1
      %v442 = vrot.slane %v309, 1
      %v443 = vsel %vm365, %v441, %v442
      %v444 = vrot.slane %v310, 1
      %v445 = vsel %vm365, %v442, %v444
      %vm446 = vcmask 1045504
      %v447 = vrot.slane %v263, 2
      %v448 = vrot.slane %v264, 2
      %v449 = vsel %vm446, %v447, %v448
      %v450 = vrot.slane %v265, 2
      %v451 = vsel %vm446, %v448, %v450
      %v452 = vrot.slane %v266, 2
      %v453 = vrot.slane %v267, 2
      %v454 = vsel %vm446, %v452, %v453
      %v455 = vrot.slane %v268, 2
      %v456 = vsel %vm446, %v453, %v455
      %v457 = vrot.slane %v269, 2
      %v458 = vrot.slane %v270, 2
      %v459 = vsel %vm446, %v457, %v458
      %v460 = vrot.slane %v271, 2
      %v461 = vsel %vm446, %v458, %v460
      %v462 = vrot.slane %v272, 2
      %v463 = vrot.slane %v273, 2
      %v464 = vsel %vm446, %v462, %v463
      %v465 = vrot.slane %v274, 2
      %v466 = vsel %vm446, %v463, %v465
      %v467 = vrot.slane %v275, 2
      %v468 = vrot.slane %v276, 2
      %v469 = vsel %vm446, %v467, %v468
      %v470 = vrot.slane %v277, 2
      %v471 = vsel %vm446, %v468, %v470
      %v472 = vrot.slane %v278, 2
      %v473 = vrot.slane %v279, 2
      %v474 = vsel %vm446, %v472, %v473
      %v475 = vrot.slane %v280, 2
      %v476 = vsel %vm446, %v473, %v475
      %v477 = vrot.slane %v281, 2
      %v478 = vrot.slane %v282, 2
      %v479 = vsel %vm446, %v477, %v478
      %v480 = vrot.slane %v283, 2
      %v481 = vsel %vm446, %v478, %v480
      %v482 = vrot.slane %v284, 2
      %v483 = vrot.slane %v285, 2
      %v484 = vsel %vm446, %v482, %v483
      %v485 = vrot.slane %v286, 2
      %v486 = vsel %vm446, %v483, %v485
      %v487 = vrot.slane %v287, 2
      %v488 = vrot.slane %v288, 2
      %v489 = vsel %vm446, %v487, %v488
      %v490 = vrot.slane %v289, 2
      %v491 = vsel %vm446, %v488, %v490
      %v492 = vrot.slane %v290, 2
      %v493 = vrot.slane %v291, 2
      %v494 = vsel %vm446, %v492, %v493
      %v495 = vrot.slane %v292, 2
      %v496 = vsel %vm446, %v493, %v495
      %v497 = vrot.slane %v293, 2
      %v498 = vrot.slane %v294, 2
      %v499 = vsel %vm446, %v497, %v498
      %v500 = vrot.slane %v295, 2
      %v501 = vsel %vm446, %v498, %v500
      %v502 = vrot.slane %v296, 2
      %v503 = vrot.slane %v297, 2
      %v504 = vsel %vm446, %v502, %v503
      %v505 = vrot.slane %v298, 2
      %v506 = vsel %vm446, %v503, %v505
      %v507 = vrot.slane %v299, 2
      %v508 = vrot.slane %v300, 2
      %v509 = vsel %vm446, %v507, %v508
      %v510 = vrot.slane %v301, 2
      %v511 = vsel %vm446, %v508, %v510
      %v512 = vrot.slane %v302, 2
      %v513 = vrot.slane %v303, 2
      %v514 = vsel %vm446, %v512, %v513
      %v515 = vrot.slane %v304, 2
      %v516 = vsel %vm446, %v513, %v515
      %v517 = vrot.slane %v305, 2
      %v518 = vrot.slane %v306, 2
      %v519 = vsel %vm446, %v517, %v518
      %v520 = vrot.slane %v307, 2
      %v521 = vsel %vm446, %v518, %v520
      %v522 = vrot.slane %v308, 2
      %v523 = vrot.slane %v309, 2
      %v524 = vsel %vm446, %v522, %v523
      %v525 = vrot.slane %v310, 2
      %v526 = vsel %vm446, %v523, %v525
      %v530 = vrot.slane %v311, 1
      %v531 = vrot.slane %v312, 1
      %v532 = vsel %vm365, %v530, %v531
      %v533 = vrot.slane %v313, 1
      %v534 = vsel %vm365, %v531, %v533
      %v535 = vrot.slane %v311, 2
      %v536 = vrot.slane %v312, 2
      %v537 = vsel %vm446, %v535, %v536
      %v538 = vrot.slane %v313, 2
      %v539 = vsel %vm446, %v536, %v538
      %v543 = vrot.slane %v314, 1
      %v544 = vrot.slane %v315, 1
      %v545 = vsel %vm365, %v543, %v544
      %v546 = vrot.slane %v316, 1
      %v547 = vsel %vm365, %v544, %v546
      %v548 = vrot.slane %v314, 2
      %v549 = vrot.slane %v315, 2
      %v550 = vsel %vm446, %v548, %v549
      %v551 = vrot.slane %v316, 2
      %v552 = vsel %vm446, %v549, %v551
      %553 = vrot.lane.b32.xlu0 %v368, 4
      %v554 = vpop.permute.xlu0 %553
      %555 = vrot.lane.b32.xlu0 %v370, 4
      %v556 = vpop.permute.xlu0 %555
      %557 = vrot.lane.b32.xlu0 %v373, 4
      %v558 = vpop.permute.xlu0 %557
      %559 = vrot.lane.b32.xlu0 %v375, 4
      %v560 = vpop.permute.xlu0 %559
      %561 = vrot.lane.b32.xlu0 %v378, 4
      %v562 = vpop.permute.xlu0 %561
      %563 = vrot.lane.b32.xlu0 %v380, 4
      %v564 = vpop.permute.xlu0 %563
      %565 = vrot.lane.b32.xlu0 %v383, 4
      %v566 = vpop.permute.xlu0 %565
      %567 = vrot.lane.b32.xlu0 %v385, 4
      %v568 = vpop.permute.xlu0 %567
      %569 = vrot.lane.b32.xlu0 %v388, 4
      %v570 = vpop.permute.xlu0 %569
      %571 = vrot.lane.b32.xlu0 %v390, 4
      %v572 = vpop.permute.xlu0 %571
      %573 = vrot.lane.b32.xlu0 %v393, 4
      %v574 = vpop.permute.xlu0 %573
      %575 = vrot.lane.b32.xlu0 %v395, 4
      %v576 = vpop.permute.xlu0 %575
      %577 = vrot.lane.b32.xlu0 %v398, 4
      %v578 = vpop.permute.xlu0 %577
      %579 = vrot.lane.b32.xlu0 %v400, 4
      %v580 = vpop.permute.xlu0 %579
      %581 = vrot.lane.b32.xlu0 %v403, 4
      %v582 = vpop.permute.xlu0 %581
      %583 = vrot.lane.b32.xlu0 %v405, 4
      %v584 = vpop.permute.xlu0 %583
      %585 = vrot.lane.b32.xlu0 %v408, 4
      %v586 = vpop.permute.xlu0 %585
      %587 = vrot.lane.b32.xlu0 %v410, 4
      %v588 = vpop.permute.xlu0 %587
      %589 = vrot.lane.b32.xlu0 %v413, 4
      %v590 = vpop.permute.xlu0 %589
      %591 = vrot.lane.b32.xlu0 %v415, 4
      %v592 = vpop.permute.xlu0 %591
      %593 = vrot.lane.b32.xlu0 %v418, 4
      %v594 = vpop.permute.xlu0 %593
      %595 = vrot.lane.b32.xlu0 %v420, 4
      %v596 = vpop.permute.xlu0 %595
      %597 = vrot.lane.b32.xlu0 %v423, 4
      %v598 = vpop.permute.xlu0 %597
      %599 = vrot.lane.b32.xlu0 %v425, 4
      %v600 = vpop.permute.xlu0 %599
      %601 = vrot.lane.b32.xlu0 %v428, 4
      %v602 = vpop.permute.xlu0 %601
      %603 = vrot.lane.b32.xlu0 %v430, 4
      %v604 = vpop.permute.xlu0 %603
      %605 = vrot.lane.b32.xlu0 %v433, 4
      %v606 = vpop.permute.xlu0 %605
      %607 = vrot.lane.b32.xlu0 %v435, 4
      %v608 = vpop.permute.xlu0 %607
      %609 = vrot.lane.b32.xlu0 %v438, 4
      %v610 = vpop.permute.xlu0 %609
      %611 = vrot.lane.b32.xlu0 %v440, 4
      %v612 = vpop.permute.xlu0 %611
      %613 = vrot.lane.b32.xlu0 %v443, 4
      %v614 = vpop.permute.xlu0 %613
      %615 = vrot.lane.b32.xlu0 %v445, 4
      %v616 = vpop.permute.xlu0 %615
      %649 = vrot.lane.b32.xlu0 %v449, 8
      %v650 = vpop.permute.xlu0 %649
      %651 = vrot.lane.b32.xlu0 %v451, 8
      %v652 = vpop.permute.xlu0 %651
      %653 = vrot.lane.b32.xlu0 %v454, 8
      %v654 = vpop.permute.xlu0 %653
      %655 = vrot.lane.b32.xlu0 %v456, 8
      %v656 = vpop.permute.xlu0 %655
      %657 = vrot.lane.b32.xlu0 %v459, 8
      %v658 = vpop.permute.xlu0 %657
      %659 = vrot.lane.b32.xlu0 %v461, 8
      %v660 = vpop.permute.xlu0 %659
      %661 = vrot.lane.b32.xlu0 %v464, 8
      %v662 = vpop.permute.xlu0 %661
      %663 = vrot.lane.b32.xlu0 %v466, 8
      %v664 = vpop.permute.xlu0 %663
      %665 = vrot.lane.b32.xlu0 %v469, 8
      %v666 = vpop.permute.xlu0 %665
      %667 = vrot.lane.b32.xlu0 %v471, 8
      %v668 = vpop.permute.xlu0 %667
      %669 = vrot.lane.b32.xlu0 %v474, 8
      %v670 = vpop.permute.xlu0 %669
      %671 = vrot.lane.b32.xlu0 %v476, 8
      %v672 = vpop.permute.xlu0 %671
      %673 = vrot.lane.b32.xlu0 %v479, 8
      %v674 = vpop.permute.xlu0 %673
      %675 = vrot.lane.b32.xlu0 %v481, 8
      %v676 = vpop.permute.xlu0 %675
      %677 = vrot.lane.b32.xlu0 %v484, 8
      %v678 = vpop.permute.xlu0 %677
      %679 = vrot.lane.b32.xlu0 %v486, 8
      %v680 = vpop.permute.xlu0 %679
      %681 = vrot.lane.b32.xlu0 %v489, 8
      %v682 = vpop.permute.xlu0 %681
      %683 = vrot.lane.b32.xlu0 %v491, 8
      %v684 = vpop.permute.xlu0 %683
      %685 = vrot.lane.b32.xlu0 %v494, 8
      %v686 = vpop.permute.xlu0 %685
      %687 = vrot.lane.b32.xlu0 %v496, 8
      %v688 = vpop.permute.xlu0 %687
      %689 = vrot.lane.b32.xlu0 %v499, 8
      %v690 = vpop.permute.xlu0 %689
      %691 = vrot.lane.b32.xlu0 %v501, 8
      %v692 = vpop.permute.xlu0 %691
      %693 = vrot.lane.b32.xlu0 %v504, 8
      %v694 = vpop.permute.xlu0 %693
      %695 = vrot.lane.b32.xlu0 %v506, 8
      %v696 = vpop.permute.xlu0 %695
      %697 = vrot.lane.b32.xlu0 %v509, 8
      %v698 = vpop.permute.xlu0 %697
      %699 = vrot.lane.b32.xlu0 %v511, 8
      %v700 = vpop.permute.xlu0 %699
      %701 = vrot.lane.b32.xlu0 %v514, 8
      %v702 = vpop.permute.xlu0 %701
      %703 = vrot.lane.b32.xlu0 %v516, 8
      %v704 = vpop.permute.xlu0 %703
      %705 = vrot.lane.b32.xlu0 %v519, 8
      %v706 = vpop.permute.xlu0 %705
      %707 = vrot.lane.b32.xlu0 %v521, 8
      %v708 = vpop.permute.xlu0 %707
      %709 = vrot.lane.b32.xlu0 %v524, 8
      %v710 = vpop.permute.xlu0 %709
      %711 = vrot.lane.b32.xlu0 %v526, 8
      %v712 = vpop.permute.xlu0 %711
      %745 = vrot.lane.b32.xlu0 %v266, 12
      %v746 = vpop.permute.xlu0 %745
      %747 = vrot.lane.b32.xlu0 %v267, 12
      %v748 = vpop.permute.xlu0 %747
      %749 = vrot.lane.b32.xlu0 %v269, 12
      %v750 = vpop.permute.xlu0 %749
      %751 = vrot.lane.b32.xlu0 %v270, 12
      %v752 = vpop.permute.xlu0 %751
      %753 = vrot.lane.b32.xlu0 %v272, 12
      %v754 = vpop.permute.xlu0 %753
      %755 = vrot.lane.b32.xlu0 %v273, 12
      %v756 = vpop.permute.xlu0 %755
      %757 = vrot.lane.b32.xlu0 %v275, 12
      %v758 = vpop.permute.xlu0 %757
      %759 = vrot.lane.b32.xlu0 %v276, 12
      %v760 = vpop.permute.xlu0 %759
      %761 = vrot.lane.b32.xlu0 %v278, 12
      %v762 = vpop.permute.xlu0 %761
      %763 = vrot.lane.b32.xlu0 %v279, 12
      %v764 = vpop.permute.xlu0 %763
      %765 = vrot.lane.b32.xlu0 %v281, 12
      %v766 = vpop.permute.xlu0 %765
      %767 = vrot.lane.b32.xlu0 %v282, 12
      %v768 = vpop.permute.xlu0 %767
      %769 = vrot.lane.b32.xlu0 %v284, 12
      %v770 = vpop.permute.xlu0 %769
      %771 = vrot.lane.b32.xlu0 %v285, 12
      %v772 = vpop.permute.xlu0 %771
      %773 = vrot.lane.b32.xlu0 %v287, 12
      %v774 = vpop.permute.xlu0 %773
      %775 = vrot.lane.b32.xlu0 %v288, 12
      %v776 = vpop.permute.xlu0 %775
      %777 = vrot.lane.b32.xlu0 %v290, 12
      %v778 = vpop.permute.xlu0 %777
      %779 = vrot.lane.b32.xlu0 %v291, 12
      %v780 = vpop.permute.xlu0 %779
      %781 = vrot.lane.b32.xlu0 %v293, 12
      %v782 = vpop.permute.xlu0 %781
      %783 = vrot.lane.b32.xlu0 %v294, 12
      %v784 = vpop.permute.xlu0 %783
      %785 = vrot.lane.b32.xlu0 %v296, 12
      %v786 = vpop.permute.xlu0 %785
      %787 = vrot.lane.b32.xlu0 %v297, 12
      %v788 = vpop.permute.xlu0 %787
      %789 = vrot.lane.b32.xlu0 %v299, 12
      %v790 = vpop.permute.xlu0 %789
      %791 = vrot.lane.b32.xlu0 %v300, 12
      %v792 = vpop.permute.xlu0 %791
      %793 = vrot.lane.b32.xlu0 %v302, 12
      %v794 = vpop.permute.xlu0 %793
      %795 = vrot.lane.b32.xlu0 %v303, 12
      %v796 = vpop.permute.xlu0 %795
      %797 = vrot.lane.b32.xlu0 %v305, 12
      %v798 = vpop.permute.xlu0 %797
      %799 = vrot.lane.b32.xlu0 %v306, 12
      %v800 = vpop.permute.xlu0 %799
      %801 = vrot.lane.b32.xlu0 %v308, 12
      %v802 = vpop.permute.xlu0 %801
      %803 = vrot.lane.b32.xlu0 %v309, 12
      %v804 = vpop.permute.xlu0 %803
      %805 = vrot.lane.b32.xlu0 %v311, 12
      %v806 = vpop.permute.xlu0 %805
      %807 = vrot.lane.b32.xlu0 %v312, 12
      %v808 = vpop.permute.xlu0 %807
      %841 = vrot.lane.b32.xlu0 %v373, 16
      %v842 = vpop.permute.xlu0 %841
      %843 = vrot.lane.b32.xlu0 %v375, 16
      %v844 = vpop.permute.xlu0 %843
      %845 = vrot.lane.b32.xlu0 %v378, 16
      %v846 = vpop.permute.xlu0 %845
      %847 = vrot.lane.b32.xlu0 %v380, 16
      %v848 = vpop.permute.xlu0 %847
      %849 = vrot.lane.b32.xlu0 %v383, 16
      %v850 = vpop.permute.xlu0 %849
      %851 = vrot.lane.b32.xlu0 %v385, 16
      %v852 = vpop.permute.xlu0 %851
      %853 = vrot.lane.b32.xlu0 %v388, 16
      %v854 = vpop.permute.xlu0 %853
      %855 = vrot.lane.b32.xlu0 %v390, 16
      %v856 = vpop.permute.xlu0 %855
      %857 = vrot.lane.b32.xlu0 %v393, 16
      %v858 = vpop.permute.xlu0 %857
      %859 = vrot.lane.b32.xlu0 %v395, 16
      %v860 = vpop.permute.xlu0 %859
      %861 = vrot.lane.b32.xlu0 %v398, 16
      %v862 = vpop.permute.xlu0 %861
      %863 = vrot.lane.b32.xlu0 %v400, 16
      %v864 = vpop.permute.xlu0 %863
      %865 = vrot.lane.b32.xlu0 %v403, 16
      %v866 = vpop.permute.xlu0 %865
      %867 = vrot.lane.b32.xlu0 %v405, 16
      %v868 = vpop.permute.xlu0 %867
      %869 = vrot.lane.b32.xlu0 %v408, 16
      %v870 = vpop.permute.xlu0 %869
      %871 = vrot.lane.b32.xlu0 %v410, 16
      %v872 = vpop.permute.xlu0 %871
      %873 = vrot.lane.b32.xlu0 %v413, 16
      %v874 = vpop.permute.xlu0 %873
      %875 = vrot.lane.b32.xlu0 %v415, 16
      %v876 = vpop.permute.xlu0 %875
      %877 = vrot.lane.b32.xlu0 %v418, 16
      %v878 = vpop.permute.xlu0 %877
      %879 = vrot.lane.b32.xlu0 %v420, 16
      %v880 = vpop.permute.xlu0 %879
      %881 = vrot.lane.b32.xlu0 %v423, 16
      %v882 = vpop.permute.xlu0 %881
      %883 = vrot.lane.b32.xlu0 %v425, 16
      %v884 = vpop.permute.xlu0 %883
      %885 = vrot.lane.b32.xlu0 %v428, 16
      %v886 = vpop.permute.xlu0 %885
      %887 = vrot.lane.b32.xlu0 %v430, 16
      %v888 = vpop.permute.xlu0 %887
      %889 = vrot.lane.b32.xlu0 %v433, 16
      %v890 = vpop.permute.xlu0 %889
      %891 = vrot.lane.b32.xlu0 %v435, 16
      %v892 = vpop.permute.xlu0 %891
      %893 = vrot.lane.b32.xlu0 %v438, 16
      %v894 = vpop.permute.xlu0 %893
      %895 = vrot.lane.b32.xlu0 %v440, 16
      %v896 = vpop.permute.xlu0 %895
      %897 = vrot.lane.b32.xlu0 %v443, 16
      %v898 = vpop.permute.xlu0 %897
      %899 = vrot.lane.b32.xlu0 %v445, 16
      %v900 = vpop.permute.xlu0 %899
      %901 = vrot.lane.b32.xlu0 %v532, 16
      %v902 = vpop.permute.xlu0 %901
      %903 = vrot.lane.b32.xlu0 %v534, 16
      %v904 = vpop.permute.xlu0 %903
      %937 = vrot.lane.b32.xlu0 %v454, 20
      %v938 = vpop.permute.xlu0 %937
      %939 = vrot.lane.b32.xlu0 %v456, 20
      %v940 = vpop.permute.xlu0 %939
      %941 = vrot.lane.b32.xlu0 %v459, 20
      %v942 = vpop.permute.xlu0 %941
      %943 = vrot.lane.b32.xlu0 %v461, 20
      %v944 = vpop.permute.xlu0 %943
      %945 = vrot.lane.b32.xlu0 %v464, 20
      %v946 = vpop.permute.xlu0 %945
      %947 = vrot.lane.b32.xlu0 %v466, 20
      %v948 = vpop.permute.xlu0 %947
      %949 = vrot.lane.b32.xlu0 %v469, 20
      %v950 = vpop.permute.xlu0 %949
      %951 = vrot.lane.b32.xlu0 %v471, 20
      %v952 = vpop.permute.xlu0 %951
      %953 = vrot.lane.b32.xlu0 %v474, 20
      %v954 = vpop.permute.xlu0 %953
      %955 = vrot.lane.b32.xlu0 %v476, 20
      %v956 = vpop.permute.xlu0 %955
      %957 = vrot.lane.b32.xlu0 %v479, 20
      %v958 = vpop.permute.xlu0 %957
      %959 = vrot.lane.b32.xlu0 %v481, 20
      %v960 = vpop.permute.xlu0 %959
      %961 = vrot.lane.b32.xlu0 %v484, 20
      %v962 = vpop.permute.xlu0 %961
      %963 = vrot.lane.b32.xlu0 %v486, 20
      %v964 = vpop.permute.xlu0 %963
      %965 = vrot.lane.b32.xlu0 %v489, 20
      %v966 = vpop.permute.xlu0 %965
      %967 = vrot.lane.b32.xlu0 %v491, 20
      %v968 = vpop.permute.xlu0 %967
      %969 = vrot.lane.b32.xlu0 %v494, 20
      %v970 = vpop.permute.xlu0 %969
      %971 = vrot.lane.b32.xlu0 %v496, 20
      %v972 = vpop.permute.xlu0 %971
      %973 = vrot.lane.b32.xlu0 %v499, 20
      %v974 = vpop.permute.xlu0 %973
      %975 = vrot.lane.b32.xlu0 %v501, 20
      %v976 = vpop.permute.xlu0 %975
      %977 = vrot.lane.b32.xlu0 %v504, 20
      %v978 = vpop.permute.xlu0 %977
      %979 = vrot.lane.b32.xlu0 %v506, 20
      %v980 = vpop.permute.xlu0 %979
      %981 = vrot.lane.b32.xlu0 %v509, 20
      %v982 = vpop.permute.xlu0 %981
      %983 = vrot.lane.b32.xlu0 %v511, 20
      %v984 = vpop.permute.xlu0 %983
      %985 = vrot.lane.b32.xlu0 %v514, 20
      %v986 = vpop.permute.xlu0 %985
      %987 = vrot.lane.b32.xlu0 %v516, 20
      %v988 = vpop.permute.xlu0 %987
      %989 = vrot.lane.b32.xlu0 %v519, 20
      %v990 = vpop.permute.xlu0 %989
      %991 = vrot.lane.b32.xlu0 %v521, 20
      %v992 = vpop.permute.xlu0 %991
      %993 = vrot.lane.b32.xlu0 %v524, 20
      %v994 = vpop.permute.xlu0 %993
      %995 = vrot.lane.b32.xlu0 %v526, 20
      %v996 = vpop.permute.xlu0 %995
      %997 = vrot.lane.b32.xlu0 %v537, 20
      %v998 = vpop.permute.xlu0 %997
      %999 = vrot.lane.b32.xlu0 %v539, 20
      %v1000 = vpop.permute.xlu0 %999
      %1033 = vrot.lane.b32.xlu0 %v269, 24
      %v1034 = vpop.permute.xlu0 %1033
      %1035 = vrot.lane.b32.xlu0 %v270, 24
      %v1036 = vpop.permute.xlu0 %1035
      %1037 = vrot.lane.b32.xlu0 %v272, 24
      %v1038 = vpop.permute.xlu0 %1037
      %1039 = vrot.lane.b32.xlu0 %v273, 24
      %v1040 = vpop.permute.xlu0 %1039
      %1041 = vrot.lane.b32.xlu0 %v275, 24
      %v1042 = vpop.permute.xlu0 %1041
      %1043 = vrot.lane.b32.xlu0 %v276, 24
      %v1044 = vpop.permute.xlu0 %1043
      %1045 = vrot.lane.b32.xlu0 %v278, 24
      %v1046 = vpop.permute.xlu0 %1045
      %1047 = vrot.lane.b32.xlu0 %v279, 24
      %v1048 = vpop.permute.xlu0 %1047
      %1049 = vrot.lane.b32.xlu0 %v281, 24
      %v1050 = vpop.permute.xlu0 %1049
      %1051 = vrot.lane.b32.xlu0 %v282, 24
      %v1052 = vpop.permute.xlu0 %1051
      %1053 = vrot.lane.b32.xlu0 %v284, 24
      %v1054 = vpop.permute.xlu0 %1053
      %1055 = vrot.lane.b32.xlu0 %v285, 24
      %v1056 = vpop.permute.xlu0 %1055
      %1057 = vrot.lane.b32.xlu0 %v287, 24
      %v1058 = vpop.permute.xlu0 %1057
      %1059 = vrot.lane.b32.xlu0 %v288, 24
      %v1060 = vpop.permute.xlu0 %1059
      %1061 = vrot.lane.b32.xlu0 %v290, 24
      %v1062 = vpop.permute.xlu0 %1061
      %1063 = vrot.lane.b32.xlu0 %v291, 24
      %v1064 = vpop.permute.xlu0 %1063
      %1065 = vrot.lane.b32.xlu0 %v293, 24
      %v1066 = vpop.permute.xlu0 %1065
      %1067 = vrot.lane.b32.xlu0 %v294, 24
      %v1068 = vpop.permute.xlu0 %1067
      %1069 = vrot.lane.b32.xlu0 %v296, 24
      %v1070 = vpop.permute.xlu0 %1069
      %1071 = vrot.lane.b32.xlu0 %v297, 24
      %v1072 = vpop.permute.xlu0 %1071
      %1073 = vrot.lane.b32.xlu0 %v299, 24
      %v1074 = vpop.permute.xlu0 %1073
      %1075 = vrot.lane.b32.xlu0 %v300, 24
      %v1076 = vpop.permute.xlu0 %1075
      %1077 = vrot.lane.b32.xlu0 %v302, 24
      %v1078 = vpop.permute.xlu0 %1077
      %1079 = vrot.lane.b32.xlu0 %v303, 24
      %v1080 = vpop.permute.xlu0 %1079
      %1081 = vrot.lane.b32.xlu0 %v305, 24
      %v1082 = vpop.permute.xlu0 %1081
      %1083 = vrot.lane.b32.xlu0 %v306, 24
      %v1084 = vpop.permute.xlu0 %1083
      %1085 = vrot.lane.b32.xlu0 %v308, 24
      %v1086 = vpop.permute.xlu0 %1085
      %1087 = vrot.lane.b32.xlu0 %v309, 24
      %v1088 = vpop.permute.xlu0 %1087
      %1089 = vrot.lane.b32.xlu0 %v311, 24
      %v1090 = vpop.permute.xlu0 %1089
      %1091 = vrot.lane.b32.xlu0 %v312, 24
      %v1092 = vpop.permute.xlu0 %1091
      %1093 = vrot.lane.b32.xlu0 %v314, 24
      %v1094 = vpop.permute.xlu0 %1093
      %1095 = vrot.lane.b32.xlu0 %v315, 24
      %v1096 = vpop.permute.xlu0 %1095
      %1129 = vrot.lane.b32.xlu0 %v378, 28
      %v1130 = vpop.permute.xlu0 %1129
      %1131 = vrot.lane.b32.xlu0 %v380, 28
      %v1132 = vpop.permute.xlu0 %1131
      %1133 = vrot.lane.b32.xlu0 %v383, 28
      %v1134 = vpop.permute.xlu0 %1133
      %1135 = vrot.lane.b32.xlu0 %v385, 28
      %v1136 = vpop.permute.xlu0 %1135
      %1137 = vrot.lane.b32.xlu0 %v388, 28
      %v1138 = vpop.permute.xlu0 %1137
      %1139 = vrot.lane.b32.xlu0 %v390, 28
      %v1140 = vpop.permute.xlu0 %1139
      %1141 = vrot.lane.b32.xlu0 %v393, 28
      %v1142 = vpop.permute.xlu0 %1141
      %1143 = vrot.lane.b32.xlu0 %v395, 28
      %v1144 = vpop.permute.xlu0 %1143
      %1145 = vrot.lane.b32.xlu0 %v398, 28
      %v1146 = vpop.permute.xlu0 %1145
      %1147 = vrot.lane.b32.xlu0 %v400, 28
      %v1148 = vpop.permute.xlu0 %1147
      %1149 = vrot.lane.b32.xlu0 %v403, 28
      %v1150 = vpop.permute.xlu0 %1149
      %1151 = vrot.lane.b32.xlu0 %v405, 28
      %v1152 = vpop.permute.xlu0 %1151
      %1153 = vrot.lane.b32.xlu0 %v408, 28
      %v1154 = vpop.permute.xlu0 %1153
      %1155 = vrot.lane.b32.xlu0 %v410, 28
      %v1156 = vpop.permute.xlu0 %1155
      %1157 = vrot.lane.b32.xlu0 %v413, 28
      %v1158 = vpop.permute.xlu0 %1157
      %1159 = vrot.lane.b32.xlu0 %v415, 28
      %v1160 = vpop.permute.xlu0 %1159
      %1161 = vrot.lane.b32.xlu0 %v418, 28
      %v1162 = vpop.permute.xlu0 %1161
      %1163 = vrot.lane.b32.xlu0 %v420, 28
      %v1164 = vpop.permute.xlu0 %1163
      %1165 = vrot.lane.b32.xlu0 %v423, 28
      %v1166 = vpop.permute.xlu0 %1165
      %1167 = vrot.lane.b32.xlu0 %v425, 28
      %v1168 = vpop.permute.xlu0 %1167
      %1169 = vrot.lane.b32.xlu0 %v428, 28
      %v1170 = vpop.permute.xlu0 %1169
      %1171 = vrot.lane.b32.xlu0 %v430, 28
      %v1172 = vpop.permute.xlu0 %1171
      %1173 = vrot.lane.b32.xlu0 %v433, 28
      %v1174 = vpop.permute.xlu0 %1173
      %1175 = vrot.lane.b32.xlu0 %v435, 28
      %v1176 = vpop.permute.xlu0 %1175
      %1177 = vrot.lane.b32.xlu0 %v438, 28
      %v1178 = vpop.permute.xlu0 %1177
      %1179 = vrot.lane.b32.xlu0 %v440, 28
      %v1180 = vpop.permute.xlu0 %1179
      %1181 = vrot.lane.b32.xlu0 %v443, 28
      %v1182 = vpop.permute.xlu0 %1181
      %1183 = vrot.lane.b32.xlu0 %v445, 28
      %v1184 = vpop.permute.xlu0 %1183
      %1185 = vrot.lane.b32.xlu0 %v532, 28
      %v1186 = vpop.permute.xlu0 %1185
      %1187 = vrot.lane.b32.xlu0 %v534, 28
      %v1188 = vpop.permute.xlu0 %1187
      %1189 = vrot.lane.b32.xlu0 %v545, 28
      %v1190 = vpop.permute.xlu0 %1189
      %1191 = vrot.lane.b32.xlu0 %v547, 28
      %v1192 = vpop.permute.xlu0 %1191
      %1225 = vrot.lane.b32.xlu0 %v459, 32
      %v1226 = vpop.permute.xlu0 %1225
      %1227 = vrot.lane.b32.xlu0 %v461, 32
      %v1228 = vpop.permute.xlu0 %1227
      %1229 = vrot.lane.b32.xlu0 %v464, 32
      %v1230 = vpop.permute.xlu0 %1229
      %1231 = vrot.lane.b32.xlu0 %v466, 32
      %v1232 = vpop.permute.xlu0 %1231
      %1233 = vrot.lane.b32.xlu0 %v469, 32
      %v1234 = vpop.permute.xlu0 %1233
      %1235 = vrot.lane.b32.xlu0 %v471, 32
      %v1236 = vpop.permute.xlu0 %1235
      %1237 = vrot.lane.b32.xlu0 %v474, 32
      %v1238 = vpop.permute.xlu0 %1237
      %1239 = vrot.lane.b32.xlu0 %v476, 32
      %v1240 = vpop.permute.xlu0 %1239
      %1241 = vrot.lane.b32.xlu0 %v479, 32
      %v1242 = vpop.permute.xlu0 %1241
      %1243 = vrot.lane.b32.xlu0 %v481, 32
      %v1244 = vpop.permute.xlu0 %1243
      %1245 = vrot.lane.b32.xlu0 %v484, 32
      %v1246 = vpop.permute.xlu0 %1245
      %1247 = vrot.lane.b32.xlu0 %v486, 32
      %v1248 = vpop.permute.xlu0 %1247
      %1249 = vrot.lane.b32.xlu0 %v489, 32
      %v1250 = vpop.permute.xlu0 %1249
      %1251 = vrot.lane.b32.xlu0 %v491, 32
      %v1252 = vpop.permute.xlu0 %1251
      %1253 = vrot.lane.b32.xlu0 %v494, 32
      %v1254 = vpop.permute.xlu0 %1253
      %1255 = vrot.lane.b32.xlu0 %v496, 32
      %v1256 = vpop.permute.xlu0 %1255
      %1257 = vrot.lane.b32.xlu0 %v499, 32
      %v1258 = vpop.permute.xlu0 %1257
      %1259 = vrot.lane.b32.xlu0 %v501, 32
      %v1260 = vpop.permute.xlu0 %1259
      %1261 = vrot.lane.b32.xlu0 %v504, 32
      %v1262 = vpop.permute.xlu0 %1261
      %1263 = vrot.lane.b32.xlu0 %v506, 32
      %v1264 = vpop.permute.xlu0 %1263
      %1265 = vrot.lane.b32.xlu0 %v509, 32
      %v1266 = vpop.permute.xlu0 %1265
      %1267 = vrot.lane.b32.xlu0 %v511, 32
      %v1268 = vpop.permute.xlu0 %1267
      %1269 = vrot.lane.b32.xlu0 %v514, 32
      %v1270 = vpop.permute.xlu0 %1269
      %1271 = vrot.lane.b32.xlu0 %v516, 32
      %v1272 = vpop.permute.xlu0 %1271
      %1273 = vrot.lane.b32.xlu0 %v519, 32
      %v1274 = vpop.permute.xlu0 %1273
      %1275 = vrot.lane.b32.xlu0 %v521, 32
      %v1276 = vpop.permute.xlu0 %1275
      %1277 = vrot.lane.b32.xlu0 %v524, 32
      %v1278 = vpop.permute.xlu0 %1277
      %1279 = vrot.lane.b32.xlu0 %v526, 32
      %v1280 = vpop.permute.xlu0 %1279
      %1281 = vrot.lane.b32.xlu0 %v537, 32
      %v1282 = vpop.permute.xlu0 %1281
      %1283 = vrot.lane.b32.xlu0 %v539, 32
      %v1284 = vpop.permute.xlu0 %1283
      %1285 = vrot.lane.b32.xlu0 %v550, 32
      %v1286 = vpop.permute.xlu0 %1285
      %1287 = vrot.lane.b32.xlu0 %v552, 32
      %v1288 = vpop.permute.xlu0 %1287
      %vm1321 = vcmask 31744
      %v1322 = vsel %vm1321, %v263, %v554
      %v1323 = vsel %vm1321, %v264, %v556
      %v1324 = vsel %vm1321, %v266, %v558
      %v1325 = vsel %vm1321, %v267, %v560
      %v1326 = vsel %vm1321, %v269, %v562
      %v1327 = vsel %vm1321, %v270, %v564
      %v1328 = vsel %vm1321, %v272, %v566
      %v1329 = vsel %vm1321, %v273, %v568
      %v1330 = vsel %vm1321, %v275, %v570
      %v1331 = vsel %vm1321, %v276, %v572
      %v1332 = vsel %vm1321, %v278, %v574
      %v1333 = vsel %vm1321, %v279, %v576
      %v1334 = vsel %vm1321, %v281, %v578
      %v1335 = vsel %vm1321, %v282, %v580
      %v1336 = vsel %vm1321, %v284, %v582
      %v1337 = vsel %vm1321, %v285, %v584
      %v1338 = vsel %vm1321, %v287, %v586
      %v1339 = vsel %vm1321, %v288, %v588
      %v1340 = vsel %vm1321, %v290, %v590
      %v1341 = vsel %vm1321, %v291, %v592
      %v1342 = vsel %vm1321, %v293, %v594
      %v1343 = vsel %vm1321, %v294, %v596
      %v1344 = vsel %vm1321, %v296, %v598
      %v1345 = vsel %vm1321, %v297, %v600
      %v1346 = vsel %vm1321, %v299, %v602
      %v1347 = vsel %vm1321, %v300, %v604
      %v1348 = vsel %vm1321, %v302, %v606
      %v1349 = vsel %vm1321, %v303, %v608
      %v1350 = vsel %vm1321, %v305, %v610
      %v1351 = vsel %vm1321, %v306, %v612
      %v1352 = vsel %vm1321, %v308, %v614
      %v1353 = vsel %vm1321, %v309, %v616
      %vm1354 = vcmask 64512
      %v1355 = vsel %vm1354, %v1322, %v650
      %v1356 = vsel %vm1354, %v1323, %v652
      %v1357 = vsel %vm1354, %v1324, %v654
      %v1358 = vsel %vm1354, %v1325, %v656
      %v1359 = vsel %vm1354, %v1326, %v658
      %v1360 = vsel %vm1354, %v1327, %v660
      %v1361 = vsel %vm1354, %v1328, %v662
      %v1362 = vsel %vm1354, %v1329, %v664
      %v1363 = vsel %vm1354, %v1330, %v666
      %v1364 = vsel %vm1354, %v1331, %v668
      %v1365 = vsel %vm1354, %v1332, %v670
      %v1366 = vsel %vm1354, %v1333, %v672
      %v1367 = vsel %vm1354, %v1334, %v674
      %v1368 = vsel %vm1354, %v1335, %v676
      %v1369 = vsel %vm1354, %v1336, %v678
      %v1370 = vsel %vm1354, %v1337, %v680
      %v1371 = vsel %vm1354, %v1338, %v682
      %v1372 = vsel %vm1354, %v1339, %v684
      %v1373 = vsel %vm1354, %v1340, %v686
      %v1374 = vsel %vm1354, %v1341, %v688
      %v1375 = vsel %vm1354, %v1342, %v690
      %v1376 = vsel %vm1354, %v1343, %v692
      %v1377 = vsel %vm1354, %v1344, %v694
      %v1378 = vsel %vm1354, %v1345, %v696
      %v1379 = vsel %vm1354, %v1346, %v698
      %v1380 = vsel %vm1354, %v1347, %v700
      %v1381 = vsel %vm1354, %v1348, %v702
      %v1382 = vsel %vm1354, %v1349, %v704
      %v1383 = vsel %vm1354, %v1350, %v706
      %v1384 = vsel %vm1354, %v1351, %v708
      %v1385 = vsel %vm1354, %v1352, %v710
      %v1386 = vsel %vm1354, %v1353, %v712
      %vm1387 = vcmask 97280
      %v1388 = vsel %vm1387, %v1355, %v746
      %v1389 = vsel %vm1387, %v1356, %v748
      %v1390 = vsel %vm1387, %v1357, %v750
      %v1391 = vsel %vm1387, %v1358, %v752
      %v1392 = vsel %vm1387, %v1359, %v754
      %v1393 = vsel %vm1387, %v1360, %v756
      %v1394 = vsel %vm1387, %v1361, %v758
      %v1395 = vsel %vm1387, %v1362, %v760
      %v1396 = vsel %vm1387, %v1363, %v762
      %v1397 = vsel %vm1387, %v1364, %v764
      %v1398 = vsel %vm1387, %v1365, %v766
      %v1399 = vsel %vm1387, %v1366, %v768
      %v1400 = vsel %vm1387, %v1367, %v770
      %v1401 = vsel %vm1387, %v1368, %v772
      %v1402 = vsel %vm1387, %v1369, %v774
      %v1403 = vsel %vm1387, %v1370, %v776
      %v1404 = vsel %vm1387, %v1371, %v778
      %v1405 = vsel %vm1387, %v1372, %v780
      %v1406 = vsel %vm1387, %v1373, %v782
      %v1407 = vsel %vm1387, %v1374, %v784
      %v1408 = vsel %vm1387, %v1375, %v786
      %v1409 = vsel %vm1387, %v1376, %v788
      %v1410 = vsel %vm1387, %v1377, %v790
      %v1411 = vsel %vm1387, %v1378, %v792
      %v1412 = vsel %vm1387, %v1379, %v794
      %v1413 = vsel %vm1387, %v1380, %v796
      %v1414 = vsel %vm1387, %v1381, %v798
      %v1415 = vsel %vm1387, %v1382, %v800
      %v1416 = vsel %vm1387, %v1383, %v802
      %v1417 = vsel %vm1387, %v1384, %v804
      %v1418 = vsel %vm1387, %v1385, %v806
      %v1419 = vsel %vm1387, %v1386, %v808
      %vm1420 = vcmask 130048
      %v1421 = vsel %vm1420, %v1388, %v842
      %v1422 = vsel %vm1420, %v1389, %v844
      %v1423 = vsel %vm1420, %v1390, %v846
      %v1424 = vsel %vm1420, %v1391, %v848
      %v1425 = vsel %vm1420, %v1392, %v850
      %v1426 = vsel %vm1420, %v1393, %v852
      %v1427 = vsel %vm1420, %v1394, %v854
      %v1428 = vsel %vm1420, %v1395, %v856
      %v1429 = vsel %vm1420, %v1396, %v858
      %v1430 = vsel %vm1420, %v1397, %v860
      %v1431 = vsel %vm1420, %v1398, %v862
      %v1432 = vsel %vm1420, %v1399, %v864
      %v1433 = vsel %vm1420, %v1400, %v866
      %v1434 = vsel %vm1420, %v1401, %v868
      %v1435 = vsel %vm1420, %v1402, %v870
      %v1436 = vsel %vm1420, %v1403, %v872
      %v1437 = vsel %vm1420, %v1404, %v874
      %v1438 = vsel %vm1420, %v1405, %v876
      %v1439 = vsel %vm1420, %v1406, %v878
      %v1440 = vsel %vm1420, %v1407, %v880
      %v1441 = vsel %vm1420, %v1408, %v882
      %v1442 = vsel %vm1420, %v1409, %v884
      %v1443 = vsel %vm1420, %v1410, %v886
      %v1444 = vsel %vm1420, %v1411, %v888
      %v1445 = vsel %vm1420, %v1412, %v890
      %v1446 = vsel %vm1420, %v1413, %v892
      %v1447 = vsel %vm1420, %v1414, %v894
      %v1448 = vsel %vm1420, %v1415, %v896
      %v1449 = vsel %vm1420, %v1416, %v898
      %v1450 = vsel %vm1420, %v1417, %v900
      %v1451 = vsel %vm1420, %v1418, %v902
      %v1452 = vsel %vm1420, %v1419, %v904
      %vm1453 = vcmask 162816
      %v1454 = vsel %vm1453, %v1421, %v938
      %v1455 = vsel %vm1453, %v1422, %v940
      %v1456 = vsel %vm1453, %v1423, %v942
      %v1457 = vsel %vm1453, %v1424, %v944
      %v1458 = vsel %vm1453, %v1425, %v946
      %v1459 = vsel %vm1453, %v1426, %v948
      %v1460 = vsel %vm1453, %v1427, %v950
      %v1461 = vsel %vm1453, %v1428, %v952
      %v1462 = vsel %vm1453, %v1429, %v954
      %v1463 = vsel %vm1453, %v1430, %v956
      %v1464 = vsel %vm1453, %v1431, %v958
      %v1465 = vsel %vm1453, %v1432, %v960
      %v1466 = vsel %vm1453, %v1433, %v962
      %v1467 = vsel %vm1453, %v1434, %v964
      %v1468 = vsel %vm1453, %v1435, %v966
      %v1469 = vsel %vm1453, %v1436, %v968
      %v1470 = vsel %vm1453, %v1437, %v970
      %v1471 = vsel %vm1453, %v1438, %v972
      %v1472 = vsel %vm1453, %v1439, %v974
      %v1473 = vsel %vm1453, %v1440, %v976
      %v1474 = vsel %vm1453, %v1441, %v978
      %v1475 = vsel %vm1453, %v1442, %v980
      %v1476 = vsel %vm1453, %v1443, %v982
      %v1477 = vsel %vm1453, %v1444, %v984
      %v1478 = vsel %vm1453, %v1445, %v986
      %v1479 = vsel %vm1453, %v1446, %v988
      %v1480 = vsel %vm1453, %v1447, %v990
      %v1481 = vsel %vm1453, %v1448, %v992
      %v1482 = vsel %vm1453, %v1449, %v994
      %v1483 = vsel %vm1453, %v1450, %v996
      %v1484 = vsel %vm1453, %v1451, %v998
      %v1485 = vsel %vm1453, %v1452, %v1000
      %vm1486 = vcmask 195584
      %v1487 = vsel %vm1486, %v1454, %v1034
      %v1488 = vsel %vm1486, %v1455, %v1036
      %v1489 = vsel %vm1486, %v1456, %v1038
      %v1490 = vsel %vm1486, %v1457, %v1040
      %v1491 = vsel %vm1486, %v1458, %v1042
      %v1492 = vsel %vm1486, %v1459, %v1044
      %v1493 = vsel %vm1486, %v1460, %v1046
      %v1494 = vsel %vm1486, %v1461, %v1048
      %v1495 = vsel %vm1486, %v1462, %v1050
      %v1496 = vsel %vm1486, %v1463, %v1052
      %v1497 = vsel %vm1486, %v1464, %v1054
      %v1498 = vsel %vm1486, %v1465, %v1056
      %v1499 = vsel %vm1486, %v1466, %v1058
      %v1500 = vsel %vm1486, %v1467, %v1060
      %v1501 = vsel %vm1486, %v1468, %v1062
      %v1502 = vsel %vm1486, %v1469, %v1064
      %v1503 = vsel %vm1486, %v1470, %v1066
      %v1504 = vsel %vm1486, %v1471, %v1068
      %v1505 = vsel %vm1486, %v1472, %v1070
      %v1506 = vsel %vm1486, %v1473, %v1072
      %v1507 = vsel %vm1486, %v1474, %v1074
      %v1508 = vsel %vm1486, %v1475, %v1076
      %v1509 = vsel %vm1486, %v1476, %v1078
      %v1510 = vsel %vm1486, %v1477, %v1080
      %v1511 = vsel %vm1486, %v1478, %v1082
      %v1512 = vsel %vm1486, %v1479, %v1084
      %v1513 = vsel %vm1486, %v1480, %v1086
      %v1514 = vsel %vm1486, %v1481, %v1088
      %v1515 = vsel %vm1486, %v1482, %v1090
      %v1516 = vsel %vm1486, %v1483, %v1092
      %v1517 = vsel %vm1486, %v1484, %v1094
      %v1518 = vsel %vm1486, %v1485, %v1096
      %vm1519 = vcmask 228352
      %v1520 = vsel %vm1519, %v1487, %v1130
      %v1521 = vsel %vm1519, %v1488, %v1132
      %v1522 = vsel %vm1519, %v1489, %v1134
      %v1523 = vsel %vm1519, %v1490, %v1136
      %v1524 = vsel %vm1519, %v1491, %v1138
      %v1525 = vsel %vm1519, %v1492, %v1140
      %v1526 = vsel %vm1519, %v1493, %v1142
      %v1527 = vsel %vm1519, %v1494, %v1144
      %v1528 = vsel %vm1519, %v1495, %v1146
      %v1529 = vsel %vm1519, %v1496, %v1148
      %v1530 = vsel %vm1519, %v1497, %v1150
      %v1531 = vsel %vm1519, %v1498, %v1152
      %v1532 = vsel %vm1519, %v1499, %v1154
      %v1533 = vsel %vm1519, %v1500, %v1156
      %v1534 = vsel %vm1519, %v1501, %v1158
      %v1535 = vsel %vm1519, %v1502, %v1160
      %v1536 = vsel %vm1519, %v1503, %v1162
      %v1537 = vsel %vm1519, %v1504, %v1164
      %v1538 = vsel %vm1519, %v1505, %v1166
      %v1539 = vsel %vm1519, %v1506, %v1168
      %v1540 = vsel %vm1519, %v1507, %v1170
      %v1541 = vsel %vm1519, %v1508, %v1172
      %v1542 = vsel %vm1519, %v1509, %v1174
      %v1543 = vsel %vm1519, %v1510, %v1176
      %v1544 = vsel %vm1519, %v1511, %v1178
      %v1545 = vsel %vm1519, %v1512, %v1180
      %v1546 = vsel %vm1519, %v1513, %v1182
      %v1547 = vsel %vm1519, %v1514, %v1184
      %v1548 = vsel %vm1519, %v1515, %v1186
      %v1549 = vsel %vm1519, %v1516, %v1188
      %v1550 = vsel %vm1519, %v1517, %v1190
      %v1551 = vsel %vm1519, %v1518, %v1192
      %vm1552 = vcmask 261120
      %v1553 = vsel %vm1552, %v1520, %v1226
      %v1554 = vsel %vm1552, %v1521, %v1228
      %v1555 = vsel %vm1552, %v1522, %v1230
      %v1556 = vsel %vm1552, %v1523, %v1232
      %v1557 = vsel %vm1552, %v1524, %v1234
      %v1558 = vsel %vm1552, %v1525, %v1236
      %v1559 = vsel %vm1552, %v1526, %v1238
      %v1560 = vsel %vm1552, %v1527, %v1240
      %v1561 = vsel %vm1552, %v1528, %v1242
      %v1562 = vsel %vm1552, %v1529, %v1244
      %v1563 = vsel %vm1552, %v1530, %v1246
      %v1564 = vsel %vm1552, %v1531, %v1248
      %v1565 = vsel %vm1552, %v1532, %v1250
      %v1566 = vsel %vm1552, %v1533, %v1252
      %v1567 = vsel %vm1552, %v1534, %v1254
      %v1568 = vsel %vm1552, %v1535, %v1256
      %v1569 = vsel %vm1552, %v1536, %v1258
      %v1570 = vsel %vm1552, %v1537, %v1260
      %v1571 = vsel %vm1552, %v1538, %v1262
      %v1572 = vsel %vm1552, %v1539, %v1264
      %v1573 = vsel %vm1552, %v1540, %v1266
      %v1574 = vsel %vm1552, %v1541, %v1268
      %v1575 = vsel %vm1552, %v1542, %v1270
      %v1576 = vsel %vm1552, %v1543, %v1272
      %v1577 = vsel %vm1552, %v1544, %v1274
      %v1578 = vsel %vm1552, %v1545, %v1276
      %v1579 = vsel %vm1552, %v1546, %v1278
      %v1580 = vsel %vm1552, %v1547, %v1280
      %v1581 = vsel %vm1552, %v1548, %v1282
      %v1582 = vsel %vm1552, %v1549, %v1284
      %v1583 = vsel %vm1552, %v1550, %v1286
      %v1584 = vsel %vm1552, %v1551, %v1288
      %v1585 = vld [vmem:[%s1] sm:$0xff]
      %v1586 = vld [vmem:[%s1 + $0x8] sm:$0xff]
      %v1587 = vld [vmem:[%s1 + $0x10] sm:$0xff]
      %v1588 = vld [vmem:[%s1 + $0x18] sm:$0xff]
      %v1589 = vld [vmem:[%s1 + $0x20] sm:$0xf]
      %v1590 = vld [vmem:[%s2] sm:$0x1]
      %v1592 = vperm.slane %v1590, 0
      %vm1594 = vcmask 293888
      %v1596 = vsel %vm1594, %v1553, 0
      %v1599 = vsel %vm1594, %v1554, 0
      %v1602 = vsel %vm1594, %v1555, 0
      %v1605 = vsel %vm1594, %v1556, 0
      %v1608 = vsel %vm1594, %v1557, 0
      %v1611 = vsel %vm1594, %v1558, 0
      %v1614 = vsel %vm1594, %v1559, 0
      %v1617 = vsel %vm1594, %v1560, 0
      %v1620 = vsel %vm1594, %v1561, 0
      %v1623 = vsel %vm1594, %v1562, 0
      %v1626 = vsel %vm1594, %v1563, 0
      %v1629 = vsel %vm1594, %v1564, 0
      %v1632 = vsel %vm1594, %v1565, 0
      %v1635 = vsel %vm1594, %v1566, 0
      %v1638 = vsel %vm1594, %v1567, 0
      %v1641 = vsel %vm1594, %v1568, 0
      %v1644 = vsel %vm1594, %v1569, 0
      %v1647 = vsel %vm1594, %v1570, 0
      %v1650 = vsel %vm1594, %v1571, 0
      %v1653 = vsel %vm1594, %v1572, 0
      %v1656 = vsel %vm1594, %v1573, 0
      %v1659 = vsel %vm1594, %v1574, 0
      %v1662 = vsel %vm1594, %v1575, 0
      %v1665 = vsel %vm1594, %v1576, 0
      %v1668 = vsel %vm1594, %v1577, 0
      %v1671 = vsel %vm1594, %v1578, 0
      %v1674 = vsel %vm1594, %v1579, 0
      %v1677 = vsel %vm1594, %v1580, 0
      %v1680 = vsel %vm1594, %v1581, 0
      %v1683 = vsel %vm1594, %v1582, 0
      %v1686 = vsel %vm1594, %v1583, 0
      %v1689 = vsel %vm1594, %v1584, 0
      %vm1691 = vcmask 1043456
      %v1693 = vsel %vm1691, %v1589, 0
      %1695 = vmatpush.msra.mxu0 0.0
      %1696 = vmatpush.msra.mxu0 0.0
      %1697 = vmatpush.msra.mxu0 0.0
      %1698 = vmatpush.msra.mxu0 0.0
      %1699 = vmatpush.msra.mxu0 0.0
      %1700 = vmatpush.msra.mxu0 0.0
      %1701 = vmatpush.msra.mxu0 0.0
      %1702 = vmatpush.msra.mxu0 0.0
      %1703 = vmatpush.msra.mxu0 0.0
      %1704 = vmatpush.msra.mxu0 0.0
      %1705 = vmatpush.msra.mxu0 0.0
      %1706 = vmatpush.msra.mxu0 %v1693
      %1707 = vmatpush.msra.mxu0 %v1588
      %1708 = vmatpush.msra.mxu0 %v1587
      %1709 = vmatpush.msra.mxu0 %v1586
      %1710 = vmatpush.msra.mxu0 %v1585
      %1711 = vmatmul.f32.gmra.mxu0 %v1596
      %v1712 = vpop.f32.mrf.mxu0
      %v1713 = vadd.f32 %v1592, %v1712
      %1714 = vmatmul.f32.gmra.mxu0 %v1599
      %v1715 = vpop.f32.mrf.mxu0
      %v1716 = vadd.f32 %v1592, %v1715
      %1717 = vmatmul.f32.gmra.mxu0 %v1602
      %v1718 = vpop.f32.mrf.mxu0
      %v1719 = vadd.f32 %v1592, %v1718
      %1720 = vmatmul.f32.gmra.mxu0 %v1605
      %v1721 = vpop.f32.mrf.mxu0
      %v1722 = vadd.f32 %v1592, %v1721
      %1723 = vmatmul.f32.gmra.mxu0 %v1608
      %v1724 = vpop.f32.mrf.mxu0
      %v1725 = vadd.f32 %v1592, %v1724
      %1726 = vmatmul.f32.gmra.mxu0 %v1611
      %v1727 = vpop.f32.mrf.mxu0
      %v1728 = vadd.f32 %v1592, %v1727
      %1729 = vmatmul.f32.gmra.mxu0 %v1614
      %v1730 = vpop.f32.mrf.mxu0
      %v1731 = vadd.f32 %v1592, %v1730
      %1732 = vmatmul.f32.gmra.mxu0 %v1617
      %v1733 = vpop.f32.mrf.mxu0
      %v1734 = vadd.f32 %v1592, %v1733
      %1735 = vmatmul.f32.gmra.mxu0 %v1620
      %v1736 = vpop.f32.mrf.mxu0
      %v1737 = vadd.f32 %v1592, %v1736
      %1738 = vmatmul.f32.gmra.mxu0 %v1623
      %v1739 = vpop.f32.mrf.mxu0
      %v1740 = vadd.f32 %v1592, %v1739
      %1741 = vmatmul.f32.gmra.mxu0 %v1626
      %v1742 = vpop.f32.mrf.mxu0
      %v1743 = vadd.f32 %v1592, %v1742
      %1744 = vmatmul.f32.gmra.mxu0 %v1629
      %v1745 = vpop.f32.mrf.mxu0
      %v1746 = vadd.f32 %v1592, %v1745
      %1747 = vmatmul.f32.gmra.mxu0 %v1632
      %v1748 = vpop.f32.mrf.mxu0
      %v1749 = vadd.f32 %v1592, %v1748
      %1750 = vmatmul.f32.gmra.mxu0 %v1635
      %v1751 = vpop.f32.mrf.mxu0
      %v1752 = vadd.f32 %v1592, %v1751
      %1753 = vmatmul.f32.gmra.mxu0 %v1638
      %v1754 = vpop.f32.mrf.mxu0
      %v1755 = vadd.f32 %v1592, %v1754
      %1756 = vmatmul.f32.gmra.mxu0 %v1641
      %v1757 = vpop.f32.mrf.mxu0
      %v1758 = vadd.f32 %v1592, %v1757
      %1759 = vmatmul.f32.gmra.mxu0 %v1644
      %v1760 = vpop.f32.mrf.mxu0
      %v1761 = vadd.f32 %v1592, %v1760
      %1762 = vmatmul.f32.gmra.mxu0 %v1647
      %v1763 = vpop.f32.mrf.mxu0
      %v1764 = vadd.f32 %v1592, %v1763
      %1765 = vmatmul.f32.gmra.mxu0 %v1650
      %v1766 = vpop.f32.mrf.mxu0
      %v1767 = vadd.f32 %v1592, %v1766
      %1768 = vmatmul.f32.gmra.mxu0 %v1653
      %v1769 = vpop.f32.mrf.mxu0
      %v1770 = vadd.f32 %v1592, %v1769
      %1771 = vmatmul.f32.gmra.mxu0 %v1656
      %v1772 = vpop.f32.mrf.mxu0
      %v1773 = vadd.f32 %v1592, %v1772
      %1774 = vmatmul.f32.gmra.mxu0 %v1659
      %v1775 = vpop.f32.mrf.mxu0
      %v1776 = vadd.f32 %v1592, %v1775
      %1777 = vmatmul.f32.gmra.mxu0 %v1662
      %v1778 = vpop.f32.mrf.mxu0
      %v1779 = vadd.f32 %v1592, %v1778
      %1780 = vmatmul.f32.gmra.mxu0 %v1665
      %v1781 = vpop.f32.mrf.mxu0
      %v1782 = vadd.f32 %v1592, %v1781
      %1783 = vmatmul.f32.gmra.mxu0 %v1668
      %v1784 = vpop.f32.mrf.mxu0
      %v1785 = vadd.f32 %v1592, %v1784
      %1786 = vmatmul.f32.gmra.mxu0 %v1671
      %v1787 = vpop.f32.mrf.mxu0
      %v1788 = vadd.f32 %v1592, %v1787
      %1789 = vmatmul.f32.gmra.mxu0 %v1674
      %v1790 = vpop.f32.mrf.mxu0
      %v1791 = vadd.f32 %v1592, %v1790
      %1792 = vmatmul.f32.gmra.mxu0 %v1677
      %v1793 = vpop.f32.mrf.mxu0
      %v1794 = vadd.f32 %v1592, %v1793
      %1795 = vmatmul.f32.gmra.mxu0 %v1680
      %v1796 = vpop.f32.mrf.mxu0
      %v1797 = vadd.f32 %v1592, %v1796
      %1798 = vmatmul.f32.gmra.mxu0 %v1683
      %v1799 = vpop.f32.mrf.mxu0
      %v1800 = vadd.f32 %v1592, %v1799
      %1801 = vmatmul.f32.gmra.mxu0 %v1686
      %v1802 = vpop.f32.mrf.mxu0
      %v1803 = vadd.f32 %v1592, %v1802
      %1804 = vmatmul.f32.gmra.mxu0 %v1689
      %v1805 = vpop.f32.mrf.mxu0
      %v1806 = vadd.f32 %v1592, %v1805
      %1807 = vdwg.mxu0
      %vm1841 = vcmask 1040384
      %v1842 = vrot.slane 0.0, 7
      %v1843 = vsel %vm1841, %v1842, %v1842
      %v1844 = vrot.slane %v1713, 7
      %v1845 = vrot.slane %v1716, 7
      %v1846 = vsel %vm1841, %v1844, %v1845
      %v1847 = vrot.slane %v1719, 7
      %v1848 = vrot.slane %v1722, 7
      %v1849 = vsel %vm1841, %v1847, %v1848
      %v1850 = vrot.slane %v1725, 7
      %v1851 = vrot.slane %v1728, 7
      %v1852 = vsel %vm1841, %v1850, %v1851
      %v1853 = vrot.slane %v1731, 7
      %v1854 = vrot.slane %v1734, 7
      %v1855 = vsel %vm1841, %v1853, %v1854
      %v1856 = vrot.slane %v1737, 7
      %v1857 = vrot.slane %v1740, 7
      %v1858 = vsel %vm1841, %v1856, %v1857
      %v1859 = vrot.slane %v1743, 7
      %v1860 = vrot.slane %v1746, 7
      %v1861 = vsel %vm1841, %v1859, %v1860
      %v1862 = vrot.slane %v1749, 7
      %v1863 = vrot.slane %v1752, 7
      %v1864 = vsel %vm1841, %v1862, %v1863
      %v1865 = vrot.slane %v1755, 7
      %v1866 = vrot.slane %v1758, 7
      %v1867 = vsel %vm1841, %v1865, %v1866
      %v1868 = vrot.slane %v1761, 7
      %v1869 = vrot.slane %v1764, 7
      %v1870 = vsel %vm1841, %v1868, %v1869
      %v1871 = vrot.slane %v1767, 7
      %v1872 = vrot.slane %v1770, 7
      %v1873 = vsel %vm1841, %v1871, %v1872
      %v1874 = vrot.slane %v1773, 7
      %v1875 = vrot.slane %v1776, 7
      %v1876 = vsel %vm1841, %v1874, %v1875
      %v1877 = vrot.slane %v1779, 7
      %v1878 = vrot.slane %v1782, 7
      %v1879 = vsel %vm1841, %v1877, %v1878
      %v1880 = vrot.slane %v1785, 7
      %v1881 = vrot.slane %v1788, 7
      %v1882 = vsel %vm1841, %v1880, %v1881
      %v1883 = vrot.slane %v1791, 7
      %v1884 = vrot.slane %v1794, 7
      %v1885 = vsel %vm1841, %v1883, %v1884
      %v1886 = vrot.slane %v1797, 7
      %v1887 = vrot.slane %v1800, 7
      %v1888 = vsel %vm1841, %v1886, %v1887
      %v1889 = vrot.slane %v1803, 7
      %v1890 = vrot.slane %v1806, 7
      %v1891 = vsel %vm1841, %v1889, %v1890
      %v1941 = vsel %vm1841, 0.0, %v1842
      %v1942 = vsel %vm1841, 0.0, %v1844
      %v1943 = vsel %vm1841, 0.0, %v1847
      %v1944 = vsel %vm1841, 0.0, %v1850
      %v1945 = vsel %vm1841, 0.0, %v1853
      %v1946 = vsel %vm1841, 0.0, %v1856
      %v1947 = vsel %vm1841, 0.0, %v1859
      %v1948 = vsel %vm1841, 0.0, %v1862
      %v1949 = vsel %vm1841, 0.0, %v1865
      %v1950 = vsel %vm1841, 0.0, %v1868
      %v1951 = vsel %vm1841, 0.0, %v1871
      %v1952 = vsel %vm1841, 0.0, %v1874
      %v1953 = vsel %vm1841, 0.0, %v1877
      %v1954 = vsel %vm1841, 0.0, %v1880
      %v1955 = vsel %vm1841, 0.0, %v1883
      %v1956 = vsel %vm1841, 0.0, %v1886
      %v1957 = vsel %vm1841, 0.0, %v1889
      %v1958 = vsel %vm1841, %v1842, 0.0
      %v1959 = vsel %vm1841, %v1845, 0.0
      %v1960 = vsel %vm1841, %v1848, 0.0
      %v1961 = vsel %vm1841, %v1851, 0.0
      %v1962 = vsel %vm1841, %v1854, 0.0
      %v1963 = vsel %vm1841, %v1857, 0.0
      %v1964 = vsel %vm1841, %v1860, 0.0
      %v1965 = vsel %vm1841, %v1863, 0.0
      %v1966 = vsel %vm1841, %v1866, 0.0
      %v1967 = vsel %vm1841, %v1869, 0.0
      %v1968 = vsel %vm1841, %v1872, 0.0
      %v1969 = vsel %vm1841, %v1875, 0.0
      %v1970 = vsel %vm1841, %v1878, 0.0
      %v1971 = vsel %vm1841, %v1881, 0.0
      %v1972 = vsel %vm1841, %v1884, 0.0
      %v1973 = vsel %vm1841, %v1887, 0.0
      %v1974 = vsel %vm1841, %v1890, 0.0
      %v2007 = vrot.slane %v1941, 1
      %v2008 = vrot.slane %v1843, 1
      %v2009 = vsel %vm365, %v2007, %v2008
      %v2010 = vrot.slane %v1958, 1
      %v2011 = vsel %vm365, %v2008, %v2010
      %v2012 = vrot.slane %v1942, 1
      %v2013 = vrot.slane %v1846, 1
      %v2014 = vsel %vm365, %v2012, %v2013
      %v2015 = vrot.slane %v1959, 1
      %v2016 = vsel %vm365, %v2013, %v2015
      %v2017 = vrot.slane %v1943, 1
      %v2018 = vrot.slane %v1849, 1
      %v2019 = vsel %vm365, %v2017, %v2018
      %v2020 = vrot.slane %v1960, 1
      %v2021 = vsel %vm365, %v2018, %v2020
      %v2022 = vrot.slane %v1944, 1
      %v2023 = vrot.slane %v1852, 1
      %v2024 = vsel %vm365, %v2022, %v2023
      %v2025 = vrot.slane %v1961, 1
      %v2026 = vsel %vm365, %v2023, %v2025
      %v2027 = vrot.slane %v1945, 1
      %v2028 = vrot.slane %v1855, 1
      %v2029 = vsel %vm365, %v2027, %v2028
      %v2030 = vrot.slane %v1962, 1
      %v2031 = vsel %vm365, %v2028, %v2030
      %v2032 = vrot.slane %v1946, 1
      %v2033 = vrot.slane %v1858, 1
      %v2034 = vsel %vm365, %v2032, %v2033
      %v2035 = vrot.slane %v1963, 1
      %v2036 = vsel %vm365, %v2033, %v2035
      %v2037 = vrot.slane %v1947, 1
      %v2038 = vrot.slane %v1861, 1
      %v2039 = vsel %vm365, %v2037, %v2038
      %v2040 = vrot.slane %v1964, 1
      %v2041 = vsel %vm365, %v2038, %v2040
      %v2042 = vrot.slane %v1948, 1
      %v2043 = vrot.slane %v1864, 1
      %v2044 = vsel %vm365, %v2042, %v2043
      %v2045 = vrot.slane %v1965, 1
      %v2046 = vsel %vm365, %v2043, %v2045
      %v2047 = vrot.slane %v1949, 1
      %v2048 = vrot.slane %v1867, 1
      %v2049 = vsel %vm365, %v2047, %v2048
      %v2050 = vrot.slane %v1966, 1
      %v2051 = vsel %vm365, %v2048, %v2050
      %v2052 = vrot.slane %v1950, 1
      %v2053 = vrot.slane %v1870, 1
      %v2054 = vsel %vm365, %v2052, %v2053
      %v2055 = vrot.slane %v1967, 1
      %v2056 = vsel %vm365, %v2053, %v2055
      %v2057 = vrot.slane %v1951, 1
      %v2058 = vrot.slane %v1873, 1
      %v2059 = vsel %vm365, %v2057, %v2058
      %v2060 = vrot.slane %v1968, 1
      %v2061 = vsel %vm365, %v2058, %v2060
      %v2062 = vrot.slane %v1952, 1
      %v2063 = vrot.slane %v1876, 1
      %v2064 = vsel %vm365, %v2062, %v2063
      %v2065 = vrot.slane %v1969, 1
      %v2066 = vsel %vm365, %v2063, %v2065
      %v2067 = vrot.slane %v1953, 1
      %v2068 = vrot.slane %v1879, 1
      %v2069 = vsel %vm365, %v2067, %v2068
      %v2070 = vrot.slane %v1970, 1
      %v2071 = vsel %vm365, %v2068, %v2070
      %v2072 = vrot.slane %v1954, 1
      %v2073 = vrot.slane %v1882, 1
      %v2074 = vsel %vm365, %v2072, %v2073
      %v2075 = vrot.slane %v1971, 1
      %v2076 = vsel %vm365, %v2073, %v2075
      %v2077 = vrot.slane %v1955, 1
      %v2078 = vrot.slane %v1885, 1
      %v2079 = vsel %vm365, %v2077, %v2078
      %v2080 = vrot.slane %v1972, 1
      %v2081 = vsel %vm365, %v2078, %v2080
      %v2082 = vrot.slane %v1956, 1
      %v2083 = vrot.slane %v1888, 1
      %v2084 = vsel %vm365, %v2082, %v2083
      %v2085 = vrot.slane %v1973, 1
      %v2086 = vsel %vm365, %v2083, %v2085
      %v2087 = vrot.slane %v1941, 2
      %v2088 = vrot.slane %v1843, 2
      %v2089 = vsel %vm446, %v2087, %v2088
      %v2090 = vrot.slane %v1958, 2
      %v2091 = vsel %vm446, %v2088, %v2090
      %v2092 = vrot.slane %v1942, 2
      %v2093 = vrot.slane %v1846, 2
      %v2094 = vsel %vm446, %v2092, %v2093
      %v2095 = vrot.slane %v1959, 2
      %v2096 = vsel %vm446, %v2093, %v2095
      %v2097 = vrot.slane %v1943, 2
      %v2098 = vrot.slane %v1849, 2
      %v2099 = vsel %vm446, %v2097, %v2098
      %v2100 = vrot.slane %v1960, 2
      %v2101 = vsel %vm446, %v2098, %v2100
      %v2102 = vrot.slane %v1944, 2
      %v2103 = vrot.slane %v1852, 2
      %v2104 = vsel %vm446, %v2102, %v2103
      %v2105 = vrot.slane %v1961, 2
      %v2106 = vsel %vm446, %v2103, %v2105
      %v2107 = vrot.slane %v1945, 2
      %v2108 = vrot.slane %v1855, 2
      %v2109 = vsel %vm446, %v2107, %v2108
      %v2110 = vrot.slane %v1962, 2
      %v2111 = vsel %vm446, %v2108, %v2110
      %v2112 = vrot.slane %v1946, 2
      %v2113 = vrot.slane %v1858, 2
      %v2114 = vsel %vm446, %v2112, %v2113
      %v2115 = vrot.slane %v1963, 2
      %v2116 = vsel %vm446, %v2113, %v2115
      %v2117 = vrot.slane %v1947, 2
      %v2118 = vrot.slane %v1861, 2
      %v2119 = vsel %vm446, %v2117, %v2118
      %v2120 = vrot.slane %v1964, 2
      %v2121 = vsel %vm446, %v2118, %v2120
      %v2122 = vrot.slane %v1948, 2
      %v2123 = vrot.slane %v1864, 2
      %v2124 = vsel %vm446, %v2122, %v2123
      %v2125 = vrot.slane %v1965, 2
      %v2126 = vsel %vm446, %v2123, %v2125
      %v2127 = vrot.slane %v1949, 2
      %v2128 = vrot.slane %v1867, 2
      %v2129 = vsel %vm446, %v2127, %v2128
      %v2130 = vrot.slane %v1966, 2
      %v2131 = vsel %vm446, %v2128, %v2130
      %v2132 = vrot.slane %v1950, 2
      %v2133 = vrot.slane %v1870, 2
      %v2134 = vsel %vm446, %v2132, %v2133
      %v2135 = vrot.slane %v1967, 2
      %v2136 = vsel %vm446, %v2133, %v2135
      %v2137 = vrot.slane %v1951, 2
      %v2138 = vrot.slane %v1873, 2
      %v2139 = vsel %vm446, %v2137, %v2138
      %v2140 = vrot.slane %v1968, 2
      %v2141 = vsel %vm446, %v2138, %v2140
      %v2142 = vrot.slane %v1952, 2
      %v2143 = vrot.slane %v1876, 2
      %v2144 = vsel %vm446, %v2142, %v2143
      %v2145 = vrot.slane %v1969, 2
      %v2146 = vsel %vm446, %v2143, %v2145
      %v2147 = vrot.slane %v1953, 2
      %v2148 = vrot.slane %v1879, 2
      %v2149 = vsel %vm446, %v2147, %v2148
      %v2150 = vrot.slane %v1970, 2
      %v2151 = vsel %vm446, %v2148, %v2150
      %v2152 = vrot.slane %v1954, 2
      %v2153 = vrot.slane %v1882, 2
      %v2154 = vsel %vm446, %v2152, %v2153
      %v2155 = vrot.slane %v1971, 2
      %v2156 = vsel %vm446, %v2153, %v2155
      %v2157 = vrot.slane %v1955, 2
      %v2158 = vrot.slane %v1885, 2
      %v2159 = vsel %vm446, %v2157, %v2158
      %v2160 = vrot.slane %v1972, 2
      %v2161 = vsel %vm446, %v2158, %v2160
      %v2162 = vrot.slane %v1956, 2
      %v2163 = vrot.slane %v1888, 2
      %v2164 = vsel %vm446, %v2162, %v2163
      %v2165 = vrot.slane %v1973, 2
      %v2166 = vsel %vm446, %v2163, %v2165
      %v2169 = vrot.slane %v1957, 1
      %v2170 = vrot.slane %v1891, 1
      %v2171 = vsel %vm365, %v2169, %v2170
      %v2172 = vrot.slane %v1974, 1
      %v2173 = vsel %vm365, %v2170, %v2172
      %v2174 = vrot.slane %v1957, 2
      %v2175 = vrot.slane %v1891, 2
      %v2176 = vsel %vm446, %v2174, %v2175
      %v2177 = vrot.slane %v1974, 2
      %v2178 = vsel %vm446, %v2175, %v2177
      %2179 = vrot.lane.b32.xlu0 %v2009, 8
      %v2180 = vpop.permute.xlu0 %2179
      %2181 = vrot.lane.b32.xlu0 %v2011, 8
      %v2182 = vpop.permute.xlu0 %2181
      %2183 = vrot.lane.b32.xlu0 %v2014, 8
      %v2184 = vpop.permute.xlu0 %2183
      %2185 = vrot.lane.b32.xlu0 %v2016, 8
      %v2186 = vpop.permute.xlu0 %2185
      %2187 = vrot.lane.b32.xlu0 %v2019, 8
      %v2188 = vpop.permute.xlu0 %2187
      %2189 = vrot.lane.b32.xlu0 %v2021, 8
      %v2190 = vpop.permute.xlu0 %2189
      %2191 = vrot.lane.b32.xlu0 %v2024, 8
      %v2192 = vpop.permute.xlu0 %2191
      %2193 = vrot.lane.b32.xlu0 %v2026, 8
      %v2194 = vpop.permute.xlu0 %2193
      %2195 = vrot.lane.b32.xlu0 %v2029, 8
      %v2196 = vpop.permute.xlu0 %2195
      %2197 = vrot.lane.b32.xlu0 %v2031, 8
      %v2198 = vpop.permute.xlu0 %2197
      %2199 = vrot.lane.b32.xlu0 %v2034, 8
      %v2200 = vpop.permute.xlu0 %2199
      %2201 = vrot.lane.b32.xlu0 %v2036, 8
      %v2202 = vpop.permute.xlu0 %2201
      %2203 = vrot.lane.b32.xlu0 %v2039, 8
      %v2204 = vpop.permute.xlu0 %2203
      %2205 = vrot.lane.b32.xlu0 %v2041, 8
      %v2206 = vpop.permute.xlu0 %2205
      %2207 = vrot.lane.b32.xlu0 %v2044, 8
      %v2208 = vpop.permute.xlu0 %2207
      %2209 = vrot.lane.b32.xlu0 %v2046, 8
      %v2210 = vpop.permute.xlu0 %2209
      %2211 = vrot.lane.b32.xlu0 %v2049, 8
      %v2212 = vpop.permute.xlu0 %2211
      %2213 = vrot.lane.b32.xlu0 %v2051, 8
      %v2214 = vpop.permute.xlu0 %2213
      %2215 = vrot.lane.b32.xlu0 %v2054, 8
      %v2216 = vpop.permute.xlu0 %2215
      %2217 = vrot.lane.b32.xlu0 %v2056, 8
      %v2218 = vpop.permute.xlu0 %2217
      %2219 = vrot.lane.b32.xlu0 %v2059, 8
      %v2220 = vpop.permute.xlu0 %2219
      %2221 = vrot.lane.b32.xlu0 %v2061, 8
      %v2222 = vpop.permute.xlu0 %2221
      %2223 = vrot.lane.b32.xlu0 %v2064, 8
      %v2224 = vpop.permute.xlu0 %2223
      %2225 = vrot.lane.b32.xlu0 %v2066, 8
      %v2226 = vpop.permute.xlu0 %2225
      %2227 = vrot.lane.b32.xlu0 %v2069, 8
      %v2228 = vpop.permute.xlu0 %2227
      %2229 = vrot.lane.b32.xlu0 %v2071, 8
      %v2230 = vpop.permute.xlu0 %2229
      %2231 = vrot.lane.b32.xlu0 %v2074, 8
      %v2232 = vpop.permute.xlu0 %2231
      %2233 = vrot.lane.b32.xlu0 %v2076, 8
      %v2234 = vpop.permute.xlu0 %2233
      %2235 = vrot.lane.b32.xlu0 %v2079, 8
      %v2236 = vpop.permute.xlu0 %2235
      %2237 = vrot.lane.b32.xlu0 %v2081, 8
      %v2238 = vpop.permute.xlu0 %2237
      %2239 = vrot.lane.b32.xlu0 %v2084, 8
      %v2240 = vpop.permute.xlu0 %2239
      %2241 = vrot.lane.b32.xlu0 %v2086, 8
      %v2242 = vpop.permute.xlu0 %2241
      %2275 = vrot.lane.b32.xlu0 %v2089, 16
      %v2276 = vpop.permute.xlu0 %2275
      %2277 = vrot.lane.b32.xlu0 %v2091, 16
      %v2278 = vpop.permute.xlu0 %2277
      %2279 = vrot.lane.b32.xlu0 %v2094, 16
      %v2280 = vpop.permute.xlu0 %2279
      %2281 = vrot.lane.b32.xlu0 %v2096, 16
      %v2282 = vpop.permute.xlu0 %2281
      %2283 = vrot.lane.b32.xlu0 %v2099, 16
      %v2284 = vpop.permute.xlu0 %2283
      %2285 = vrot.lane.b32.xlu0 %v2101, 16
      %v2286 = vpop.permute.xlu0 %2285
      %2287 = vrot.lane.b32.xlu0 %v2104, 16
      %v2288 = vpop.permute.xlu0 %2287
      %2289 = vrot.lane.b32.xlu0 %v2106, 16
      %v2290 = vpop.permute.xlu0 %2289
      %2291 = vrot.lane.b32.xlu0 %v2109, 16
      %v2292 = vpop.permute.xlu0 %2291
      %2293 = vrot.lane.b32.xlu0 %v2111, 16
      %v2294 = vpop.permute.xlu0 %2293
      %2295 = vrot.lane.b32.xlu0 %v2114, 16
      %v2296 = vpop.permute.xlu0 %2295
      %2297 = vrot.lane.b32.xlu0 %v2116, 16
      %v2298 = vpop.permute.xlu0 %2297
      %2299 = vrot.lane.b32.xlu0 %v2119, 16
      %v2300 = vpop.permute.xlu0 %2299
      %2301 = vrot.lane.b32.xlu0 %v2121, 16
      %v2302 = vpop.permute.xlu0 %2301
      %2303 = vrot.lane.b32.xlu0 %v2124, 16
      %v2304 = vpop.permute.xlu0 %2303
      %2305 = vrot.lane.b32.xlu0 %v2126, 16
      %v2306 = vpop.permute.xlu0 %2305
      %2307 = vrot.lane.b32.xlu0 %v2129, 16
      %v2308 = vpop.permute.xlu0 %2307
      %2309 = vrot.lane.b32.xlu0 %v2131, 16
      %v2310 = vpop.permute.xlu0 %2309
      %2311 = vrot.lane.b32.xlu0 %v2134, 16
      %v2312 = vpop.permute.xlu0 %2311
      %2313 = vrot.lane.b32.xlu0 %v2136, 16
      %v2314 = vpop.permute.xlu0 %2313
      %2315 = vrot.lane.b32.xlu0 %v2139, 16
      %v2316 = vpop.permute.xlu0 %2315
      %2317 = vrot.lane.b32.xlu0 %v2141, 16
      %v2318 = vpop.permute.xlu0 %2317
      %2319 = vrot.lane.b32.xlu0 %v2144, 16
      %v2320 = vpop.permute.xlu0 %2319
      %2321 = vrot.lane.b32.xlu0 %v2146, 16
      %v2322 = vpop.permute.xlu0 %2321
      %2323 = vrot.lane.b32.xlu0 %v2149, 16
      %v2324 = vpop.permute.xlu0 %2323
      %2325 = vrot.lane.b32.xlu0 %v2151, 16
      %v2326 = vpop.permute.xlu0 %2325
      %2327 = vrot.lane.b32.xlu0 %v2154, 16
      %v2328 = vpop.permute.xlu0 %2327
      %2329 = vrot.lane.b32.xlu0 %v2156, 16
      %v2330 = vpop.permute.xlu0 %2329
      %2331 = vrot.lane.b32.xlu0 %v2159, 16
      %v2332 = vpop.permute.xlu0 %2331
      %2333 = vrot.lane.b32.xlu0 %v2161, 16
      %v2334 = vpop.permute.xlu0 %2333
      %2335 = vrot.lane.b32.xlu0 %v2164, 16
      %v2336 = vpop.permute.xlu0 %2335
      %2337 = vrot.lane.b32.xlu0 %v2166, 16
      %v2338 = vpop.permute.xlu0 %2337
      %2371 = vrot.lane.b32.xlu0 %v1942, 24
      %v2372 = vpop.permute.xlu0 %2371
      %2373 = vrot.lane.b32.xlu0 %v1846, 24
      %v2374 = vpop.permute.xlu0 %2373
      %2375 = vrot.lane.b32.xlu0 %v1943, 24
      %v2376 = vpop.permute.xlu0 %2375
      %2377 = vrot.lane.b32.xlu0 %v1849, 24
      %v2378 = vpop.permute.xlu0 %2377
      %2379 = vrot.lane.b32.xlu0 %v1944, 24
      %v2380 = vpop.permute.xlu0 %2379
      %2381 = vrot.lane.b32.xlu0 %v1852, 24
      %v2382 = vpop.permute.xlu0 %2381
      %2383 = vrot.lane.b32.xlu0 %v1945, 24
      %v2384 = vpop.permute.xlu0 %2383
      %2385 = vrot.lane.b32.xlu0 %v1855, 24
      %v2386 = vpop.permute.xlu0 %2385
      %2387 = vrot.lane.b32.xlu0 %v1946, 24
      %v2388 = vpop.permute.xlu0 %2387
      %2389 = vrot.lane.b32.xlu0 %v1858, 24
      %v2390 = vpop.permute.xlu0 %2389
      %2391 = vrot.lane.b32.xlu0 %v1947, 24
      %v2392 = vpop.permute.xlu0 %2391
      %2393 = vrot.lane.b32.xlu0 %v1861, 24
      %v2394 = vpop.permute.xlu0 %2393
      %2395 = vrot.lane.b32.xlu0 %v1948, 24
      %v2396 = vpop.permute.xlu0 %2395
      %2397 = vrot.lane.b32.xlu0 %v1864, 24
      %v2398 = vpop.permute.xlu0 %2397
      %2399 = vrot.lane.b32.xlu0 %v1949, 24
      %v2400 = vpop.permute.xlu0 %2399
      %2401 = vrot.lane.b32.xlu0 %v1867, 24
      %v2402 = vpop.permute.xlu0 %2401
      %2403 = vrot.lane.b32.xlu0 %v1950, 24
      %v2404 = vpop.permute.xlu0 %2403
      %2405 = vrot.lane.b32.xlu0 %v1870, 24
      %v2406 = vpop.permute.xlu0 %2405
      %2407 = vrot.lane.b32.xlu0 %v1951, 24
      %v2408 = vpop.permute.xlu0 %2407
      %2409 = vrot.lane.b32.xlu0 %v1873, 24
      %v2410 = vpop.permute.xlu0 %2409
      %2411 = vrot.lane.b32.xlu0 %v1952, 24
      %v2412 = vpop.permute.xlu0 %2411
      %2413 = vrot.lane.b32.xlu0 %v1876, 24
      %v2414 = vpop.permute.xlu0 %2413
      %2415 = vrot.lane.b32.xlu0 %v1953, 24
      %v2416 = vpop.permute.xlu0 %2415
      %2417 = vrot.lane.b32.xlu0 %v1879, 24
      %v2418 = vpop.permute.xlu0 %2417
      %2419 = vrot.lane.b32.xlu0 %v1954, 24
      %v2420 = vpop.permute.xlu0 %2419
      %2421 = vrot.lane.b32.xlu0 %v1882, 24
      %v2422 = vpop.permute.xlu0 %2421
      %2423 = vrot.lane.b32.xlu0 %v1955, 24
      %v2424 = vpop.permute.xlu0 %2423
      %2425 = vrot.lane.b32.xlu0 %v1885, 24
      %v2426 = vpop.permute.xlu0 %2425
      %2427 = vrot.lane.b32.xlu0 %v1956, 24
      %v2428 = vpop.permute.xlu0 %2427
      %2429 = vrot.lane.b32.xlu0 %v1888, 24
      %v2430 = vpop.permute.xlu0 %2429
      %2431 = vrot.lane.b32.xlu0 %v1957, 24
      %v2432 = vpop.permute.xlu0 %2431
      %2433 = vrot.lane.b32.xlu0 %v1891, 24
      %v2434 = vpop.permute.xlu0 %2433
      %2467 = vrot.lane.b32.xlu0 %v2014, 32
      %v2468 = vpop.permute.xlu0 %2467
      %2469 = vrot.lane.b32.xlu0 %v2016, 32
      %v2470 = vpop.permute.xlu0 %2469
      %2471 = vrot.lane.b32.xlu0 %v2019, 32
      %v2472 = vpop.permute.xlu0 %2471
      %2473 = vrot.lane.b32.xlu0 %v2021, 32
      %v2474 = vpop.permute.xlu0 %2473
      %2475 = vrot.lane.b32.xlu0 %v2024, 32
      %v2476 = vpop.permute.xlu0 %2475
      %2477 = vrot.lane.b32.xlu0 %v2026, 32
      %v2478 = vpop.permute.xlu0 %2477
      %2479 = vrot.lane.b32.xlu0 %v2029, 32
      %v2480 = vpop.permute.xlu0 %2479
      %2481 = vrot.lane.b32.xlu0 %v2031, 32
      %v2482 = vpop.permute.xlu0 %2481
      %2483 = vrot.lane.b32.xlu0 %v2034, 32
      %v2484 = vpop.permute.xlu0 %2483
      %2485 = vrot.lane.b32.xlu0 %v2036, 32
      %v2486 = vpop.permute.xlu0 %2485
      %2487 = vrot.lane.b32.xlu0 %v2039, 32
      %v2488 = vpop.permute.xlu0 %2487
      %2489 = vrot.lane.b32.xlu0 %v2041, 32
      %v2490 = vpop.permute.xlu0 %2489
      %2491 = vrot.lane.b32.xlu0 %v2044, 32
      %v2492 = vpop.permute.xlu0 %2491
      %2493 = vrot.lane.b32.xlu0 %v2046, 32
      %v2494 = vpop.permute.xlu0 %2493
      %2495 = vrot.lane.b32.xlu0 %v2049, 32
      %v2496 = vpop.permute.xlu0 %2495
      %2497 = vrot.lane.b32.xlu0 %v2051, 32
      %v2498 = vpop.permute.xlu0 %2497
      %2499 = vrot.lane.b32.xlu0 %v2054, 32
      %v2500 = vpop.permute.xlu0 %2499
      %2501 = vrot.lane.b32.xlu0 %v2056, 32
      %v2502 = vpop.permute.xlu0 %2501
      %2503 = vrot.lane.b32.xlu0 %v2059, 32
      %v2504 = vpop.permute.xlu0 %2503
      %2505 = vrot.lane.b32.xlu0 %v2061, 32
      %v2506 = vpop.permute.xlu0 %2505
      %2507 = vrot.lane.b32.xlu0 %v2064, 32
      %v2508 = vpop.permute.xlu0 %2507
      %2509 = vrot.lane.b32.xlu0 %v2066, 32
      %v2510 = vpop.permute.xlu0 %2509
      %2511 = vrot.lane.b32.xlu0 %v2069, 32
      %v2512 = vpop.permute.xlu0 %2511
      %2513 = vrot.lane.b32.xlu0 %v2071, 32
      %v2514 = vpop.permute.xlu0 %2513
      %2515 = vrot.lane.b32.xlu0 %v2074, 32
      %v2516 = vpop.permute.xlu0 %2515
      %2517 = vrot.lane.b32.xlu0 %v2076, 32
      %v2518 = vpop.permute.xlu0 %2517
      %2519 = vrot.lane.b32.xlu0 %v2079, 32
      %v2520 = vpop.permute.xlu0 %2519
      %2521 = vrot.lane.b32.xlu0 %v2081, 32
      %v2522 = vpop.permute.xlu0 %2521
      %2523 = vrot.lane.b32.xlu0 %v2084, 32
      %v2524 = vpop.permute.xlu0 %2523
      %2525 = vrot.lane.b32.xlu0 %v2086, 32
      %v2526 = vpop.permute.xlu0 %2525
      %2527 = vrot.lane.b32.xlu0 %v2171, 32
      %v2528 = vpop.permute.xlu0 %2527
      %2529 = vrot.lane.b32.xlu0 %v2173, 32
      %v2530 = vpop.permute.xlu0 %2529
      %2563 = vrot.lane.b32.xlu0 %v2094, 40
      %v2564 = vpop.permute.xlu0 %2563
      %2565 = vrot.lane.b32.xlu0 %v2096, 40
      %v2566 = vpop.permute.xlu0 %2565
      %2567 = vrot.lane.b32.xlu0 %v2099, 40
      %v2568 = vpop.permute.xlu0 %2567
      %2569 = vrot.lane.b32.xlu0 %v2101, 40
      %v2570 = vpop.permute.xlu0 %2569
      %2571 = vrot.lane.b32.xlu0 %v2104, 40
      %v2572 = vpop.permute.xlu0 %2571
      %2573 = vrot.lane.b32.xlu0 %v2106, 40
      %v2574 = vpop.permute.xlu0 %2573
      %2575 = vrot.lane.b32.xlu0 %v2109, 40
      %v2576 = vpop.permute.xlu0 %2575
      %2577 = vrot.lane.b32.xlu0 %v2111, 40
      %v2578 = vpop.permute.xlu0 %2577
      %2579 = vrot.lane.b32.xlu0 %v2114, 40
      %v2580 = vpop.permute.xlu0 %2579
      %2581 = vrot.lane.b32.xlu0 %v2116, 40
      %v2582 = vpop.permute.xlu0 %2581
      %2583 = vrot.lane.b32.xlu0 %v2119, 40
      %v2584 = vpop.permute.xlu0 %2583
      %2585 = vrot.lane.b32.xlu0 %v2121, 40
      %v2586 = vpop.permute.xlu0 %2585
      %2587 = vrot.lane.b32.xlu0 %v2124, 40
      %v2588 = vpop.permute.xlu0 %2587
      %2589 = vrot.lane.b32.xlu0 %v2126, 40
      %v2590 = vpop.permute.xlu0 %2589
      %2591 = vrot.lane.b32.xlu0 %v2129, 40
      %v2592 = vpop.permute.xlu0 %2591
      %2593 = vrot.lane.b32.xlu0 %v2131, 40
      %v2594 = vpop.permute.xlu0 %2593
      %2595 = vrot.lane.b32.xlu0 %v2134, 40
      %v2596 = vpop.permute.xlu0 %2595
      %2597 = vrot.lane.b32.xlu0 %v2136, 40
      %v2598 = vpop.permute.xlu0 %2597
      %2599 = vrot.lane.b32.xlu0 %v2139, 40
      %v2600 = vpop.permute.xlu0 %2599
      %2601 = vrot.lane.b32.xlu0 %v2141, 40
      %v2602 = vpop.permute.xlu0 %2601
      %2603 = vrot.lane.b32.xlu0 %v2144, 40
      %v2604 = vpop.permute.xlu0 %2603
      %2605 = vrot.lane.b32.xlu0 %v2146, 40
      %v2606 = vpop.permute.xlu0 %2605
      %2607 = vrot.lane.b32.xlu0 %v2149, 40
      %v2608 = vpop.permute.xlu0 %2607
      %2609 = vrot.lane.b32.xlu0 %v2151, 40
      %v2610 = vpop.permute.xlu0 %2609
      %2611 = vrot.lane.b32.xlu0 %v2154, 40
      %v2612 = vpop.permute.xlu0 %2611
      %2613 = vrot.lane.b32.xlu0 %v2156, 40
      %v2614 = vpop.permute.xlu0 %2613
      %2615 = vrot.lane.b32.xlu0 %v2159, 40
      %v2616 = vpop.permute.xlu0 %2615
      %2617 = vrot.lane.b32.xlu0 %v2161, 40
      %v2618 = vpop.permute.xlu0 %2617
      %2619 = vrot.lane.b32.xlu0 %v2164, 40
      %v2620 = vpop.permute.xlu0 %2619
      %2621 = vrot.lane.b32.xlu0 %v2166, 40
      %v2622 = vpop.permute.xlu0 %2621
      %2623 = vrot.lane.b32.xlu0 %v2176, 40
      %v2624 = vpop.permute.xlu0 %2623
      %2625 = vrot.lane.b32.xlu0 %v2178, 40
      %v2626 = vpop.permute.xlu0 %2625
      %2659 = vrot.lane.b32.xlu0 %v1943, 48
      %v2660 = vpop.permute.xlu0 %2659
      %2661 = vrot.lane.b32.xlu0 %v1849, 48
      %v2662 = vpop.permute.xlu0 %2661
      %2663 = vrot.lane.b32.xlu0 %v1944, 48
      %v2664 = vpop.permute.xlu0 %2663
      %2665 = vrot.lane.b32.xlu0 %v1852, 48
      %v2666 = vpop.permute.xlu0 %2665
      %2667 = vrot.lane.b32.xlu0 %v1945, 48
      %v2668 = vpop.permute.xlu0 %2667
      %2669 = vrot.lane.b32.xlu0 %v1855, 48
      %v2670 = vpop.permute.xlu0 %2669
      %2671 = vrot.lane.b32.xlu0 %v1946, 48
      %v2672 = vpop.permute.xlu0 %2671
      %2673 = vrot.lane.b32.xlu0 %v1858, 48
      %v2674 = vpop.permute.xlu0 %2673
      %2675 = vrot.lane.b32.xlu0 %v1947, 48
      %v2676 = vpop.permute.xlu0 %2675
      %2677 = vrot.lane.b32.xlu0 %v1861, 48
      %v2678 = vpop.permute.xlu0 %2677
      %2679 = vrot.lane.b32.xlu0 %v1948, 48
      %v2680 = vpop.permute.xlu0 %2679
      %2681 = vrot.lane.b32.xlu0 %v1864, 48
      %v2682 = vpop.permute.xlu0 %2681
      %2683 = vrot.lane.b32.xlu0 %v1949, 48
      %v2684 = vpop.permute.xlu0 %2683
      %2685 = vrot.lane.b32.xlu0 %v1867, 48
      %v2686 = vpop.permute.xlu0 %2685
      %2687 = vrot.lane.b32.xlu0 %v1950, 48
      %v2688 = vpop.permute.xlu0 %2687
      %2689 = vrot.lane.b32.xlu0 %v1870, 48
      %v2690 = vpop.permute.xlu0 %2689
      %2691 = vrot.lane.b32.xlu0 %v1951, 48
      %v2692 = vpop.permute.xlu0 %2691
      %2693 = vrot.lane.b32.xlu0 %v1873, 48
      %v2694 = vpop.permute.xlu0 %2693
      %2695 = vrot.lane.b32.xlu0 %v1952, 48
      %v2696 = vpop.permute.xlu0 %2695
      %2697 = vrot.lane.b32.xlu0 %v1876, 48
      %v2698 = vpop.permute.xlu0 %2697
      %2699 = vrot.lane.b32.xlu0 %v1953, 48
      %v2700 = vpop.permute.xlu0 %2699
      %2701 = vrot.lane.b32.xlu0 %v1879, 48
      %v2702 = vpop.permute.xlu0 %2701
      %2703 = vrot.lane.b32.xlu0 %v1954, 48
      %v2704 = vpop.permute.xlu0 %2703
      %2705 = vrot.lane.b32.xlu0 %v1882, 48
      %v2706 = vpop.permute.xlu0 %2705
      %2707 = vrot.lane.b32.xlu0 %v1955, 48
      %v2708 = vpop.permute.xlu0 %2707
      %2709 = vrot.lane.b32.xlu0 %v1885, 48
      %v2710 = vpop.permute.xlu0 %2709
      %2711 = vrot.lane.b32.xlu0 %v1956, 48
      %v2712 = vpop.permute.xlu0 %2711
      %2713 = vrot.lane.b32.xlu0 %v1888, 48
      %v2714 = vpop.permute.xlu0 %2713
      %2715 = vrot.lane.b32.xlu0 %v1957, 48
      %v2716 = vpop.permute.xlu0 %2715
      %2717 = vrot.lane.b32.xlu0 %v1891, 48
      %v2718 = vpop.permute.xlu0 %2717
      %2719 = vrot.lane.b32.xlu0 %v1941, 48
      %v2720 = vpop.permute.xlu0 %2719
      %2721 = vrot.lane.b32.xlu0 %v1843, 48
      %v2722 = vpop.permute.xlu0 %2721
      %2755 = vrot.lane.b32.xlu0 %v2019, 56
      %v2756 = vpop.permute.xlu0 %2755
      %2757 = vrot.lane.b32.xlu0 %v2021, 56
      %v2758 = vpop.permute.xlu0 %2757
      %2759 = vrot.lane.b32.xlu0 %v2024, 56
      %v2760 = vpop.permute.xlu0 %2759
      %2761 = vrot.lane.b32.xlu0 %v2026, 56
      %v2762 = vpop.permute.xlu0 %2761
      %2763 = vrot.lane.b32.xlu0 %v2029, 56
      %v2764 = vpop.permute.xlu0 %2763
      %2765 = vrot.lane.b32.xlu0 %v2031, 56
      %v2766 = vpop.permute.xlu0 %2765
      %2767 = vrot.lane.b32.xlu0 %v2034, 56
      %v2768 = vpop.permute.xlu0 %2767
      %2769 = vrot.lane.b32.xlu0 %v2036, 56
      %v2770 = vpop.permute.xlu0 %2769
      %2771 = vrot.lane.b32.xlu0 %v2039, 56
      %v2772 = vpop.permute.xlu0 %2771
      %2773 = vrot.lane.b32.xlu0 %v2041, 56
      %v2774 = vpop.permute.xlu0 %2773
      %2775 = vrot.lane.b32.xlu0 %v2044, 56
      %v2776 = vpop.permute.xlu0 %2775
      %2777 = vrot.lane.b32.xlu0 %v2046, 56
      %v2778 = vpop.permute.xlu0 %2777
      %2779 = vrot.lane.b32.xlu0 %v2049, 56
      %v2780 = vpop.permute.xlu0 %2779
      %2781 = vrot.lane.b32.xlu0 %v2051, 56
      %v2782 = vpop.permute.xlu0 %2781
      %2783 = vrot.lane.b32.xlu0 %v2054, 56
      %v2784 = vpop.permute.xlu0 %2783
      %2785 = vrot.lane.b32.xlu0 %v2056, 56
      %v2786 = vpop.permute.xlu0 %2785
      %2787 = vrot.lane.b32.xlu0 %v2059, 56
      %v2788 = vpop.permute.xlu0 %2787
      %2789 = vrot.lane.b32.xlu0 %v2061, 56
      %v2790 = vpop.permute.xlu0 %2789
      %2791 = vrot.lane.b32.xlu0 %v2064, 56
      %v2792 = vpop.permute.xlu0 %2791
      %2793 = vrot.lane.b32.xlu0 %v2066, 56
      %v2794 = vpop.permute.xlu0 %2793
      %2795 = vrot.lane.b32.xlu0 %v2069, 56
      %v2796 = vpop.permute.xlu0 %2795
      %2797 = vrot.lane.b32.xlu0 %v2071, 56
      %v2798 = vpop.permute.xlu0 %2797
      %2799 = vrot.lane.b32.xlu0 %v2074, 56
      %v2800 = vpop.permute.xlu0 %2799
      %2801 = vrot.lane.b32.xlu0 %v2076, 56
      %v2802 = vpop.permute.xlu0 %2801
      %2803 = vrot.lane.b32.xlu0 %v2079, 56
      %v2804 = vpop.permute.xlu0 %2803
      %2805 = vrot.lane.b32.xlu0 %v2081, 56
      %v2806 = vpop.permute.xlu0 %2805
      %2807 = vrot.lane.b32.xlu0 %v2084, 56
      %v2808 = vpop.permute.xlu0 %2807
      %2809 = vrot.lane.b32.xlu0 %v2086, 56
      %v2810 = vpop.permute.xlu0 %2809
      %2811 = vrot.lane.b32.xlu0 %v2171, 56
      %v2812 = vpop.permute.xlu0 %2811
      %2813 = vrot.lane.b32.xlu0 %v2173, 56
      %v2814 = vpop.permute.xlu0 %2813
      %2815 = vrot.lane.b32.xlu0 %v2009, 56
      %v2816 = vpop.permute.xlu0 %2815
      %2817 = vrot.lane.b32.xlu0 %v2011, 56
      %v2818 = vpop.permute.xlu0 %2817
      %2851 = vrot.lane.b32.xlu0 %v2099, 64
      %v2852 = vpop.permute.xlu0 %2851
      %2853 = vrot.lane.b32.xlu0 %v2101, 64
      %v2854 = vpop.permute.xlu0 %2853
      %2855 = vrot.lane.b32.xlu0 %v2104, 64
      %v2856 = vpop.permute.xlu0 %2855
      %2857 = vrot.lane.b32.xlu0 %v2106, 64
      %v2858 = vpop.permute.xlu0 %2857
      %2859 = vrot.lane.b32.xlu0 %v2109, 64
      %v2860 = vpop.permute.xlu0 %2859
      %2861 = vrot.lane.b32.xlu0 %v2111, 64
      %v2862 = vpop.permute.xlu0 %2861
      %2863 = vrot.lane.b32.xlu0 %v2114, 64
      %v2864 = vpop.permute.xlu0 %2863
      %2865 = vrot.lane.b32.xlu0 %v2116, 64
      %v2866 = vpop.permute.xlu0 %2865
      %2867 = vrot.lane.b32.xlu0 %v2119, 64
      %v2868 = vpop.permute.xlu0 %2867
      %2869 = vrot.lane.b32.xlu0 %v2121, 64
      %v2870 = vpop.permute.xlu0 %2869
      %2871 = vrot.lane.b32.xlu0 %v2124, 64
      %v2872 = vpop.permute.xlu0 %2871
      %2873 = vrot.lane.b32.xlu0 %v2126, 64
      %v2874 = vpop.permute.xlu0 %2873
      %2875 = vrot.lane.b32.xlu0 %v2129, 64
      %v2876 = vpop.permute.xlu0 %2875
      %2877 = vrot.lane.b32.xlu0 %v2131, 64
      %v2878 = vpop.permute.xlu0 %2877
      %2879 = vrot.lane.b32.xlu0 %v2134, 64
      %v2880 = vpop.permute.xlu0 %2879
      %2881 = vrot.lane.b32.xlu0 %v2136, 64
      %v2882 = vpop.permute.xlu0 %2881
      %2883 = vrot.lane.b32.xlu0 %v2139, 64
      %v2884 = vpop.permute.xlu0 %2883
      %2885 = vrot.lane.b32.xlu0 %v2141, 64
      %v2886 = vpop.permute.xlu0 %2885
      %2887 = vrot.lane.b32.xlu0 %v2144, 64
      %v2888 = vpop.permute.xlu0 %2887
      %2889 = vrot.lane.b32.xlu0 %v2146, 64
      %v2890 = vpop.permute.xlu0 %2889
      %2891 = vrot.lane.b32.xlu0 %v2149, 64
      %v2892 = vpop.permute.xlu0 %2891
      %2893 = vrot.lane.b32.xlu0 %v2151, 64
      %v2894 = vpop.permute.xlu0 %2893
      %2895 = vrot.lane.b32.xlu0 %v2154, 64
      %v2896 = vpop.permute.xlu0 %2895
      %2897 = vrot.lane.b32.xlu0 %v2156, 64
      %v2898 = vpop.permute.xlu0 %2897
      %2899 = vrot.lane.b32.xlu0 %v2159, 64
      %v2900 = vpop.permute.xlu0 %2899
      %2901 = vrot.lane.b32.xlu0 %v2161, 64
      %v2902 = vpop.permute.xlu0 %2901
      %2903 = vrot.lane.b32.xlu0 %v2164, 64
      %v2904 = vpop.permute.xlu0 %2903
      %2905 = vrot.lane.b32.xlu0 %v2166, 64
      %v2906 = vpop.permute.xlu0 %2905
      %2907 = vrot.lane.b32.xlu0 %v2176, 64
      %v2908 = vpop.permute.xlu0 %2907
      %2909 = vrot.lane.b32.xlu0 %v2178, 64
      %v2910 = vpop.permute.xlu0 %2909
      %2911 = vrot.lane.b32.xlu0 %v2089, 64
      %v2912 = vpop.permute.xlu0 %2911
      %2913 = vrot.lane.b32.xlu0 %v2091, 64
      %v2914 = vpop.permute.xlu0 %2913
      %v2947 = vsel %vm1354, %v1941, %v2180
      %v2948 = vsel %vm1354, %v1843, %v2182
      %v2949 = vsel %vm1354, %v1942, %v2184
      %v2950 = vsel %vm1354, %v1846, %v2186
      %v2951 = vsel %vm1354, %v1943, %v2188
      %v2952 = vsel %vm1354, %v1849, %v2190
      %v2953 = vsel %vm1354, %v1944, %v2192
      %v2954 = vsel %vm1354, %v1852, %v2194
      %v2955 = vsel %vm1354, %v1945, %v2196
      %v2956 = vsel %vm1354, %v1855, %v2198
      %v2957 = vsel %vm1354, %v1946, %v2200
      %v2958 = vsel %vm1354, %v1858, %v2202
      %v2959 = vsel %vm1354, %v1947, %v2204
      %v2960 = vsel %vm1354, %v1861, %v2206
      %v2961 = vsel %vm1354, %v1948, %v2208
      %v2962 = vsel %vm1354, %v1864, %v2210
      %v2963 = vsel %vm1354, %v1949, %v2212
      %v2964 = vsel %vm1354, %v1867, %v2214
      %v2965 = vsel %vm1354, %v1950, %v2216
      %v2966 = vsel %vm1354, %v1870, %v2218
      %v2967 = vsel %vm1354, %v1951, %v2220
      %v2968 = vsel %vm1354, %v1873, %v2222
      %v2969 = vsel %vm1354, %v1952, %v2224
      %v2970 = vsel %vm1354, %v1876, %v2226
      %v2971 = vsel %vm1354, %v1953, %v2228
      %v2972 = vsel %vm1354, %v1879, %v2230
      %v2973 = vsel %vm1354, %v1954, %v2232
      %v2974 = vsel %vm1354, %v1882, %v2234
      %v2975 = vsel %vm1354, %v1955, %v2236
      %v2976 = vsel %vm1354, %v1885, %v2238
      %v2977 = vsel %vm1354, %v1956, %v2240
      %v2978 = vsel %vm1354, %v1888, %v2242
      %v2979 = vsel %vm1420, %v2947, %v2276
      %v2980 = vsel %vm1420, %v2948, %v2278
      %v2981 = vsel %vm1420, %v2949, %v2280
      %v2982 = vsel %vm1420, %v2950, %v2282
      %v2983 = vsel %vm1420, %v2951, %v2284
      %v2984 = vsel %vm1420, %v2952, %v2286
      %v2985 = vsel %vm1420, %v2953, %v2288
      %v2986 = vsel %vm1420, %v2954, %v2290
      %v2987 = vsel %vm1420, %v2955, %v2292
      %v2988 = vsel %vm1420, %v2956, %v2294
      %v2989 = vsel %vm1420, %v2957, %v2296
      %v2990 = vsel %vm1420, %v2958, %v2298
      %v2991 = vsel %vm1420, %v2959, %v2300
      %v2992 = vsel %vm1420, %v2960, %v2302
      %v2993 = vsel %vm1420, %v2961, %v2304
      %v2994 = vsel %vm1420, %v2962, %v2306
      %v2995 = vsel %vm1420, %v2963, %v2308
      %v2996 = vsel %vm1420, %v2964, %v2310
      %v2997 = vsel %vm1420, %v2965, %v2312
      %v2998 = vsel %vm1420, %v2966, %v2314
      %v2999 = vsel %vm1420, %v2967, %v2316
      %v3000 = vsel %vm1420, %v2968, %v2318
      %v3001 = vsel %vm1420, %v2969, %v2320
      %v3002 = vsel %vm1420, %v2970, %v2322
      %v3003 = vsel %vm1420, %v2971, %v2324
      %v3004 = vsel %vm1420, %v2972, %v2326
      %v3005 = vsel %vm1420, %v2973, %v2328
      %v3006 = vsel %vm1420, %v2974, %v2330
      %v3007 = vsel %vm1420, %v2975, %v2332
      %v3008 = vsel %vm1420, %v2976, %v2334
      %v3009 = vsel %vm1420, %v2977, %v2336
      %v3010 = vsel %vm1420, %v2978, %v2338
      %v3011 = vsel %vm1486, %v2979, %v2372
      %v3012 = vsel %vm1486, %v2980, %v2374
      %v3013 = vsel %vm1486, %v2981, %v2376
      %v3014 = vsel %vm1486, %v2982, %v2378
      %v3015 = vsel %vm1486, %v2983, %v2380
      %v3016 = vsel %vm1486, %v2984, %v2382
      %v3017 = vsel %vm1486, %v2985, %v2384
      %v3018 = vsel %vm1486, %v2986, %v2386
      %v3019 = vsel %vm1486, %v2987, %v2388
      %v3020 = vsel %vm1486, %v2988, %v2390
      %v3021 = vsel %vm1486, %v2989, %v2392
      %v3022 = vsel %vm1486, %v2990, %v2394
      %v3023 = vsel %vm1486, %v2991, %v2396
      %v3024 = vsel %vm1486, %v2992, %v2398
      %v3025 = vsel %vm1486, %v2993, %v2400
      %v3026 = vsel %vm1486, %v2994, %v2402
      %v3027 = vsel %vm1486, %v2995, %v2404
      %v3028 = vsel %vm1486, %v2996, %v2406
      %v3029 = vsel %vm1486, %v2997, %v2408
      %v3030 = vsel %vm1486, %v2998, %v2410
      %v3031 = vsel %vm1486, %v2999, %v2412
      %v3032 = vsel %vm1486, %v3000, %v2414
      %v3033 = vsel %vm1486, %v3001, %v2416
      %v3034 = vsel %vm1486, %v3002, %v2418
      %v3035 = vsel %vm1486, %v3003, %v2420
      %v3036 = vsel %vm1486, %v3004, %v2422
      %v3037 = vsel %vm1486, %v3005, %v2424
      %v3038 = vsel %vm1486, %v3006, %v2426
      %v3039 = vsel %vm1486, %v3007, %v2428
      %v3040 = vsel %vm1486, %v3008, %v2430
      %v3041 = vsel %vm1486, %v3009, %v2432
      %v3042 = vsel %vm1486, %v3010, %v2434
      %v3043 = vsel %vm1552, %v3011, %v2468
      %v3044 = vsel %vm1552, %v3012, %v2470
      %v3045 = vsel %vm1552, %v3013, %v2472
      %v3046 = vsel %vm1552, %v3014, %v2474
      %v3047 = vsel %vm1552, %v3015, %v2476
      %v3048 = vsel %vm1552, %v3016, %v2478
      %v3049 = vsel %vm1552, %v3017, %v2480
      %v3050 = vsel %vm1552, %v3018, %v2482
      %v3051 = vsel %vm1552, %v3019, %v2484
      %v3052 = vsel %vm1552, %v3020, %v2486
      %v3053 = vsel %vm1552, %v3021, %v2488
      %v3054 = vsel %vm1552, %v3022, %v2490
      %v3055 = vsel %vm1552, %v3023, %v2492
      %v3056 = vsel %vm1552, %v3024, %v2494
      %v3057 = vsel %vm1552, %v3025, %v2496
      %v3058 = vsel %vm1552, %v3026, %v2498
      %v3059 = vsel %vm1552, %v3027, %v2500
      %v3060 = vsel %vm1552, %v3028, %v2502
      %v3061 = vsel %vm1552, %v3029, %v2504
      %v3062 = vsel %vm1552, %v3030, %v2506
      %v3063 = vsel %vm1552, %v3031, %v2508
      %v3064 = vsel %vm1552, %v3032, %v2510
      %v3065 = vsel %vm1552, %v3033, %v2512
      %v3066 = vsel %vm1552, %v3034, %v2514
      %v3067 = vsel %vm1552, %v3035, %v2516
      %v3068 = vsel %vm1552, %v3036, %v2518
      %v3069 = vsel %vm1552, %v3037, %v2520
      %v3070 = vsel %vm1552, %v3038, %v2522
      %v3071 = vsel %vm1552, %v3039, %v2524
      %v3072 = vsel %vm1552, %v3040, %v2526
      %v3073 = vsel %vm1552, %v3041, %v2528
      %v3074 = vsel %vm1552, %v3042, %v2530
      %vm3075 = vcmask 326656
      %v3076 = vsel %vm3075, %v3043, %v2564
      %v3077 = vsel %vm3075, %v3044, %v2566
      %v3078 = vsel %vm3075, %v3045, %v2568
      %v3079 = vsel %vm3075, %v3046, %v2570
      %v3080 = vsel %vm3075, %v3047, %v2572
      %v3081 = vsel %vm3075, %v3048, %v2574
      %v3082 = vsel %vm3075, %v3049, %v2576
      %v3083 = vsel %vm3075, %v3050, %v2578
      %v3084 = vsel %vm3075, %v3051, %v2580
      %v3085 = vsel %vm3075, %v3052, %v2582
      %v3086 = vsel %vm3075, %v3053, %v2584
      %v3087 = vsel %vm3075, %v3054, %v2586
      %v3088 = vsel %vm3075, %v3055, %v2588
      %v3089 = vsel %vm3075, %v3056, %v2590
      %v3090 = vsel %vm3075, %v3057, %v2592
      %v3091 = vsel %vm3075, %v3058, %v2594
      %v3092 = vsel %vm3075, %v3059, %v2596
      %v3093 = vsel %vm3075, %v3060, %v2598
      %v3094 = vsel %vm3075, %v3061, %v2600
      %v3095 = vsel %vm3075, %v3062, %v2602
      %v3096 = vsel %vm3075, %v3063, %v2604
      %v3097 = vsel %vm3075, %v3064, %v2606
      %v3098 = vsel %vm3075, %v3065, %v2608
      %v3099 = vsel %vm3075, %v3066, %v2610
      %v3100 = vsel %vm3075, %v3067, %v2612
      %v3101 = vsel %vm3075, %v3068, %v2614
      %v3102 = vsel %vm3075, %v3069, %v2616
      %v3103 = vsel %vm3075, %v3070, %v2618
      %v3104 = vsel %vm3075, %v3071, %v2620
      %v3105 = vsel %vm3075, %v3072, %v2622
      %v3106 = vsel %vm3075, %v3073, %v2624
      %v3107 = vsel %vm3075, %v3074, %v2626
      %vm3108 = vcmask 392192
      %v3109 = vsel %vm3108, %v3076, %v2660
      %v3110 = vsel %vm3108, %v3077, %v2662
      %v3111 = vsel %vm3108, %v3078, %v2664
      %v3112 = vsel %vm3108, %v3079, %v2666
      %v3113 = vsel %vm3108, %v3080, %v2668
      %v3114 = vsel %vm3108, %v3081, %v2670
      %v3115 = vsel %vm3108, %v3082, %v2672
      %v3116 = vsel %vm3108, %v3083, %v2674
      %v3117 = vsel %vm3108, %v3084, %v2676
      %v3118 = vsel %vm3108, %v3085, %v2678
      %v3119 = vsel %vm3108, %v3086, %v2680
      %v3120 = vsel %vm3108, %v3087, %v2682
      %v3121 = vsel %vm3108, %v3088, %v2684
      %v3122 = vsel %vm3108, %v3089, %v2686
      %v3123 = vsel %vm3108, %v3090, %v2688
      %v3124 = vsel %vm3108, %v3091, %v2690
      %v3125 = vsel %vm3108, %v3092, %v2692
      %v3126 = vsel %vm3108, %v3093, %v2694
      %v3127 = vsel %vm3108, %v3094, %v2696
      %v3128 = vsel %vm3108, %v3095, %v2698
      %v3129 = vsel %vm3108, %v3096, %v2700
      %v3130 = vsel %vm3108, %v3097, %v2702
      %v3131 = vsel %vm3108, %v3098, %v2704
      %v3132 = vsel %vm3108, %v3099, %v2706
      %v3133 = vsel %vm3108, %v3100, %v2708
      %v3134 = vsel %vm3108, %v3101, %v2710
      %v3135 = vsel %vm3108, %v3102, %v2712
      %v3136 = vsel %vm3108, %v3103, %v2714
      %v3137 = vsel %vm3108, %v3104, %v2716
      %v3138 = vsel %vm3108, %v3105, %v2718
      %v3139 = vsel %vm3108, %v3106, %v2720
      %v3140 = vsel %vm3108, %v3107, %v2722
      %vm3141 = vcmask 457728
      %v3142 = vsel %vm3141, %v3109, %v2756
      %v3143 = vsel %vm3141, %v3110, %v2758
      %v3144 = vsel %vm3141, %v3111, %v2760
      %v3145 = vsel %vm3141, %v3112, %v2762
      %v3146 = vsel %vm3141, %v3113, %v2764
      %v3147 = vsel %vm3141, %v3114, %v2766
      %v3148 = vsel %vm3141, %v3115, %v2768
      %v3149 = vsel %vm3141, %v3116, %v2770
      %v3150 = vsel %vm3141, %v3117, %v2772
      %v3151 = vsel %vm3141, %v3118, %v2774
      %v3152 = vsel %vm3141, %v3119, %v2776
      %v3153 = vsel %vm3141, %v3120, %v2778
      %v3154 = vsel %vm3141, %v3121, %v2780
      %v3155 = vsel %vm3141, %v3122, %v2782
      %v3156 = vsel %vm3141, %v3123, %v2784
      %v3157 = vsel %vm3141, %v3124, %v2786
      %v3158 = vsel %vm3141, %v3125, %v2788
      %v3159 = vsel %vm3141, %v3126, %v2790
      %v3160 = vsel %vm3141, %v3127, %v2792
      %v3161 = vsel %vm3141, %v3128, %v2794
      %v3162 = vsel %vm3141, %v3129, %v2796
      %v3163 = vsel %vm3141, %v3130, %v2798
      %v3164 = vsel %vm3141, %v3131, %v2800
      %v3165 = vsel %vm3141, %v3132, %v2802
      %v3166 = vsel %vm3141, %v3133, %v2804
      %v3167 = vsel %vm3141, %v3134, %v2806
      %v3168 = vsel %vm3141, %v3135, %v2808
      %v3169 = vsel %vm3141, %v3136, %v2810
      %v3170 = vsel %vm3141, %v3137, %v2812
      %v3171 = vsel %vm3141, %v3138, %v2814
      %v3172 = vsel %vm3141, %v3139, %v2816
      %v3173 = vsel %vm3141, %v3140, %v2818
      %vm3174 = vcmask 523264
      %v3175 = vsel %vm3174, %v3142, %v2852
      %v3176 = vsel %vm3174, %v3143, %v2854
      %v3177 = vsel %vm3174, %v3144, %v2856
      %v3178 = vsel %vm3174, %v3145, %v2858
      %v3179 = vsel %vm3174, %v3146, %v2860
      %v3180 = vsel %vm3174, %v3147, %v2862
      %v3181 = vsel %vm3174, %v3148, %v2864
      %v3182 = vsel %vm3174, %v3149, %v2866
      %v3183 = vsel %vm3174, %v3150, %v2868
      %v3184 = vsel %vm3174, %v3151, %v2870
      %v3185 = vsel %vm3174, %v3152, %v2872
      %v3186 = vsel %vm3174, %v3153, %v2874
      %v3187 = vsel %vm3174, %v3154, %v2876
      %v3188 = vsel %vm3174, %v3155, %v2878
      %v3189 = vsel %vm3174, %v3156, %v2880
      %v3190 = vsel %vm3174, %v3157, %v2882
      %v3191 = vsel %vm3174, %v3158, %v2884
      %v3192 = vsel %vm3174, %v3159, %v2886
      %v3193 = vsel %vm3174, %v3160, %v2888
      %v3194 = vsel %vm3174, %v3161, %v2890
      %v3195 = vsel %vm3174, %v3162, %v2892
      %v3196 = vsel %vm3174, %v3163, %v2894
      %v3197 = vsel %vm3174, %v3164, %v2896
      %v3198 = vsel %vm3174, %v3165, %v2898
      %v3199 = vsel %vm3174, %v3166, %v2900
      %v3200 = vsel %vm3174, %v3167, %v2902
      %v3201 = vsel %vm3174, %v3168, %v2904
      %v3202 = vsel %vm3174, %v3169, %v2906
      %v3203 = vsel %vm3174, %v3170, %v2908
      %v3204 = vsel %vm3174, %v3171, %v2910
      %v3205 = vsel %vm3174, %v3172, %v2912
      %v3206 = vsel %vm3174, %v3173, %v2914
      %v3207 = vld [vmem:[%s3] sm:$0xff]
      %v3208 = vld [vmem:[%s3 + $0x8] sm:$0xff]
      %v3209 = vld [vmem:[%s3 + $0x10] sm:$0xff]
      %v3210 = vld [vmem:[%s3 + $0x18] sm:$0xff]
      %v3211 = vld [vmem:[%s3 + $0x20] sm:$0xff]
      %v3212 = vld [vmem:[%s3 + $0x28] sm:$0xff]
      %v3213 = vld [vmem:[%s3 + $0x30] sm:$0xff]
      %v3214 = vld [vmem:[%s3 + $0x38] sm:$0xff]
      %v3215 = vld [vmem:[%s3 + $0x40] sm:$0xff]
      %v3216 = vld [vmem:[%s4] sm:$0x1]
      %v3218 = vperm.slane %v3216, 0
      %vm3220 = vcmask 588800
      %v3222 = vsel %vm3220, %v3175, 0
      %v3225 = vsel %vm3220, %v3176, 0
      %v3228 = vsel %vm3220, %v3177, 0
      %v3231 = vsel %vm3220, %v3178, 0
      %v3234 = vsel %vm3220, %v3179, 0
      %v3237 = vsel %vm3220, %v3180, 0
      %v3240 = vsel %vm3220, %v3181, 0
      %v3243 = vsel %vm3220, %v3182, 0
      %v3246 = vsel %vm3220, %v3183, 0
      %v3249 = vsel %vm3220, %v3184, 0
      %v3252 = vsel %vm3220, %v3185, 0
      %v3255 = vsel %vm3220, %v3186, 0
      %v3258 = vsel %vm3220, %v3187, 0
      %v3261 = vsel %vm3220, %v3188, 0
      %v3264 = vsel %vm3220, %v3189, 0
      %v3267 = vsel %vm3220, %v3190, 0
      %v3270 = vsel %vm3220, %v3191, 0
      %v3273 = vsel %vm3220, %v3192, 0
      %v3276 = vsel %vm3220, %v3193, 0
      %v3279 = vsel %vm3220, %v3194, 0
      %v3282 = vsel %vm3220, %v3195, 0
      %v3285 = vsel %vm3220, %v3196, 0
      %v3288 = vsel %vm3220, %v3197, 0
      %v3291 = vsel %vm3220, %v3198, 0
      %v3294 = vsel %vm3220, %v3199, 0
      %v3297 = vsel %vm3220, %v3200, 0
      %v3300 = vsel %vm3220, %v3201, 0
      %v3303 = vsel %vm3220, %v3202, 0
      %v3306 = vsel %vm3220, %v3203, 0
      %v3309 = vsel %vm3220, %v3204, 0
      %v3312 = vsel %vm3220, %v3205, 0
      %v3315 = vsel %vm3220, %v3206, 0
      %3317 = vmatpush.msra.mxu0 0.0
      %3318 = vmatpush.msra.mxu0 0.0
      %3319 = vmatpush.msra.mxu0 0.0
      %3320 = vmatpush.msra.mxu0 0.0
      %3321 = vmatpush.msra.mxu0 0.0
      %3322 = vmatpush.msra.mxu0 0.0
      %3323 = vmatpush.msra.mxu0 0.0
      %3324 = vmatpush.msra.mxu0 %v3215
      %3325 = vmatpush.msra.mxu0 %v3214
      %3326 = vmatpush.msra.mxu0 %v3213
      %3327 = vmatpush.msra.mxu0 %v3212
      %3328 = vmatpush.msra.mxu0 %v3211
      %3329 = vmatpush.msra.mxu0 %v3210
      %3330 = vmatpush.msra.mxu0 %v3209
      %3331 = vmatpush.msra.mxu0 %v3208
      %3332 = vmatpush.msra.mxu0 %v3207
      %3333 = vmatmul.f32.gmra.mxu0 %v3222
      %v3334 = vpop.f32.mrf.mxu0
      %v3335 = vadd.f32 %v3218, %v3334
      %3336 = vmatmul.f32.gmra.mxu0 %v3225
      %v3337 = vpop.f32.mrf.mxu0
      %v3338 = vadd.f32 %v3218, %v3337
      %3339 = vmatmul.f32.gmra.mxu0 %v3228
      %v3340 = vpop.f32.mrf.mxu0
      %v3341 = vadd.f32 %v3218, %v3340
      %3342 = vmatmul.f32.gmra.mxu0 %v3231
      %v3343 = vpop.f32.mrf.mxu0
      %v3344 = vadd.f32 %v3218, %v3343
      %3345 = vmatmul.f32.gmra.mxu0 %v3234
      %v3346 = vpop.f32.mrf.mxu0
      %v3347 = vadd.f32 %v3218, %v3346
      %3348 = vmatmul.f32.gmra.mxu0 %v3237
      %v3349 = vpop.f32.mrf.mxu0
      %v3350 = vadd.f32 %v3218, %v3349
      %3351 = vmatmul.f32.gmra.mxu0 %v3240
      %v3352 = vpop.f32.mrf.mxu0
      %v3353 = vadd.f32 %v3218, %v3352
      %3354 = vmatmul.f32.gmra.mxu0 %v3243
      %v3355 = vpop.f32.mrf.mxu0
      %v3356 = vadd.f32 %v3218, %v3355
      %3357 = vmatmul.f32.gmra.mxu0 %v3246
      %v3358 = vpop.f32.mrf.mxu0
      %v3359 = vadd.f32 %v3218, %v3358
      %3360 = vmatmul.f32.gmra.mxu0 %v3249
      %v3361 = vpop.f32.mrf.mxu0
      %v3362 = vadd.f32 %v3218, %v3361
      %3363 = vmatmul.f32.gmra.mxu0 %v3252
      %v3364 = vpop.f32.mrf.mxu0
      %v3365 = vadd.f32 %v3218, %v3364
      %3366 = vmatmul.f32.gmra.mxu0 %v3255
      %v3367 = vpop.f32.mrf.mxu0
      %v3368 = vadd.f32 %v3218, %v3367
      %3369 = vmatmul.f32.gmra.mxu0 %v3258
      %v3370 = vpop.f32.mrf.mxu0
      %v3371 = vadd.f32 %v3218, %v3370
      %3372 = vmatmul.f32.gmra.mxu0 %v3261
      %v3373 = vpop.f32.mrf.mxu0
      %v3374 = vadd.f32 %v3218, %v3373
      %3375 = vmatmul.f32.gmra.mxu0 %v3264
      %v3376 = vpop.f32.mrf.mxu0
      %v3377 = vadd.f32 %v3218, %v3376
      %3378 = vmatmul.f32.gmra.mxu0 %v3267
      %v3379 = vpop.f32.mrf.mxu0
      %v3380 = vadd.f32 %v3218, %v3379
      %3381 = vmatmul.f32.gmra.mxu0 %v3270
      %v3382 = vpop.f32.mrf.mxu0
      %v3383 = vadd.f32 %v3218, %v3382
      %3384 = vmatmul.f32.gmra.mxu0 %v3273
      %v3385 = vpop.f32.mrf.mxu0
      %v3386 = vadd.f32 %v3218, %v3385
      %3387 = vmatmul.f32.gmra.mxu0 %v3276
      %v3388 = vpop.f32.mrf.mxu0
      %v3389 = vadd.f32 %v3218, %v3388
      %3390 = vmatmul.f32.gmra.mxu0 %v3279
      %v3391 = vpop.f32.mrf.mxu0
      %v3392 = vadd.f32 %v3218, %v3391
      %3393 = vmatmul.f32.gmra.mxu0 %v3282
      %v3394 = vpop.f32.mrf.mxu0
      %v3395 = vadd.f32 %v3218, %v3394
      %3396 = vmatmul.f32.gmra.mxu0 %v3285
      %v3397 = vpop.f32.mrf.mxu0
      %v3398 = vadd.f32 %v3218, %v3397
      %3399 = vmatmul.f32.gmra.mxu0 %v3288
      %v3400 = vpop.f32.mrf.mxu0
      %v3401 = vadd.f32 %v3218, %v3400
      %3402 = vmatmul.f32.gmra.mxu0 %v3291
      %v3403 = vpop.f32.mrf.mxu0
      %v3404 = vadd.f32 %v3218, %v3403
      %3405 = vmatmul.f32.gmra.mxu0 %v3294
      %v3406 = vpop.f32.mrf.mxu0
      %v3407 = vadd.f32 %v3218, %v3406
      %3408 = vmatmul.f32.gmra.mxu0 %v3297
      %v3409 = vpop.f32.mrf.mxu0
      %v3410 = vadd.f32 %v3218, %v3409
      %3411 = vmatmul.f32.gmra.mxu0 %v3300
      %v3412 = vpop.f32.mrf.mxu0
      %v3413 = vadd.f32 %v3218, %v3412
      %3414 = vmatmul.f32.gmra.mxu0 %v3303
      %v3415 = vpop.f32.mrf.mxu0
      %v3416 = vadd.f32 %v3218, %v3415
      %3417 = vmatmul.f32.gmra.mxu0 %v3306
      %v3418 = vpop.f32.mrf.mxu0
      %v3419 = vadd.f32 %v3218, %v3418
      %3420 = vmatmul.f32.gmra.mxu0 %v3309
      %v3421 = vpop.f32.mrf.mxu0
      %v3422 = vadd.f32 %v3218, %v3421
      %3423 = vmatmul.f32.gmra.mxu0 %v3312
      %v3424 = vpop.f32.mrf.mxu0
      %v3425 = vadd.f32 %v3218, %v3424
      %3426 = vmatmul.f32.gmra.mxu0 %v3315
      %v3427 = vpop.f32.mrf.mxu0
      %v3428 = vadd.f32 %v3218, %v3427
      %3429 = vdwg.mxu0
      %vm3430 = vcmp.ge.f32.partialorder %v3335, 0.0
      %vm3431 = vcmp.ge.f32.partialorder %v3338, 0.0
      %vm3432 = vcmp.ge.f32.partialorder %v3341, 0.0
      %vm3433 = vcmp.ge.f32.partialorder %v3344, 0.0
      %vm3434 = vcmp.ge.f32.partialorder %v3347, 0.0
      %vm3435 = vcmp.ge.f32.partialorder %v3350, 0.0
      %vm3436 = vcmp.ge.f32.partialorder %v3353, 0.0
      %vm3437 = vcmp.ge.f32.partialorder %v3356, 0.0
      %vm3438 = vcmp.ge.f32.partialorder %v3359, 0.0
      %vm3439 = vcmp.ge.f32.partialorder %v3362, 0.0
      %vm3440 = vcmp.ge.f32.partialorder %v3365, 0.0
      %vm3441 = vcmp.ge.f32.partialorder %v3368, 0.0
      %vm3442 = vcmp.ge.f32.partialorder %v3371, 0.0
      %vm3443 = vcmp.ge.f32.partialorder %v3374, 0.0
      %vm3444 = vcmp.ge.f32.partialorder %v3377, 0.0
      %vm3445 = vcmp.ge.f32.partialorder %v3380, 0.0
      %vm3446 = vcmp.ge.f32.partialorder %v3383, 0.0
      %vm3447 = vcmp.ge.f32.partialorder %v3386, 0.0
      %vm3448 = vcmp.ge.f32.partialorder %v3389, 0.0
      %vm3449 = vcmp.ge.f32.partialorder %v3392, 0.0
      %vm3450 = vcmp.ge.f32.partialorder %v3395, 0.0
      %vm3451 = vcmp.ge.f32.partialorder %v3398, 0.0
      %vm3452 = vcmp.ge.f32.partialorder %v3401, 0.0
      %vm3453 = vcmp.ge.f32.partialorder %v3404, 0.0
      %vm3454 = vcmp.ge.f32.partialorder %v3407, 0.0
      %vm3455 = vcmp.ge.f32.partialorder %v3410, 0.0
      %vm3456 = vcmp.ge.f32.partialorder %v3413, 0.0
      %vm3457 = vcmp.ge.f32.partialorder %v3416, 0.0
      %vm3458 = vcmp.ge.f32.partialorder %v3419, 0.0
      %vm3459 = vcmp.ge.f32.partialorder %v3422, 0.0
      %vm3460 = vcmp.ge.f32.partialorder %v3425, 0.0
      %vm3461 = vcmp.ge.f32.partialorder %v3428, 0.0
      %v3462 = vmul.f32 %v3335, 0.01
      %v3463 = vmul.f32 %v3338, 0.01
      %v3464 = vmul.f32 %v3341, 0.01
      %v3465 = vmul.f32 %v3344, 0.01
      %v3466 = vmul.f32 %v3347, 0.01
      %v3467 = vmul.f32 %v3350, 0.01
      %v3468 = vmul.f32 %v3353, 0.01
      %v3469 = vmul.f32 %v3356, 0.01
      %v3470 = vmul.f32 %v3359, 0.01
      %v3471 = vmul.f32 %v3362, 0.01
      %v3472 = vmul.f32 %v3365, 0.01
      %v3473 = vmul.f32 %v3368, 0.01
      %v3474 = vmul.f32 %v3371, 0.01
      %v3475 = vmul.f32 %v3374, 0.01
      %v3476 = vmul.f32 %v3377, 0.01
      %v3477 = vmul.f32 %v3380, 0.01
      %v3478 = vmul.f32 %v3383, 0.01
      %v3479 = vmul.f32 %v3386, 0.01
      %v3480 = vmul.f32 %v3389, 0.01
      %v3481 = vmul.f32 %v3392, 0.01
      %v3482 = vmul.f32 %v3395, 0.01
      %v3483 = vmul.f32 %v3398, 0.01
      %v3484 = vmul.f32 %v3401, 0.01
      %v3485 = vmul.f32 %v3404, 0.01
      %v3486 = vmul.f32 %v3407, 0.01
      %v3487 = vmul.f32 %v3410, 0.01
      %v3488 = vmul.f32 %v3413, 0.01
      %v3489 = vmul.f32 %v3416, 0.01
      %v3490 = vmul.f32 %v3419, 0.01
      %v3491 = vmul.f32 %v3422, 0.01
      %v3492 = vmul.f32 %v3425, 0.01
      %v3493 = vmul.f32 %v3428, 0.01
      %v3494 = vsel %vm3430, %v3335, %v3462
      %v3495 = vsel %vm3431, %v3338, %v3463
      %v3496 = vsel %vm3432, %v3341, %v3464
      %v3497 = vsel %vm3433, %v3344, %v3465
      %v3498 = vsel %vm3434, %v3347, %v3466
      %v3499 = vsel %vm3435, %v3350, %v3467
      %v3500 = vsel %vm3436, %v3353, %v3468
      %v3501 = vsel %vm3437, %v3356, %v3469
      %v3502 = vsel %vm3438, %v3359, %v3470
      %v3503 = vsel %vm3439, %v3362, %v3471
      %v3504 = vsel %vm3440, %v3365, %v3472
      %v3505 = vsel %vm3441, %v3368, %v3473
      %v3506 = vsel %vm3442, %v3371, %v3474
      %v3507 = vsel %vm3443, %v3374, %v3475
      %v3508 = vsel %vm3444, %v3377, %v3476
      %v3509 = vsel %vm3445, %v3380, %v3477
      %v3510 = vsel %vm3446, %v3383, %v3478
      %v3511 = vsel %vm3447, %v3386, %v3479
      %v3512 = vsel %vm3448, %v3389, %v3480
      %v3513 = vsel %vm3449, %v3392, %v3481
      %v3514 = vsel %vm3450, %v3395, %v3482
      %v3515 = vsel %vm3451, %v3398, %v3483
      %v3516 = vsel %vm3452, %v3401, %v3484
      %v3517 = vsel %vm3453, %v3404, %v3485
      %v3518 = vsel %vm3454, %v3407, %v3486
      %v3519 = vsel %vm3455, %v3410, %v3487
      %v3520 = vsel %vm3456, %v3413, %v3488
      %v3521 = vsel %vm3457, %v3416, %v3489
      %v3522 = vsel %vm3458, %v3419, %v3490
      %v3523 = vsel %vm3459, %v3422, %v3491
      %v3524 = vsel %vm3460, %v3425, %v3492
      %v3525 = vsel %vm3461, %v3428, %v3493
      %3526 = vst.msk [vmem:[%s258] sm:$0xff] %vm1354, %v3494
      %3527 = vst.msk [vmem:[%s258 + $0x8] sm:$0xff] %vm1354, %v3495
      %3528 = vst.msk [vmem:[%s258 + $0x10] sm:$0xff] %vm1354, %v3496
      %3529 = vst.msk [vmem:[%s258 + $0x18] sm:$0xff] %vm1354, %v3497
      %3530 = vst.msk [vmem:[%s258 + $0x20] sm:$0xff] %vm1354, %v3498
      %3531 = vst.msk [vmem:[%s258 + $0x28] sm:$0xff] %vm1354, %v3499
      %3532 = vst.msk [vmem:[%s258 + $0x30] sm:$0xff] %vm1354, %v3500
      %3533 = vst.msk [vmem:[%s258 + $0x38] sm:$0xff] %vm1354, %v3501
      %3534 = vst.msk [vmem:[%s258 + $0x40] sm:$0xff] %vm1354, %v3502
      %3535 = vst.msk [vmem:[%s258 + $0x48] sm:$0xff] %vm1354, %v3503
      %3536 = vst.msk [vmem:[%s258 + $0x50] sm:$0xff] %vm1354, %v3504
      %3537 = vst.msk [vmem:[%s258 + $0x58] sm:$0xff] %vm1354, %v3505
      %3538 = vst.msk [vmem:[%s258 + $0x60] sm:$0xff] %vm1354, %v3506
      %3539 = vst.msk [vmem:[%s258 + $0x68] sm:$0xff] %vm1354, %v3507
      %3540 = vst.msk [vmem:[%s258 + $0x70] sm:$0xff] %vm1354, %v3508
      %3541 = vst.msk [vmem:[%s258 + $0x78] sm:$0xff] %vm1354, %v3509
      %3542 = vst.msk [vmem:[%s258 + $0x80] sm:$0xff] %vm1354, %v3510
      %3543 = vst.msk [vmem:[%s258 + $0x88] sm:$0xff] %vm1354, %v3511
      %3544 = vst.msk [vmem:[%s258 + $0x90] sm:$0xff] %vm1354, %v3512
      %3545 = vst.msk [vmem:[%s258 + $0x98] sm:$0xff] %vm1354, %v3513
      %3546 = vst.msk [vmem:[%s258 + $0xa0] sm:$0xff] %vm1354, %v3514
      %3547 = vst.msk [vmem:[%s258 + $0xa8] sm:$0xff] %vm1354, %v3515
      %3548 = vst.msk [vmem:[%s258 + $0xb0] sm:$0xff] %vm1354, %v3516
      %3549 = vst.msk [vmem:[%s258 + $0xb8] sm:$0xff] %vm1354, %v3517
      %3550 = vst.msk [vmem:[%s258 + $0xc0] sm:$0xff] %vm1354, %v3518
      %3551 = vst.msk [vmem:[%s258 + $0xc8] sm:$0xff] %vm1354, %v3519
      %3552 = vst.msk [vmem:[%s258 + $0xd0] sm:$0xff] %vm1354, %v3520
      %3553 = vst.msk [vmem:[%s258 + $0xd8] sm:$0xff] %vm1354, %v3521
      %3554 = vst.msk [vmem:[%s258 + $0xe0] sm:$0xff] %vm1354, %v3522
      %3555 = vst.msk [vmem:[%s258 + $0xe8] sm:$0xff] %vm1354, %v3523
      %3556 = vst.msk [vmem:[%s258 + $0xf0] sm:$0xff] %vm1354, %v3524
      %3557 = vst.msk [vmem:[%s258 + $0xf8] sm:$0xff] %vm1354, %v3525
      %v3558 = vsel %vm1354, %v3494, 0.0
      %v3559 = vsel %vm1354, %v3495, 0.0
      %v3560 = vadd.f32 %v3558, %v3559
      %v3561 = vsel %vm1354, %v3496, 0.0
      %v3562 = vadd.f32 %v3560, %v3561
      %v3563 = vsel %vm1354, %v3497, 0.0
      %v3564 = vadd.f32 %v3562, %v3563
      %v3565 = vsel %vm1354, %v3498, 0.0
      %v3566 = vadd.f32 %v3564, %v3565
      %v3567 = vsel %vm1354, %v3499, 0.0
      %v3568 = vadd.f32 %v3566, %v3567
      %v3569 = vsel %vm1354, %v3500, 0.0
      %v3570 = vadd.f32 %v3568, %v3569
      %v3571 = vsel %vm1354, %v3501, 0.0
      %v3572 = vadd.f32 %v3570, %v3571
      %v3573 = vsel %vm1354, %v3502, 0.0
      %v3574 = vadd.f32 %v3572, %v3573
      %v3575 = vsel %vm1354, %v3503, 0.0
      %v3576 = vadd.f32 %v3574, %v3575
      %v3577 = vsel %vm1354, %v3504, 0.0
      %v3578 = vadd.f32 %v3576, %v3577
      %v3579 = vsel %vm1354, %v3505, 0.0
      %v3580 = vadd.f32 %v3578, %v3579
      %v3581 = vsel %vm1354, %v3506, 0.0
      %v3582 = vadd.f32 %v3580, %v3581
      %v3583 = vsel %vm1354, %v3507, 0.0
      %v3584 = vadd.f32 %v3582, %v3583
      %v3585 = vsel %vm1354, %v3508, 0.0
      %v3586 = vadd.f32 %v3584, %v3585
      %v3587 = vsel %vm1354, %v3509, 0.0
      %v3588 = vadd.f32 %v3586, %v3587
      %v3589 = vsel %vm1354, %v3510, 0.0
      %v3590 = vadd.f32 %v3588, %v3589
      %v3591 = vsel %vm1354, %v3511, 0.0
      %v3592 = vadd.f32 %v3590, %v3591
      %v3593 = vsel %vm1354, %v3512, 0.0
      %v3594 = vadd.f32 %v3592, %v3593
      %v3595 = vsel %vm1354, %v3513, 0.0
      %v3596 = vadd.f32 %v3594, %v3595
      %v3597 = vsel %vm1354, %v3514, 0.0
      %v3598 = vadd.f32 %v3596, %v3597
      %v3599 = vsel %vm1354, %v3515, 0.0
      %v3600 = vadd.f32 %v3598, %v3599
      %v3601 = vsel %vm1354, %v3516, 0.0
      %v3602 = vadd.f32 %v3600, %v3601
      %v3603 = vsel %vm1354, %v3517, 0.0
      %v3604 = vadd.f32 %v3602, %v3603
      %v3605 = vsel %vm1354, %v3518, 0.0
      %v3606 = vadd.f32 %v3604, %v3605
      %v3607 = vsel %vm1354, %v3519, 0.0
      %v3608 = vadd.f32 %v3606, %v3607
      %v3609 = vsel %vm1354, %v3520, 0.0
      %v3610 = vadd.f32 %v3608, %v3609
      %v3611 = vsel %vm1354, %v3521, 0.0
      %v3612 = vadd.f32 %v3610, %v3611
      %v3613 = vsel %vm1354, %v3522, 0.0
      %v3614 = vadd.f32 %v3612, %v3613
      %v3615 = vsel %vm1354, %v3523, 0.0
      %v3616 = vadd.f32 %v3614, %v3615
      %v3617 = vsel %vm1354, %v3524, 0.0
      %v3618 = vadd.f32 %v3616, %v3617
      %v3619 = vsel %vm1354, %v3525, 0.0
      %v3620 = vadd.f32 %v3618, %v3619
      %v3621 = vrot.slane %v3620, 4
      %v3622 = vadd.f32 %v3620, %v3621
      %v3623 = vrot.slane %v3622, 2
      %v3624 = vadd.f32 %v3622, %v3623
      %v3625 = vrot.slane %v3624, 1
      %v3626 = vadd.f32 %v3624, %v3625
      %v3627 = vmul.f32 %v3494, %v3494
      %v3628 = vmul.f32 %v3495, %v3495
      %v3629 = vmul.f32 %v3496, %v3496
      %v3630 = vmul.f32 %v3497, %v3497
      %v3631 = vmul.f32 %v3498, %v3498
      %v3632 = vmul.f32 %v3499, %v3499
      %v3633 = vmul.f32 %v3500, %v3500
      %v3634 = vmul.f32 %v3501, %v3501
      %v3635 = vmul.f32 %v3502, %v3502
      %v3636 = vmul.f32 %v3503, %v3503
      %v3637 = vmul.f32 %v3504, %v3504
      %v3638 = vmul.f32 %v3505, %v3505
      %v3639 = vmul.f32 %v3506, %v3506
      %v3640 = vmul.f32 %v3507, %v3507
      %v3641 = vmul.f32 %v3508, %v3508
      %v3642 = vmul.f32 %v3509, %v3509
      %v3643 = vmul.f32 %v3510, %v3510
      %v3644 = vmul.f32 %v3511, %v3511
      %v3645 = vmul.f32 %v3512, %v3512
      %v3646 = vmul.f32 %v3513, %v3513
      %v3647 = vmul.f32 %v3514, %v3514
      %v3648 = vmul.f32 %v3515, %v3515
      %v3649 = vmul.f32 %v3516, %v3516
      %v3650 = vmul.f32 %v3517, %v3517
      %v3651 = vmul.f32 %v3518, %v3518
      %v3652 = vmul.f32 %v3519, %v3519
      %v3653 = vmul.f32 %v3520, %v3520
      %v3654 = vmul.f32 %v3521, %v3521
      %v3655 = vmul.f32 %v3522, %v3522
      %v3656 = vmul.f32 %v3523, %v3523
      %v3657 = vmul.f32 %v3524, %v3524
      %v3658 = vmul.f32 %v3525, %v3525
      %v3659 = vsel %vm1354, %v3627, 0.0
      %v3660 = vsel %vm1354, %v3628, 0.0
      %v3661 = vadd.f32 %v3659, %v3660
      %v3662 = vsel %vm1354, %v3629, 0.0
      %v3663 = vadd.f32 %v3661, %v3662
      %v3664 = vsel %vm1354, %v3630, 0.0
      %v3665 = vadd.f32 %v3663, %v3664
      %v3666 = vsel %vm1354, %v3631, 0.0
      %v3667 = vadd.f32 %v3665, %v3666
      %v3668 = vsel %vm1354, %v3632, 0.0
      %v3669 = vadd.f32 %v3667, %v3668
      %v3670 = vsel %vm1354, %v3633, 0.0
      %v3671 = vadd.f32 %v3669, %v3670
      %v3672 = vsel %vm1354, %v3634, 0.0
      %v3673 = vadd.f32 %v3671, %v3672
      %v3674 = vsel %vm1354, %v3635, 0.0
      %v3675 = vadd.f32 %v3673, %v3674
      %v3676 = vsel %vm1354, %v3636, 0.0
      %v3677 = vadd.f32 %v3675, %v3676
      %v3678 = vsel %vm1354, %v3637, 0.0
      %v3679 = vadd.f32 %v3677, %v3678
      %v3680 = vsel %vm1354, %v3638, 0.0
      %v3681 = vadd.f32 %v3679, %v3680
      %v3682 = vsel %vm1354, %v3639, 0.0
      %v3683 = vadd.f32 %v3681, %v3682
      %v3684 = vsel %vm1354, %v3640, 0.0
      %v3685 = vadd.f32 %v3683, %v3684
      %v3686 = vsel %vm1354, %v3641, 0.0
      %v3687 = vadd.f32 %v3685, %v3686
      %v3688 = vsel %vm1354, %v3642, 0.0
      %v3689 = vadd.f32 %v3687, %v3688
      %v3690 = vsel %vm1354, %v3643, 0.0
      %v3691 = vadd.f32 %v3689, %v3690
      %v3692 = vsel %vm1354, %v3644, 0.0
      %v3693 = vadd.f32 %v3691, %v3692
      %v3694 = vsel %vm1354, %v3645, 0.0
      %v3695 = vadd.f32 %v3693, %v3694
      %v3696 = vsel %vm1354, %v3646, 0.0
      %v3697 = vadd.f32 %v3695, %v3696
      %v3698 = vsel %vm1354, %v3647, 0.0
      %v3699 = vadd.f32 %v3697, %v3698
      %v3700 = vsel %vm1354, %v3648, 0.0
      %v3701 = vadd.f32 %v3699, %v3700
      %v3702 = vsel %vm1354, %v3649, 0.0
      %v3703 = vadd.f32 %v3701, %v3702
      %v3704 = vsel %vm1354, %v3650, 0.0
      %v3705 = vadd.f32 %v3703, %v3704
      %v3706 = vsel %vm1354, %v3651, 0.0
      %v3707 = vadd.f32 %v3705, %v3706
      %v3708 = vsel %vm1354, %v3652, 0.0
      %v3709 = vadd.f32 %v3707, %v3708
      %v3710 = vsel %vm1354, %v3653, 0.0
      %v3711 = vadd.f32 %v3709, %v3710
      %v3712 = vsel %vm1354, %v3654, 0.0
      %v3713 = vadd.f32 %v3711, %v3712
      %v3714 = vsel %vm1354, %v3655, 0.0
      %v3715 = vadd.f32 %v3713, %v3714
      %v3716 = vsel %vm1354, %v3656, 0.0
      %v3717 = vadd.f32 %v3715, %v3716
      %v3718 = vsel %vm1354, %v3657, 0.0
      %v3719 = vadd.f32 %v3717, %v3718
      %v3720 = vsel %vm1354, %v3658, 0.0
      %v3721 = vadd.f32 %v3719, %v3720
      %v3722 = vrot.slane %v3721, 4
      %v3723 = vadd.f32 %v3721, %v3722
      %v3724 = vrot.slane %v3723, 2
      %v3725 = vadd.f32 %v3723, %v3724
      %v3726 = vrot.slane %v3725, 1
      %v3727 = vadd.f32 %v3725, %v3726
      %v3728 = vsel %vm1841, %v3626, %v3727
      %vm3729 = vcmask 58368
      %3730 = vst.msk [vmem:[%s262] sm:$0x3] %vm3729, %v3728
      %p3731 = scmp.lt.s32.totalorder %s18, 1
      %s3732 = scalar_select %p3731, %s18, 1
      %s3733 = smul.addr %s3732, 32
      %s3734 = smul.addr %s3733, 8
      %s3735 = scalar_lea.vmem %s5, %s3734
      %p3736 = scmp.lt.s32.totalorder %s18, 1
      %s3737 = scalar_select %p3736, %s18, 1
      %s3738 = smul.addr %s3737, 2
      %s3739 = scalar_lea.vmem %s6, %s3738
      // Predicated region
      $region41: #{conv_block.2} parent=39 // pred_check
        %p3740 = pneg %p146
      $region42: #{conv_block.2} parent=39 // pred_check_branch
        %3742 = sbr.rel (%p3740) target = $region44
      $region43: #{conv_block.2} parent=39 // pred_region
        _
      $region44: #{conv_block.2} parent=39 // pred_fallthru
        _
      // Predicated region
      $region45: #{conv_block.2} parent=39 // pred_check
        %p3743 = pneg %p172
      $region46: #{conv_block.2} parent=39 // pred_check_branch
        %3745 = sbr.rel (%p3743) target = $region48
      $region47: #{conv_block.2} parent=39 // pred_region
        _
      $region48: #{conv_block.2} parent=39 // pred_fallthru
        _
    $region40: #{conv_block.2} parent=5 // pred_fallthru
      _
    %p3746 = scmp.le.s32.totalorder 2, %s13
    // Predicated region
    $region49: #{conv_block.2} parent=5 // pred_check
      %p3747 = pneg %p3746
    $region50: #{conv_block.2} parent=5 // pred_check_branch
      %3749 = sbr.rel (%p3747) target = $region52
    $region51: #{conv_block.2} parent=5 // pred_region
      %s3750 = ssub.s32 %s13, 2
      // Predicated region
      $region53: #{conv_block.2} parent=51 // pred_check
        %p3751 = pneg %p152
      $region54: #{conv_block.2} parent=51 // pred_check_branch
        %3753 = sbr.rel (%p3751) target = $region56
      $region55: #{conv_block.2} parent=51 // pred_region
        %p3754 = scmp.lt.s32.totalorder %s19, 1
        %s3755 = scalar_select %p3754, %s19, 1
        %s3756 = smul.addr %s3755, 32
        %s3757 = smul.addr %s3756, 8
        %s3758 = scalar_lea.vmem %s5, %s3757
      $region56: #{conv_block.2} parent=51 // pred_fallthru
        _
      // Predicated region
      $region57: #{conv_block.2} parent=51 // pred_check
        %p3759 = pneg %p178
      $region58: #{conv_block.2} parent=51 // pred_check_branch
        %3761 = sbr.rel (%p3759) target = $region60
      $region59: #{conv_block.2} parent=51 // pred_region
        %p3762 = scmp.lt.s32.totalorder %s19, 1
        %s3763 = scalar_select %p3762, %s19, 1
        %s3764 = smul.addr %s3763, 2
        %s3765 = scalar_lea.vmem %s6, %s3764
      $region60: #{conv_block.2} parent=51 // pred_fallthru
        _
    $region52: #{conv_block.2} parent=5 // pred_fallthru
      _
  $region6: #{conv_block.2} parent=0 // loop_footer
    %s17 = sadd.s32 1, %s13
  $region7: #{conv_block.2} parent=0 // loop_footer_branch
    %12 = sbr.rel target = $region3
  $region8: #{conv_block.2} parent=0 // loop_exit
    _

</llo_original>
